<compile_context>
chip_gen: v7x
topology: tpu7x:2x2x1
jax: 0.10.0
libtpu: 0.0.40
codegen_flags: <defaults>
</compile_context>

<pallas_src>
import functools

import jax
import jax.numpy as jnp
from jax import lax
from jax.experimental import pallas as pl
from jax.experimental.pallas import tpu as pltpu


# ---------------------------------------------------------------------------
# Kernel 1: per-batch depthwise cross-correlation (all channels on lanes)
#           + f32 channel-sum, one grid step per batch element.
# ---------------------------------------------------------------------------
def _xcorr_kernel(x_ref, z_ref, dw_ref, sum_ref, *, Hz, Wz, Ho, Wo, unroll_all):
    C = x_ref.shape[-1]

    if unroll_all:
        # Small stencil: fully unrolled shift-MAC. Shifts move along the
        # (H, W) sublane/higher axes only; C stays fixed on lanes.
        x = x_ref[...].astype(jnp.float32)          # (Hx, Wx, C)
        z = z_ref[...].astype(jnp.float32)          # (Hz, Wz, C)
        acc = jnp.zeros((Ho, Wo, C), jnp.float32)
        for p in range(Hz):
            for q in range(Wz):
                acc = acc + x[p:p + Ho, q:q + Wo, :] * z[p, q, :]
    else:
        # Large stencil: fori_loop over p bounds vreg live ranges; q unrolled.
        def body(p, acc):
            xs = x_ref[pl.ds(p, Ho)].astype(jnp.float32)   # (Ho, Wx, C)
            zp = z_ref[p].astype(jnp.float32)              # (Wz, C)
            for q in range(Wz):
                acc = acc + xs[:, q:q + Wo, :] * zp[q]
            return acc

        acc = lax.fori_loop(0, Hz, body, jnp.zeros((Ho, Wo, C), jnp.float32))

    dw_ref[...] = acc.astype(dw_ref.dtype)
    # Channel sum (lane reduction, once per batch element), kept in f32.
    sum_ref[...] = jnp.sum(acc, axis=-1).astype(sum_ref.dtype)


# ---------------------------------------------------------------------------
# Kernel 2: BatchNorm2d(1) in training mode — one-pass batch statistics over
# (B, Ho, Wo), biased variance, affine gamma/beta.
# ---------------------------------------------------------------------------
def _bn_kernel(s_ref, gamma_ref, beta_ref, out_ref, *, eps):
    x = s_ref[...].astype(jnp.float32)            # (B, Ho, Wo)
    n = x.size                                    # static
    s = jnp.sum(x)
    ss = jnp.sum(x * x)
    mean = s / n
    var = ss / n - mean * mean                    # biased variance (PyTorch BN norm)
    inv = lax.rsqrt(var + eps)
    out_ref[...] = ((x - mean) * inv * gamma_ref[0] + beta_ref[0]).astype(out_ref.dtype)
    # TODO(synk): running_mean / running_var updates (PyTorch BN buffers) are not
    # returned; only the train-mode forward normalization is implemented.


# ---------------------------------------------------------------------------
# Wrapper
# ---------------------------------------------------------------------------
def man_head_forward(z, x, gamma, beta, eps=1e-5):
    B, C, Hz, Wz = z.shape
    Bx, Cx, Hx, Wx = x.shape
    assert (B, C) == (Bx, Cx)
    Ho, Wo = Hx - Hz + 1, Wx - Wz + 1
    dtype = x.dtype
    itemsize = jnp.dtype(dtype).itemsize

    # Channels-last so C maps to the 128-lane axis inside the kernel.
    x_cl = jnp.transpose(x, (0, 2, 3, 1))         # (B, Hx, Wx, C)
    z_cl = jnp.transpose(z, (0, 2, 3, 1))         # (B, Hz, Wz, C)

    unroll_all = (Hz * Wz) <= 128
    xcorr = functools.partial(
        _xcorr_kernel, Hz=Hz, Wz=Wz, Ho=Ho, Wo=Wo, unroll_all=unroll_all
    )

    # Advisory cost estimate so XLA can schedule around this small custom call.
    flops = 2 * B * C * Ho * Wo * Hz * Wz
    bytes_accessed = (
        (B * C * Hx * Wx + B * C * Hz * Wz + B * C * Ho * Wo) * itemsize
        + B * Ho * Wo * 4
    )

    # VMEM budget: per-step (double-buffered) blocks + f32 working copies.
    per_step_bytes = (Hx * Wx * C + Hz * Wz * C + Ho * Wo * C) * itemsize + Ho * Wo * 4
    est_vmem = 2 * per_step_bytes + (Hx * Wx * C + Ho * Wo * C) * 4
    compiler_kwargs = dict(dimension_semantics=("parallel",))
    if est_vmem > (12 << 20):
        # Only override the scoped limit when the per-batch blocks actually need it
        # (matters on v5e's 16 MiB default; harmless elsewhere).
        compiler_kwargs["vmem_limit_bytes"] = min(int(est_vmem * 2), 48 << 20)

    dw_cl, cls_sum = pl.pallas_call(
        xcorr,
        out_shape=(
            jax.ShapeDtypeStruct((B, Ho, Wo, C), dtype),
            jax.ShapeDtypeStruct((B, Ho, Wo), jnp.float32),
        ),
        grid=(B,),
        in_specs=[
            pl.BlockSpec((None, Hx, Wx, C), lambda b: (b, 0, 0, 0)),
            pl.BlockSpec((None, Hz, Wz, C), lambda b: (b, 0, 0, 0)),
        ],
        out_specs=(
            pl.BlockSpec((None, Ho, Wo, C), lambda b: (b, 0, 0, 0)),
            pl.BlockSpec((None, Ho, Wo), lambda b: (b, 0, 0)),
        ),
        compiler_params=pltpu.CompilerParams(**compiler_kwargs),
        cost_estimate=pl.CostEstimate(
            flops=flops, transcendentals=0, bytes_accessed=bytes_accessed
        ),
    )(x_cl, z_cl)

    bn = functools.partial(_bn_kernel, eps=eps)
    cls_flat = pl.pallas_call(
        bn,
        out_shape=jax.ShapeDtypeStruct((B, Ho, Wo), dtype),
        in_specs=[
            pl.BlockSpec(memory_space=pltpu.MemorySpace.VMEM),
            pl.BlockSpec(memory_space=pltpu.MemorySpace.SMEM),
            pl.BlockSpec(memory_space=pltpu.MemorySpace.SMEM),
        ],
        out_specs=pl.BlockSpec(memory_space=pltpu.MemorySpace.VMEM),
    )(cls_sum, gamma, beta)

    # Back to PyTorch NCHW layout (pure layout plumbing in the wrapper).
    dw_cls = jnp.transpose(dw_cl, (0, 3, 1, 2))       # (B, C, Ho, Wo)
    cls = cls_flat[:, None, :, :]                     # (B, 1, Ho, Wo)
    return dw_cls, cls


# ---------------------------------------------------------------------------
# Pure-JAX reference (same math as the PyTorch module in train mode)
# ---------------------------------------------------------------------------
def _ref_forward(z, x, gamma, beta, eps=1e-5):
    B, C, Hz, Wz = z.shape
    Ho, Wo = x.shape[2] - Hz + 1, x.shape[3] - Wz + 1
    dw = jnp.zeros((B, C, Ho, Wo), jnp.float32)
    for p in range(Hz):
        for q in range(Wz):
            dw = dw + x[:, :, p:p + Ho, q:q + Wo] * z[:, :, p:p + 1, q:q + 1]
    cls = jnp.sum(dw, axis=1, keepdims=True)
    mean = jnp.mean(cls)
    var = jnp.mean((cls - mean) ** 2)
    cls = (cls - mean) / jnp.sqrt(var + eps) * gamma[0] + beta[0]
    return dw, cls


if __name__ == "__main__":
    key = jax.random.PRNGKey(0)
    kz, kx = jax.random.split(key)

    B, C = 2, 4
    Hx = Wx = 16
    Hz = Wz = 8

    z = jax.random.normal(kz, (B, C, Hz, Wz), jnp.float32)
    x = jax.random.normal(kx, (B, C, Hx, Wx), jnp.float32)

    # BatchNorm2d(1) default parameter init (deterministic): weight=1, bias=0.
    gamma = jnp.ones((1,), jnp.float32)
    beta = jnp.zeros((1,), jnp.float32)

    dw_cls, cls = man_head_forward(z, x, gamma, beta)
    jax.block_until_ready((dw_cls, cls))

    dw_ref, cls_ref = _ref_forward(z, x, gamma, beta)
    assert dw_cls.shape == (B, C, Hx - Hz + 1, Wx - Wz + 1)
    assert cls.shape == (B, 1, Hx - Hz + 1, Wx - Wz + 1)
    assert jnp.allclose(dw_cls, dw_ref, atol=1e-4, rtol=1e-4)
    assert jnp.allclose(cls, cls_ref, atol=1e-4, rtol=1e-4)

    print("KERNEL_OK")
</pallas_src>

<mosaic_0001>
module attributes {stable_mosaic.version = 11 : i64} {
  func.func @_xcorr_kernel(%arg0: i32, %arg1: memref<1x16x16x4xf32, #tpu.memory_space<vmem>>, %arg2: memref<1x8x8x4xf32, #tpu.memory_space<vmem>>, %arg3: memref<1x9x9x4xf32, #tpu.memory_space<vmem>>, %arg4: memref<1x9x9xf32, #tpu.memory_space<vmem>>) attributes {dimension_semantics = [#tpu.dimension_semantics<parallel>], iteration_bounds = array<i64: 2>, scalar_prefetch = 0 : i64, scratch_operands = 0 : i64, tpu.core_type = #tpu.core_type<tc>, window_params = [{transform_indices = @transform_0, window_bounds = array<i64: 1, 16, 16, 4>}, {transform_indices = @transform_1, window_bounds = array<i64: 1, 8, 8, 4>}, {transform_indices = @transform_2, window_bounds = array<i64: 1, 9, 9, 4>}, {transform_indices = @transform_3, window_bounds = array<i64: 1, 9, 9>}]} {
    %c0 = arith.constant 0 : index
    %c0_0 = arith.constant 0 : index
    %c0_1 = arith.constant 0 : index
    %c0_2 = arith.constant 0 : index
    %0 = vector.load %arg1[%c0, %c0_0, %c0_1, %c0_2] : memref<1x16x16x4xf32, #tpu.memory_space<vmem>>, vector<1x16x16x4xf32>
    %1 = vector.shape_cast %0 : vector<1x16x16x4xf32> to vector<16x16x4xf32>
    %c0_3 = arith.constant 0 : index
    %c0_4 = arith.constant 0 : index
    %c0_5 = arith.constant 0 : index
    %c0_6 = arith.constant 0 : index
    %2 = vector.load %arg2[%c0_3, %c0_4, %c0_5, %c0_6] : memref<1x8x8x4xf32, #tpu.memory_space<vmem>>, vector<1x8x8x4xf32>
    %3 = vector.shape_cast %2 : vector<1x8x8x4xf32> to vector<8x8x4xf32>
    %cst = arith.constant 0.000000e+00 : f32
    %4 = vector.broadcast %cst : f32 to vector<9x9x4xf32>
    %5 = vector.extract_strided_slice %1 {offsets = [0, 0, 0], sizes = [9, 9, 4], strides = [1, 1, 1]} : vector<16x16x4xf32> to vector<9x9x4xf32>
    %6 = vector.extract_strided_slice %3 {offsets = [0, 0, 0], sizes = [1, 1, 4], strides = [1, 1, 1]} : vector<8x8x4xf32> to vector<1x1x4xf32>
    %7 = vector.shape_cast %6 : vector<1x1x4xf32> to vector<4xf32>
    %8 = vector.shape_cast %7 : vector<4xf32> to vector<1x1x4xf32>
    %9 = vector.broadcast %8 : vector<1x1x4xf32> to vector<9x9x4xf32>
    %10 = arith.mulf %5, %9 : vector<9x9x4xf32>
    %11 = arith.addf %4, %10 : vector<9x9x4xf32>
    %12 = vector.extract_strided_slice %1 {offsets = [0, 1, 0], sizes = [9, 9, 4], strides = [1, 1, 1]} : vector<16x16x4xf32> to vector<9x9x4xf32>
    %13 = vector.extract_strided_slice %3 {offsets = [0, 1, 0], sizes = [1, 1, 4], strides = [1, 1, 1]} : vector<8x8x4xf32> to vector<1x1x4xf32>
    %14 = vector.shape_cast %13 : vector<1x1x4xf32> to vector<4xf32>
    %15 = vector.shape_cast %14 : vector<4xf32> to vector<1x1x4xf32>
    %16 = vector.broadcast %15 : vector<1x1x4xf32> to vector<9x9x4xf32>
    %17 = arith.mulf %12, %16 : vector<9x9x4xf32>
    %18 = arith.addf %11, %17 : vector<9x9x4xf32>
    %19 = vector.extract_strided_slice %1 {offsets = [0, 2, 0], sizes = [9, 9, 4], strides = [1, 1, 1]} : vector<16x16x4xf32> to vector<9x9x4xf32>
    %20 = vector.extract_strided_slice %3 {offsets = [0, 2, 0], sizes = [1, 1, 4], strides = [1, 1, 1]} : vector<8x8x4xf32> to vector<1x1x4xf32>
    %21 = vector.shape_cast %20 : vector<1x1x4xf32> to vector<4xf32>
    %22 = vector.shape_cast %21 : vector<4xf32> to vector<1x1x4xf32>
    %23 = vector.broadcast %22 : vector<1x1x4xf32> to vector<9x9x4xf32>
    %24 = arith.mulf %19, %23 : vector<9x9x4xf32>
    %25 = arith.addf %18, %24 : vector<9x9x4xf32>
    %26 = vector.extract_strided_slice %1 {offsets = [0, 3, 0], sizes = [9, 9, 4], strides = [1, 1, 1]} : vector<16x16x4xf32> to vector<9x9x4xf32>
    %27 = vector.extract_strided_slice %3 {offsets = [0, 3, 0], sizes = [1, 1, 4], strides = [1, 1, 1]} : vector<8x8x4xf32> to vector<1x1x4xf32>
    %28 = vector.shape_cast %27 : vector<1x1x4xf32> to vector<4xf32>
    %29 = vector.shape_cast %28 : vector<4xf32> to vector<1x1x4xf32>
    %30 = vector.broadcast %29 : vector<1x1x4xf32> to vector<9x9x4xf32>
    %31 = arith.mulf %26, %30 : vector<9x9x4xf32>
    %32 = arith.addf %25, %31 : vector<9x9x4xf32>
    %33 = vector.extract_strided_slice %1 {offsets = [0, 4, 0], sizes = [9, 9, 4], strides = [1, 1, 1]} : vector<16x16x4xf32> to vector<9x9x4xf32>
    %34 = vector.extract_strided_slice %3 {offsets = [0, 4, 0], sizes = [1, 1, 4], strides = [1, 1, 1]} : vector<8x8x4xf32> to vector<1x1x4xf32>
    %35 = vector.shape_cast %34 : vector<1x1x4xf32> to vector<4xf32>
    %36 = vector.shape_cast %35 : vector<4xf32> to vector<1x1x4xf32>
    %37 = vector.broadcast %36 : vector<1x1x4xf32> to vector<9x9x4xf32>
    %38 = arith.mulf %33, %37 : vector<9x9x4xf32>
    %39 = arith.addf %32, %38 : vector<9x9x4xf32>
    %40 = vector.extract_strided_slice %1 {offsets = [0, 5, 0], sizes = [9, 9, 4], strides = [1, 1, 1]} : vector<16x16x4xf32> to vector<9x9x4xf32>
    %41 = vector.extract_strided_slice %3 {offsets = [0, 5, 0], sizes = [1, 1, 4], strides = [1, 1, 1]} : vector<8x8x4xf32> to vector<1x1x4xf32>
    %42 = vector.shape_cast %41 : vector<1x1x4xf32> to vector<4xf32>
    %43 = vector.shape_cast %42 : vector<4xf32> to vector<1x1x4xf32>
    %44 = vector.broadcast %43 : vector<1x1x4xf32> to vector<9x9x4xf32>
    %45 = arith.mulf %40, %44 : vector<9x9x4xf32>
    %46 = arith.addf %39, %45 : vector<9x9x4xf32>
    %47 = vector.extract_strided_slice %1 {offsets = [0, 6, 0], sizes = [9, 9, 4], strides = [1, 1, 1]} : vector<16x16x4xf32> to vector<9x9x4xf32>
    %48 = vector.extract_strided_slice %3 {offsets = [0, 6, 0], sizes = [1, 1, 4], strides = [1, 1, 1]} : vector<8x8x4xf32> to vector<1x1x4xf32>
    %49 = vector.shape_cast %48 : vector<1x1x4xf32> to vector<4xf32>
    %50 = vector.shape_cast %49 : vector<4xf32> to vector<1x1x4xf32>
    %51 = vector.broadcast %50 : vector<1x1x4xf32> to vector<9x9x4xf32>
    %52 = arith.mulf %47, %51 : vector<9x9x4xf32>
    %53 = arith.addf %46, %52 : vector<9x9x4xf32>
    %54 = vector.extract_strided_slice %1 {offsets = [0, 7, 0], sizes = [9, 9, 4], strides = [1, 1, 1]} : vector<16x16x4xf32> to vector<9x9x4xf32>
    %55 = vector.extract_strided_slice %3 {offsets = [0, 7, 0], sizes = [1, 1, 4], strides = [1, 1, 1]} : vector<8x8x4xf32> to vector<1x1x4xf32>
    %56 = vector.shape_cast %55 : vector<1x1x4xf32> to vector<4xf32>
    %57 = vector.shape_cast %56 : vector<4xf32> to vector<1x1x4xf32>
    %58 = vector.broadcast %57 : vector<1x1x4xf32> to vector<9x9x4xf32>
    %59 = arith.mulf %54, %58 : vector<9x9x4xf32>
    %60 = arith.addf %53, %59 : vector<9x9x4xf32>
    %61 = vector.extract_strided_slice %1 {offsets = [1, 0, 0], sizes = [9, 9, 4], strides = [1, 1, 1]} : vector<16x16x4xf32> to vector<9x9x4xf32>
    %62 = vector.extract_strided_slice %3 {offsets = [1, 0, 0], sizes = [1, 1, 4], strides = [1, 1, 1]} : vector<8x8x4xf32> to vector<1x1x4xf32>
    %63 = vector.shape_cast %62 : vector<1x1x4xf32> to vector<4xf32>
    %64 = vector.shape_cast %63 : vector<4xf32> to vector<1x1x4xf32>
    %65 = vector.broadcast %64 : vector<1x1x4xf32> to vector<9x9x4xf32>
    %66 = arith.mulf %61, %65 : vector<9x9x4xf32>
    %67 = arith.addf %60, %66 : vector<9x9x4xf32>
    %68 = vector.extract_strided_slice %1 {offsets = [1, 1, 0], sizes = [9, 9, 4], strides = [1, 1, 1]} : vector<16x16x4xf32> to vector<9x9x4xf32>
    %69 = vector.extract_strided_slice %3 {offsets = [1, 1, 0], sizes = [1, 1, 4], strides = [1, 1, 1]} : vector<8x8x4xf32> to vector<1x1x4xf32>
    %70 = vector.shape_cast %69 : vector<1x1x4xf32> to vector<4xf32>
    %71 = vector.shape_cast %70 : vector<4xf32> to vector<1x1x4xf32>
    %72 = vector.broadcast %71 : vector<1x1x4xf32> to vector<9x9x4xf32>
    %73 = arith.mulf %68, %72 : vector<9x9x4xf32>
    %74 = arith.addf %67, %73 : vector<9x9x4xf32>
    %75 = vector.extract_strided_slice %1 {offsets = [1, 2, 0], sizes = [9, 9, 4], strides = [1, 1, 1]} : vector<16x16x4xf32> to vector<9x9x4xf32>
    %76 = vector.extract_strided_slice %3 {offsets = [1, 2, 0], sizes = [1, 1, 4], strides = [1, 1, 1]} : vector<8x8x4xf32> to vector<1x1x4xf32>
    %77 = vector.shape_cast %76 : vector<1x1x4xf32> to vector<4xf32>
    %78 = vector.shape_cast %77 : vector<4xf32> to vector<1x1x4xf32>
    %79 = vector.broadcast %78 : vector<1x1x4xf32> to vector<9x9x4xf32>
    %80 = arith.mulf %75, %79 : vector<9x9x4xf32>
    %81 = arith.addf %74, %80 : vector<9x9x4xf32>
    %82 = vector.extract_strided_slice %1 {offsets = [1, 3, 0], sizes = [9, 9, 4], strides = [1, 1, 1]} : vector<16x16x4xf32> to vector<9x9x4xf32>
    %83 = vector.extract_strided_slice %3 {offsets = [1, 3, 0], sizes = [1, 1, 4], strides = [1, 1, 1]} : vector<8x8x4xf32> to vector<1x1x4xf32>
    %84 = vector.shape_cast %83 : vector<1x1x4xf32> to vector<4xf32>
    %85 = vector.shape_cast %84 : vector<4xf32> to vector<1x1x4xf32>
    %86 = vector.broadcast %85 : vector<1x1x4xf32> to vector<9x9x4xf32>
    %87 = arith.mulf %82, %86 : vector<9x9x4xf32>
    %88 = arith.addf %81, %87 : vector<9x9x4xf32>
    %89 = vector.extract_strided_slice %1 {offsets = [1, 4, 0], sizes = [9, 9, 4], strides = [1, 1, 1]} : vector<16x16x4xf32> to vector<9x9x4xf32>
    %90 = vector.extract_strided_slice %3 {offsets = [1, 4, 0], sizes = [1, 1, 4], strides = [1, 1, 1]} : vector<8x8x4xf32> to vector<1x1x4xf32>
    %91 = vector.shape_cast %90 : vector<1x1x4xf32> to vector<4xf32>
    %92 = vector.shape_cast %91 : vector<4xf32> to vector<1x1x4xf32>
    %93 = vector.broadcast %92 : vector<1x1x4xf32> to vector<9x9x4xf32>
    %94 = arith.mulf %89, %93 : vector<9x9x4xf32>
    %95 = arith.addf %88, %94 : vector<9x9x4xf32>
    %96 = vector.extract_strided_slice %1 {offsets = [1, 5, 0], sizes = [9, 9, 4], strides = [1, 1, 1]} : vector<16x16x4xf32> to vector<9x9x4xf32>
    %97 = vector.extract_strided_slice %3 {offsets = [1, 5, 0], sizes = [1, 1, 4], strides = [1, 1, 1]} : vector<8x8x4xf32> to vector<1x1x4xf32>
    %98 = vector.shape_cast %97 : vector<1x1x4xf32> to vector<4xf32>
    %99 = vector.shape_cast %98 : vector<4xf32> to vector<1x1x4xf32>
    %100 = vector.broadcast %99 : vector<1x1x4xf32> to vector<9x9x4xf32>
    %101 = arith.mulf %96, %100 : vector<9x9x4xf32>
    %102 = arith.addf %95, %101 : vector<9x9x4xf32>
    %103 = vector.extract_strided_slice %1 {offsets = [1, 6, 0], sizes = [9, 9, 4], strides = [1, 1, 1]} : vector<16x16x4xf32> to vector<9x9x4xf32>
    %104 = vector.extract_strided_slice %3 {offsets = [1, 6, 0], sizes = [1, 1, 4], strides = [1, 1, 1]} : vector<8x8x4xf32> to vector<1x1x4xf32>
    %105 = vector.shape_cast %104 : vector<1x1x4xf32> to vector<4xf32>
    %106 = vector.shape_cast %105 : vector<4xf32> to vector<1x1x4xf32>
    %107 = vector.broadcast %106 : vector<1x1x4xf32> to vector<9x9x4xf32>
    %108 = arith.mulf %103, %107 : vector<9x9x4xf32>
    %109 = arith.addf %102, %108 : vector<9x9x4xf32>
    %110 = vector.extract_strided_slice %1 {offsets = [1, 7, 0], sizes = [9, 9, 4], strides = [1, 1, 1]} : vector<16x16x4xf32> to vector<9x9x4xf32>
    %111 = vector.extract_strided_slice %3 {offsets = [1, 7, 0], sizes = [1, 1, 4], strides = [1, 1, 1]} : vector<8x8x4xf32> to vector<1x1x4xf32>
    %112 = vector.shape_cast %111 : vector<1x1x4xf32> to vector<4xf32>
    %113 = vector.shape_cast %112 : vector<4xf32> to vector<1x1x4xf32>
    %114 = vector.broadcast %113 : vector<1x1x4xf32> to vector<9x9x4xf32>
    %115 = arith.mulf %110, %114 : vector<9x9x4xf32>
    %116 = arith.addf %109, %115 : vector<9x9x4xf32>
    %117 = vector.extract_strided_slice %1 {offsets = [2, 0, 0], sizes = [9, 9, 4], strides = [1, 1, 1]} : vector<16x16x4xf32> to vector<9x9x4xf32>
    %118 = vector.extract_strided_slice %3 {offsets = [2, 0, 0], sizes = [1, 1, 4], strides = [1, 1, 1]} : vector<8x8x4xf32> to vector<1x1x4xf32>
    %119 = vector.shape_cast %118 : vector<1x1x4xf32> to vector<4xf32>
    %120 = vector.shape_cast %119 : vector<4xf32> to vector<1x1x4xf32>
    %121 = vector.broadcast %120 : vector<1x1x4xf32> to vector<9x9x4xf32>
    %122 = arith.mulf %117, %121 : vector<9x9x4xf32>
    %123 = arith.addf %116, %122 : vector<9x9x4xf32>
    %124 = vector.extract_strided_slice %1 {offsets = [2, 1, 0], sizes = [9, 9, 4], strides = [1, 1, 1]} : vector<16x16x4xf32> to vector<9x9x4xf32>
    %125 = vector.extract_strided_slice %3 {offsets = [2, 1, 0], sizes = [1, 1, 4], strides = [1, 1, 1]} : vector<8x8x4xf32> to vector<1x1x4xf32>
    %126 = vector.shape_cast %125 : vector<1x1x4xf32> to vector<4xf32>
    %127 = vector.shape_cast %126 : vector<4xf32> to vector<1x1x4xf32>
    %128 = vector.broadcast %127 : vector<1x1x4xf32> to vector<9x9x4xf32>
    %129 = arith.mulf %124, %128 : vector<9x9x4xf32>
    %130 = arith.addf %123, %129 : vector<9x9x4xf32>
    %131 = vector.extract_strided_slice %1 {offsets = [2, 2, 0], sizes = [9, 9, 4], strides = [1, 1, 1]} : vector<16x16x4xf32> to vector<9x9x4xf32>
    %132 = vector.extract_strided_slice %3 {offsets = [2, 2, 0], sizes = [1, 1, 4], strides = [1, 1, 1]} : vector<8x8x4xf32> to vector<1x1x4xf32>
    %133 = vector.shape_cast %132 : vector<1x1x4xf32> to vector<4xf32>
    %134 = vector.shape_cast %133 : vector<4xf32> to vector<1x1x4xf32>
    %135 = vector.broadcast %134 : vector<1x1x4xf32> to vector<9x9x4xf32>
    %136 = arith.mulf %131, %135 : vector<9x9x4xf32>
    %137 = arith.addf %130, %136 : vector<9x9x4xf32>
    %138 = vector.extract_strided_slice %1 {offsets = [2, 3, 0], sizes = [9, 9, 4], strides = [1, 1, 1]} : vector<16x16x4xf32> to vector<9x9x4xf32>
    %139 = vector.extract_strided_slice %3 {offsets = [2, 3, 0], sizes = [1, 1, 4], strides = [1, 1, 1]} : vector<8x8x4xf32> to vector<1x1x4xf32>
    %140 = vector.shape_cast %139 : vector<1x1x4xf32> to vector<4xf32>
    %141 = vector.shape_cast %140 : vector<4xf32> to vector<1x1x4xf32>
    %142 = vector.broadcast %141 : vector<1x1x4xf32> to vector<9x9x4xf32>
    %143 = arith.mulf %138, %142 : vector<9x9x4xf32>
    %144 = arith.addf %137, %143 : vector<9x9x4xf32>
    %145 = vector.extract_strided_slice %1 {offsets = [2, 4, 0], sizes = [9, 9, 4], strides = [1, 1, 1]} : vector<16x16x4xf32> to vector<9x9x4xf32>
    %146 = vector.extract_strided_slice %3 {offsets = [2, 4, 0], sizes = [1, 1, 4], strides = [1, 1, 1]} : vector<8x8x4xf32> to vector<1x1x4xf32>
    %147 = vector.shape_cast %146 : vector<1x1x4xf32> to vector<4xf32>
    %148 = vector.shape_cast %147 : vector<4xf32> to vector<1x1x4xf32>
    %149 = vector.broadcast %148 : vector<1x1x4xf32> to vector<9x9x4xf32>
    %150 = arith.mulf %145, %149 : vector<9x9x4xf32>
    %151 = arith.addf %144, %150 : vector<9x9x4xf32>
    %152 = vector.extract_strided_slice %1 {offsets = [2, 5, 0], sizes = [9, 9, 4], strides = [1, 1, 1]} : vector<16x16x4xf32> to vector<9x9x4xf32>
    %153 = vector.extract_strided_slice %3 {offsets = [2, 5, 0], sizes = [1, 1, 4], strides = [1, 1, 1]} : vector<8x8x4xf32> to vector<1x1x4xf32>
    %154 = vector.shape_cast %153 : vector<1x1x4xf32> to vector<4xf32>
    %155 = vector.shape_cast %154 : vector<4xf32> to vector<1x1x4xf32>
    %156 = vector.broadcast %155 : vector<1x1x4xf32> to vector<9x9x4xf32>
    %157 = arith.mulf %152, %156 : vector<9x9x4xf32>
    %158 = arith.addf %151, %157 : vector<9x9x4xf32>
    %159 = vector.extract_strided_slice %1 {offsets = [2, 6, 0], sizes = [9, 9, 4], strides = [1, 1, 1]} : vector<16x16x4xf32> to vector<9x9x4xf32>
    %160 = vector.extract_strided_slice %3 {offsets = [2, 6, 0], sizes = [1, 1, 4], strides = [1, 1, 1]} : vector<8x8x4xf32> to vector<1x1x4xf32>
    %161 = vector.shape_cast %160 : vector<1x1x4xf32> to vector<4xf32>
    %162 = vector.shape_cast %161 : vector<4xf32> to vector<1x1x4xf32>
    %163 = vector.broadcast %162 : vector<1x1x4xf32> to vector<9x9x4xf32>
    %164 = arith.mulf %159, %163 : vector<9x9x4xf32>
    %165 = arith.addf %158, %164 : vector<9x9x4xf32>
    %166 = vector.extract_strided_slice %1 {offsets = [2, 7, 0], sizes = [9, 9, 4], strides = [1, 1, 1]} : vector<16x16x4xf32> to vector<9x9x4xf32>
    %167 = vector.extract_strided_slice %3 {offsets = [2, 7, 0], sizes = [1, 1, 4], strides = [1, 1, 1]} : vector<8x8x4xf32> to vector<1x1x4xf32>
    %168 = vector.shape_cast %167 : vector<1x1x4xf32> to vector<4xf32>
    %169 = vector.shape_cast %168 : vector<4xf32> to vector<1x1x4xf32>
    %170 = vector.broadcast %169 : vector<1x1x4xf32> to vector<9x9x4xf32>
    %171 = arith.mulf %166, %170 : vector<9x9x4xf32>
    %172 = arith.addf %165, %171 : vector<9x9x4xf32>
    %173 = vector.extract_strided_slice %1 {offsets = [3, 0, 0], sizes = [9, 9, 4], strides = [1, 1, 1]} : vector<16x16x4xf32> to vector<9x9x4xf32>
    %174 = vector.extract_strided_slice %3 {offsets = [3, 0, 0], sizes = [1, 1, 4], strides = [1, 1, 1]} : vector<8x8x4xf32> to vector<1x1x4xf32>
    %175 = vector.shape_cast %174 : vector<1x1x4xf32> to vector<4xf32>
    %176 = vector.shape_cast %175 : vector<4xf32> to vector<1x1x4xf32>
    %177 = vector.broadcast %176 : vector<1x1x4xf32> to vector<9x9x4xf32>
    %178 = arith.mulf %173, %177 : vector<9x9x4xf32>
    %179 = arith.addf %172, %178 : vector<9x9x4xf32>
    %180 = vector.extract_strided_slice %1 {offsets = [3, 1, 0], sizes = [9, 9, 4], strides = [1, 1, 1]} : vector<16x16x4xf32> to vector<9x9x4xf32>
    %181 = vector.extract_strided_slice %3 {offsets = [3, 1, 0], sizes = [1, 1, 4], strides = [1, 1, 1]} : vector<8x8x4xf32> to vector<1x1x4xf32>
    %182 = vector.shape_cast %181 : vector<1x1x4xf32> to vector<4xf32>
    %183 = vector.shape_cast %182 : vector<4xf32> to vector<1x1x4xf32>
    %184 = vector.broadcast %183 : vector<1x1x4xf32> to vector<9x9x4xf32>
    %185 = arith.mulf %180, %184 : vector<9x9x4xf32>
    %186 = arith.addf %179, %185 : vector<9x9x4xf32>
    %187 = vector.extract_strided_slice %1 {offsets = [3, 2, 0], sizes = [9, 9, 4], strides = [1, 1, 1]} : vector<16x16x4xf32> to vector<9x9x4xf32>
    %188 = vector.extract_strided_slice %3 {offsets = [3, 2, 0], sizes = [1, 1, 4], strides = [1, 1, 1]} : vector<8x8x4xf32> to vector<1x1x4xf32>
    %189 = vector.shape_cast %188 : vector<1x1x4xf32> to vector<4xf32>
    %190 = vector.shape_cast %189 : vector<4xf32> to vector<1x1x4xf32>
    %191 = vector.broadcast %190 : vector<1x1x4xf32> to vector<9x9x4xf32>
    %192 = arith.mulf %187, %191 : vector<9x9x4xf32>
    %193 = arith.addf %186, %192 : vector<9x9x4xf32>
    %194 = vector.extract_strided_slice %1 {offsets = [3, 3, 0], sizes = [9, 9, 4], strides = [1, 1, 1]} : vector<16x16x4xf32> to vector<9x9x4xf32>
    %195 = vector.extract_strided_slice %3 {offsets = [3, 3, 0], sizes = [1, 1, 4], strides = [1, 1, 1]} : vector<8x8x4xf32> to vector<1x1x4xf32>
    %196 = vector.shape_cast %195 : vector<1x1x4xf32> to vector<4xf32>
    %197 = vector.shape_cast %196 : vector<4xf32> to vector<1x1x4xf32>
    %198 = vector.broadcast %197 : vector<1x1x4xf32> to vector<9x9x4xf32>
    %199 = arith.mulf %194, %198 : vector<9x9x4xf32>
    %200 = arith.addf %193, %199 : vector<9x9x4xf32>
    %201 = vector.extract_strided_slice %1 {offsets = [3, 4, 0], sizes = [9, 9, 4], strides = [1, 1, 1]} : vector<16x16x4xf32> to vector<9x9x4xf32>
    %202 = vector.extract_strided_slice %3 {offsets = [3, 4, 0], sizes = [1, 1, 4], strides = [1, 1, 1]} : vector<8x8x4xf32> to vector<1x1x4xf32>
    %203 = vector.shape_cast %202 : vector<1x1x4xf32> to vector<4xf32>
    %204 = vector.shape_cast %203 : vector<4xf32> to vector<1x1x4xf32>
    %205 = vector.broadcast %204 : vector<1x1x4xf32> to vector<9x9x4xf32>
    %206 = arith.mulf %201, %205 : vector<9x9x4xf32>
    %207 = arith.addf %200, %206 : vector<9x9x4xf32>
    %208 = vector.extract_strided_slice %1 {offsets = [3, 5, 0], sizes = [9, 9, 4], strides = [1, 1, 1]} : vector<16x16x4xf32> to vector<9x9x4xf32>
    %209 = vector.extract_strided_slice %3 {offsets = [3, 5, 0], sizes = [1, 1, 4], strides = [1, 1, 1]} : vector<8x8x4xf32> to vector<1x1x4xf32>
    %210 = vector.shape_cast %209 : vector<1x1x4xf32> to vector<4xf32>
    %211 = vector.shape_cast %210 : vector<4xf32> to vector<1x1x4xf32>
    %212 = vector.broadcast %211 : vector<1x1x4xf32> to vector<9x9x4xf32>
    %213 = arith.mulf %208, %212 : vector<9x9x4xf32>
    %214 = arith.addf %207, %213 : vector<9x9x4xf32>
    %215 = vector.extract_strided_slice %1 {offsets = [3, 6, 0], sizes = [9, 9, 4], strides = [1, 1, 1]} : vector<16x16x4xf32> to vector<9x9x4xf32>
    %216 = vector.extract_strided_slice %3 {offsets = [3, 6, 0], sizes = [1, 1, 4], strides = [1, 1, 1]} : vector<8x8x4xf32> to vector<1x1x4xf32>
    %217 = vector.shape_cast %216 : vector<1x1x4xf32> to vector<4xf32>
    %218 = vector.shape_cast %217 : vector<4xf32> to vector<1x1x4xf32>
    %219 = vector.broadcast %218 : vector<1x1x4xf32> to vector<9x9x4xf32>
    %220 = arith.mulf %215, %219 : vector<9x9x4xf32>
    %221 = arith.addf %214, %220 : vector<9x9x4xf32>
    %222 = vector.extract_strided_slice %1 {offsets = [3, 7, 0], sizes = [9, 9, 4], strides = [1, 1, 1]} : vector<16x16x4xf32> to vector<9x9x4xf32>
    %223 = vector.extract_strided_slice %3 {offsets = [3, 7, 0], sizes = [1, 1, 4], strides = [1, 1, 1]} : vector<8x8x4xf32> to vector<1x1x4xf32>
    %224 = vector.shape_cast %223 : vector<1x1x4xf32> to vector<4xf32>
    %225 = vector.shape_cast %224 : vector<4xf32> to vector<1x1x4xf32>
    %226 = vector.broadcast %225 : vector<1x1x4xf32> to vector<9x9x4xf32>
    %227 = arith.mulf %222, %226 : vector<9x9x4xf32>
    %228 = arith.addf %221, %227 : vector<9x9x4xf32>
    %229 = vector.extract_strided_slice %1 {offsets = [4, 0, 0], sizes = [9, 9, 4], strides = [1, 1, 1]} : vector<16x16x4xf32> to vector<9x9x4xf32>
    %230 = vector.extract_strided_slice %3 {offsets = [4, 0, 0], sizes = [1, 1, 4], strides = [1, 1, 1]} : vector<8x8x4xf32> to vector<1x1x4xf32>
    %231 = vector.shape_cast %230 : vector<1x1x4xf32> to vector<4xf32>
    %232 = vector.shape_cast %231 : vector<4xf32> to vector<1x1x4xf32>
    %233 = vector.broadcast %232 : vector<1x1x4xf32> to vector<9x9x4xf32>
    %234 = arith.mulf %229, %233 : vector<9x9x4xf32>
    %235 = arith.addf %228, %234 : vector<9x9x4xf32>
    %236 = vector.extract_strided_slice %1 {offsets = [4, 1, 0], sizes = [9, 9, 4], strides = [1, 1, 1]} : vector<16x16x4xf32> to vector<9x9x4xf32>
    %237 = vector.extract_strided_slice %3 {offsets = [4, 1, 0], sizes = [1, 1, 4], strides = [1, 1, 1]} : vector<8x8x4xf32> to vector<1x1x4xf32>
    %238 = vector.shape_cast %237 : vector<1x1x4xf32> to vector<4xf32>
    %239 = vector.shape_cast %238 : vector<4xf32> to vector<1x1x4xf32>
    %240 = vector.broadcast %239 : vector<1x1x4xf32> to vector<9x9x4xf32>
    %241 = arith.mulf %236, %240 : vector<9x9x4xf32>
    %242 = arith.addf %235, %241 : vector<9x9x4xf32>
    %243 = vector.extract_strided_slice %1 {offsets = [4, 2, 0], sizes = [9, 9, 4], strides = [1, 1, 1]} : vector<16x16x4xf32> to vector<9x9x4xf32>
    %244 = vector.extract_strided_slice %3 {offsets = [4, 2, 0], sizes = [1, 1, 4], strides = [1, 1, 1]} : vector<8x8x4xf32> to vector<1x1x4xf32>
    %245 = vector.shape_cast %244 : vector<1x1x4xf32> to vector<4xf32>
    %246 = vector.shape_cast %245 : vector<4xf32> to vector<1x1x4xf32>
    %247 = vector.broadcast %246 : vector<1x1x4xf32> to vector<9x9x4xf32>
    %248 = arith.mulf %243, %247 : vector<9x9x4xf32>
    %249 = arith.addf %242, %248 : vector<9x9x4xf32>
    %250 = vector.extract_strided_slice %1 {offsets = [4, 3, 0], sizes = [9, 9, 4], strides = [1, 1, 1]} : vector<16x16x4xf32> to vector<9x9x4xf32>
    %251 = vector.extract_strided_slice %3 {offsets = [4, 3, 0], sizes = [1, 1, 4], strides = [1, 1, 1]} : vector<8x8x4xf32> to vector<1x1x4xf32>
    %252 = vector.shape_cast %251 : vector<1x1x4xf32> to vector<4xf32>
    %253 = vector.shape_cast %252 : vector<4xf32> to vector<1x1x4xf32>
    %254 = vector.broadcast %253 : vector<1x1x4xf32> to vector<9x9x4xf32>
    %255 = arith.mulf %250, %254 : vector<9x9x4xf32>
    %256 = arith.addf %249, %255 : vector<9x9x4xf32>
    %257 = vector.extract_strided_slice %1 {offsets = [4, 4, 0], sizes = [9, 9, 4], strides = [1, 1, 1]} : vector<16x16x4xf32> to vector<9x9x4xf32>
    %258 = vector.extract_strided_slice %3 {offsets = [4, 4, 0], sizes = [1, 1, 4], strides = [1, 1, 1]} : vector<8x8x4xf32> to vector<1x1x4xf32>
    %259 = vector.shape_cast %258 : vector<1x1x4xf32> to vector<4xf32>
    %260 = vector.shape_cast %259 : vector<4xf32> to vector<1x1x4xf32>
    %261 = vector.broadcast %260 : vector<1x1x4xf32> to vector<9x9x4xf32>
    %262 = arith.mulf %257, %261 : vector<9x9x4xf32>
    %263 = arith.addf %256, %262 : vector<9x9x4xf32>
    %264 = vector.extract_strided_slice %1 {offsets = [4, 5, 0], sizes = [9, 9, 4], strides = [1, 1, 1]} : vector<16x16x4xf32> to vector<9x9x4xf32>
    %265 = vector.extract_strided_slice %3 {offsets = [4, 5, 0], sizes = [1, 1, 4], strides = [1, 1, 1]} : vector<8x8x4xf32> to vector<1x1x4xf32>
    %266 = vector.shape_cast %265 : vector<1x1x4xf32> to vector<4xf32>
    %267 = vector.shape_cast %266 : vector<4xf32> to vector<1x1x4xf32>
    %268 = vector.broadcast %267 : vector<1x1x4xf32> to vector<9x9x4xf32>
    %269 = arith.mulf %264, %268 : vector<9x9x4xf32>
    %270 = arith.addf %263, %269 : vector<9x9x4xf32>
    %271 = vector.extract_strided_slice %1 {offsets = [4, 6, 0], sizes = [9, 9, 4], strides = [1, 1, 1]} : vector<16x16x4xf32> to vector<9x9x4xf32>
    %272 = vector.extract_strided_slice %3 {offsets = [4, 6, 0], sizes = [1, 1, 4], strides = [1, 1, 1]} : vector<8x8x4xf32> to vector<1x1x4xf32>
    %273 = vector.shape_cast %272 : vector<1x1x4xf32> to vector<4xf32>
    %274 = vector.shape_cast %273 : vector<4xf32> to vector<1x1x4xf32>
    %275 = vector.broadcast %274 : vector<1x1x4xf32> to vector<9x9x4xf32>
    %276 = arith.mulf %271, %275 : vector<9x9x4xf32>
    %277 = arith.addf %270, %276 : vector<9x9x4xf32>
    %278 = vector.extract_strided_slice %1 {offsets = [4, 7, 0], sizes = [9, 9, 4], strides = [1, 1, 1]} : vector<16x16x4xf32> to vector<9x9x4xf32>
    %279 = vector.extract_strided_slice %3 {offsets = [4, 7, 0], sizes = [1, 1, 4], strides = [1, 1, 1]} : vector<8x8x4xf32> to vector<1x1x4xf32>
    %280 = vector.shape_cast %279 : vector<1x1x4xf32> to vector<4xf32>
    %281 = vector.shape_cast %280 : vector<4xf32> to vector<1x1x4xf32>
    %282 = vector.broadcast %281 : vector<1x1x4xf32> to vector<9x9x4xf32>
    %283 = arith.mulf %278, %282 : vector<9x9x4xf32>
    %284 = arith.addf %277, %283 : vector<9x9x4xf32>
    %285 = vector.extract_strided_slice %1 {offsets = [5, 0, 0], sizes = [9, 9, 4], strides = [1, 1, 1]} : vector<16x16x4xf32> to vector<9x9x4xf32>
    %286 = vector.extract_strided_slice %3 {offsets = [5, 0, 0], sizes = [1, 1, 4], strides = [1, 1, 1]} : vector<8x8x4xf32> to vector<1x1x4xf32>
    %287 = vector.shape_cast %286 : vector<1x1x4xf32> to vector<4xf32>
    %288 = vector.shape_cast %287 : vector<4xf32> to vector<1x1x4xf32>
    %289 = vector.broadcast %288 : vector<1x1x4xf32> to vector<9x9x4xf32>
    %290 = arith.mulf %285, %289 : vector<9x9x4xf32>
    %291 = arith.addf %284, %290 : vector<9x9x4xf32>
    %292 = vector.extract_strided_slice %1 {offsets = [5, 1, 0], sizes = [9, 9, 4], strides = [1, 1, 1]} : vector<16x16x4xf32> to vector<9x9x4xf32>
    %293 = vector.extract_strided_slice %3 {offsets = [5, 1, 0], sizes = [1, 1, 4], strides = [1, 1, 1]} : vector<8x8x4xf32> to vector<1x1x4xf32>
    %294 = vector.shape_cast %293 : vector<1x1x4xf32> to vector<4xf32>
    %295 = vector.shape_cast %294 : vector<4xf32> to vector<1x1x4xf32>
    %296 = vector.broadcast %295 : vector<1x1x4xf32> to vector<9x9x4xf32>
    %297 = arith.mulf %292, %296 : vector<9x9x4xf32>
    %298 = arith.addf %291, %297 : vector<9x9x4xf32>
    %299 = vector.extract_strided_slice %1 {offsets = [5, 2, 0], sizes = [9, 9, 4], strides = [1, 1, 1]} : vector<16x16x4xf32> to vector<9x9x4xf32>
    %300 = vector.extract_strided_slice %3 {offsets = [5, 2, 0], sizes = [1, 1, 4], strides = [1, 1, 1]} : vector<8x8x4xf32> to vector<1x1x4xf32>
    %301 = vector.shape_cast %300 : vector<1x1x4xf32> to vector<4xf32>
    %302 = vector.shape_cast %301 : vector<4xf32> to vector<1x1x4xf32>
    %303 = vector.broadcast %302 : vector<1x1x4xf32> to vector<9x9x4xf32>
    %304 = arith.mulf %299, %303 : vector<9x9x4xf32>
    %305 = arith.addf %298, %304 : vector<9x9x4xf32>
    %306 = vector.extract_strided_slice %1 {offsets = [5, 3, 0], sizes = [9, 9, 4], strides = [1, 1, 1]} : vector<16x16x4xf32> to vector<9x9x4xf32>
    %307 = vector.extract_strided_slice %3 {offsets = [5, 3, 0], sizes = [1, 1, 4], strides = [1, 1, 1]} : vector<8x8x4xf32> to vector<1x1x4xf32>
    %308 = vector.shape_cast %307 : vector<1x1x4xf32> to vector<4xf32>
    %309 = vector.shape_cast %308 : vector<4xf32> to vector<1x1x4xf32>
    %310 = vector.broadcast %309 : vector<1x1x4xf32> to vector<9x9x4xf32>
    %311 = arith.mulf %306, %310 : vector<9x9x4xf32>
    %312 = arith.addf %305, %311 : vector<9x9x4xf32>
    %313 = vector.extract_strided_slice %1 {offsets = [5, 4, 0], sizes = [9, 9, 4], strides = [1, 1, 1]} : vector<16x16x4xf32> to vector<9x9x4xf32>
    %314 = vector.extract_strided_slice %3 {offsets = [5, 4, 0], sizes = [1, 1, 4], strides = [1, 1, 1]} : vector<8x8x4xf32> to vector<1x1x4xf32>
    %315 = vector.shape_cast %314 : vector<1x1x4xf32> to vector<4xf32>
    %316 = vector.shape_cast %315 : vector<4xf32> to vector<1x1x4xf32>
    %317 = vector.broadcast %316 : vector<1x1x4xf32> to vector<9x9x4xf32>
    %318 = arith.mulf %313, %317 : vector<9x9x4xf32>
    %319 = arith.addf %312, %318 : vector<9x9x4xf32>
    %320 = vector.extract_strided_slice %1 {offsets = [5, 5, 0], sizes = [9, 9, 4], strides = [1, 1, 1]} : vector<16x16x4xf32> to vector<9x9x4xf32>
    %321 = vector.extract_strided_slice %3 {offsets = [5, 5, 0], sizes = [1, 1, 4], strides = [1, 1, 1]} : vector<8x8x4xf32> to vector<1x1x4xf32>
    %322 = vector.shape_cast %321 : vector<1x1x4xf32> to vector<4xf32>
    %323 = vector.shape_cast %322 : vector<4xf32> to vector<1x1x4xf32>
    %324 = vector.broadcast %323 : vector<1x1x4xf32> to vector<9x9x4xf32>
    %325 = arith.mulf %320, %324 : vector<9x9x4xf32>
    %326 = arith.addf %319, %325 : vector<9x9x4xf32>
    %327 = vector.extract_strided_slice %1 {offsets = [5, 6, 0], sizes = [9, 9, 4], strides = [1, 1, 1]} : vector<16x16x4xf32> to vector<9x9x4xf32>
    %328 = vector.extract_strided_slice %3 {offsets = [5, 6, 0], sizes = [1, 1, 4], strides = [1, 1, 1]} : vector<8x8x4xf32> to vector<1x1x4xf32>
    %329 = vector.shape_cast %328 : vector<1x1x4xf32> to vector<4xf32>
    %330 = vector.shape_cast %329 : vector<4xf32> to vector<1x1x4xf32>
    %331 = vector.broadcast %330 : vector<1x1x4xf32> to vector<9x9x4xf32>
    %332 = arith.mulf %327, %331 : vector<9x9x4xf32>
    %333 = arith.addf %326, %332 : vector<9x9x4xf32>
    %334 = vector.extract_strided_slice %1 {offsets = [5, 7, 0], sizes = [9, 9, 4], strides = [1, 1, 1]} : vector<16x16x4xf32> to vector<9x9x4xf32>
    %335 = vector.extract_strided_slice %3 {offsets = [5, 7, 0], sizes = [1, 1, 4], strides = [1, 1, 1]} : vector<8x8x4xf32> to vector<1x1x4xf32>
    %336 = vector.shape_cast %335 : vector<1x1x4xf32> to vector<4xf32>
    %337 = vector.shape_cast %336 : vector<4xf32> to vector<1x1x4xf32>
    %338 = vector.broadcast %337 : vector<1x1x4xf32> to vector<9x9x4xf32>
    %339 = arith.mulf %334, %338 : vector<9x9x4xf32>
    %340 = arith.addf %333, %339 : vector<9x9x4xf32>
    %341 = vector.extract_strided_slice %1 {offsets = [6, 0, 0], sizes = [9, 9, 4], strides = [1, 1, 1]} : vector<16x16x4xf32> to vector<9x9x4xf32>
    %342 = vector.extract_strided_slice %3 {offsets = [6, 0, 0], sizes = [1, 1, 4], strides = [1, 1, 1]} : vector<8x8x4xf32> to vector<1x1x4xf32>
    %343 = vector.shape_cast %342 : vector<1x1x4xf32> to vector<4xf32>
    %344 = vector.shape_cast %343 : vector<4xf32> to vector<1x1x4xf32>
    %345 = vector.broadcast %344 : vector<1x1x4xf32> to vector<9x9x4xf32>
    %346 = arith.mulf %341, %345 : vector<9x9x4xf32>
    %347 = arith.addf %340, %346 : vector<9x9x4xf32>
    %348 = vector.extract_strided_slice %1 {offsets = [6, 1, 0], sizes = [9, 9, 4], strides = [1, 1, 1]} : vector<16x16x4xf32> to vector<9x9x4xf32>
    %349 = vector.extract_strided_slice %3 {offsets = [6, 1, 0], sizes = [1, 1, 4], strides = [1, 1, 1]} : vector<8x8x4xf32> to vector<1x1x4xf32>
    %350 = vector.shape_cast %349 : vector<1x1x4xf32> to vector<4xf32>
    %351 = vector.shape_cast %350 : vector<4xf32> to vector<1x1x4xf32>
    %352 = vector.broadcast %351 : vector<1x1x4xf32> to vector<9x9x4xf32>
    %353 = arith.mulf %348, %352 : vector<9x9x4xf32>
    %354 = arith.addf %347, %353 : vector<9x9x4xf32>
    %355 = vector.extract_strided_slice %1 {offsets = [6, 2, 0], sizes = [9, 9, 4], strides = [1, 1, 1]} : vector<16x16x4xf32> to vector<9x9x4xf32>
    %356 = vector.extract_strided_slice %3 {offsets = [6, 2, 0], sizes = [1, 1, 4], strides = [1, 1, 1]} : vector<8x8x4xf32> to vector<1x1x4xf32>
    %357 = vector.shape_cast %356 : vector<1x1x4xf32> to vector<4xf32>
    %358 = vector.shape_cast %357 : vector<4xf32> to vector<1x1x4xf32>
    %359 = vector.broadcast %358 : vector<1x1x4xf32> to vector<9x9x4xf32>
    %360 = arith.mulf %355, %359 : vector<9x9x4xf32>
    %361 = arith.addf %354, %360 : vector<9x9x4xf32>
    %362 = vector.extract_strided_slice %1 {offsets = [6, 3, 0], sizes = [9, 9, 4], strides = [1, 1, 1]} : vector<16x16x4xf32> to vector<9x9x4xf32>
    %363 = vector.extract_strided_slice %3 {offsets = [6, 3, 0], sizes = [1, 1, 4], strides = [1, 1, 1]} : vector<8x8x4xf32> to vector<1x1x4xf32>
    %364 = vector.shape_cast %363 : vector<1x1x4xf32> to vector<4xf32>
    %365 = vector.shape_cast %364 : vector<4xf32> to vector<1x1x4xf32>
    %366 = vector.broadcast %365 : vector<1x1x4xf32> to vector<9x9x4xf32>
    %367 = arith.mulf %362, %366 : vector<9x9x4xf32>
    %368 = arith.addf %361, %367 : vector<9x9x4xf32>
    %369 = vector.extract_strided_slice %1 {offsets = [6, 4, 0], sizes = [9, 9, 4], strides = [1, 1, 1]} : vector<16x16x4xf32> to vector<9x9x4xf32>
    %370 = vector.extract_strided_slice %3 {offsets = [6, 4, 0], sizes = [1, 1, 4], strides = [1, 1, 1]} : vector<8x8x4xf32> to vector<1x1x4xf32>
    %371 = vector.shape_cast %370 : vector<1x1x4xf32> to vector<4xf32>
    %372 = vector.shape_cast %371 : vector<4xf32> to vector<1x1x4xf32>
    %373 = vector.broadcast %372 : vector<1x1x4xf32> to vector<9x9x4xf32>
    %374 = arith.mulf %369, %373 : vector<9x9x4xf32>
    %375 = arith.addf %368, %374 : vector<9x9x4xf32>
    %376 = vector.extract_strided_slice %1 {offsets = [6, 5, 0], sizes = [9, 9, 4], strides = [1, 1, 1]} : vector<16x16x4xf32> to vector<9x9x4xf32>
    %377 = vector.extract_strided_slice %3 {offsets = [6, 5, 0], sizes = [1, 1, 4], strides = [1, 1, 1]} : vector<8x8x4xf32> to vector<1x1x4xf32>
    %378 = vector.shape_cast %377 : vector<1x1x4xf32> to vector<4xf32>
    %379 = vector.shape_cast %378 : vector<4xf32> to vector<1x1x4xf32>
    %380 = vector.broadcast %379 : vector<1x1x4xf32> to vector<9x9x4xf32>
    %381 = arith.mulf %376, %380 : vector<9x9x4xf32>
    %382 = arith.addf %375, %381 : vector<9x9x4xf32>
    %383 = vector.extract_strided_slice %1 {offsets = [6, 6, 0], sizes = [9, 9, 4], strides = [1, 1, 1]} : vector<16x16x4xf32> to vector<9x9x4xf32>
    %384 = vector.extract_strided_slice %3 {offsets = [6, 6, 0], sizes = [1, 1, 4], strides = [1, 1, 1]} : vector<8x8x4xf32> to vector<1x1x4xf32>
    %385 = vector.shape_cast %384 : vector<1x1x4xf32> to vector<4xf32>
    %386 = vector.shape_cast %385 : vector<4xf32> to vector<1x1x4xf32>
    %387 = vector.broadcast %386 : vector<1x1x4xf32> to vector<9x9x4xf32>
    %388 = arith.mulf %383, %387 : vector<9x9x4xf32>
    %389 = arith.addf %382, %388 : vector<9x9x4xf32>
    %390 = vector.extract_strided_slice %1 {offsets = [6, 7, 0], sizes = [9, 9, 4], strides = [1, 1, 1]} : vector<16x16x4xf32> to vector<9x9x4xf32>
    %391 = vector.extract_strided_slice %3 {offsets = [6, 7, 0], sizes = [1, 1, 4], strides = [1, 1, 1]} : vector<8x8x4xf32> to vector<1x1x4xf32>
    %392 = vector.shape_cast %391 : vector<1x1x4xf32> to vector<4xf32>
    %393 = vector.shape_cast %392 : vector<4xf32> to vector<1x1x4xf32>
    %394 = vector.broadcast %393 : vector<1x1x4xf32> to vector<9x9x4xf32>
    %395 = arith.mulf %390, %394 : vector<9x9x4xf32>
    %396 = arith.addf %389, %395 : vector<9x9x4xf32>
    %397 = vector.extract_strided_slice %1 {offsets = [7, 0, 0], sizes = [9, 9, 4], strides = [1, 1, 1]} : vector<16x16x4xf32> to vector<9x9x4xf32>
    %398 = vector.extract_strided_slice %3 {offsets = [7, 0, 0], sizes = [1, 1, 4], strides = [1, 1, 1]} : vector<8x8x4xf32> to vector<1x1x4xf32>
    %399 = vector.shape_cast %398 : vector<1x1x4xf32> to vector<4xf32>
    %400 = vector.shape_cast %399 : vector<4xf32> to vector<1x1x4xf32>
    %401 = vector.broadcast %400 : vector<1x1x4xf32> to vector<9x9x4xf32>
    %402 = arith.mulf %397, %401 : vector<9x9x4xf32>
    %403 = arith.addf %396, %402 : vector<9x9x4xf32>
    %404 = vector.extract_strided_slice %1 {offsets = [7, 1, 0], sizes = [9, 9, 4], strides = [1, 1, 1]} : vector<16x16x4xf32> to vector<9x9x4xf32>
    %405 = vector.extract_strided_slice %3 {offsets = [7, 1, 0], sizes = [1, 1, 4], strides = [1, 1, 1]} : vector<8x8x4xf32> to vector<1x1x4xf32>
    %406 = vector.shape_cast %405 : vector<1x1x4xf32> to vector<4xf32>
    %407 = vector.shape_cast %406 : vector<4xf32> to vector<1x1x4xf32>
    %408 = vector.broadcast %407 : vector<1x1x4xf32> to vector<9x9x4xf32>
    %409 = arith.mulf %404, %408 : vector<9x9x4xf32>
    %410 = arith.addf %403, %409 : vector<9x9x4xf32>
    %411 = vector.extract_strided_slice %1 {offsets = [7, 2, 0], sizes = [9, 9, 4], strides = [1, 1, 1]} : vector<16x16x4xf32> to vector<9x9x4xf32>
    %412 = vector.extract_strided_slice %3 {offsets = [7, 2, 0], sizes = [1, 1, 4], strides = [1, 1, 1]} : vector<8x8x4xf32> to vector<1x1x4xf32>
    %413 = vector.shape_cast %412 : vector<1x1x4xf32> to vector<4xf32>
    %414 = vector.shape_cast %413 : vector<4xf32> to vector<1x1x4xf32>
    %415 = vector.broadcast %414 : vector<1x1x4xf32> to vector<9x9x4xf32>
    %416 = arith.mulf %411, %415 : vector<9x9x4xf32>
    %417 = arith.addf %410, %416 : vector<9x9x4xf32>
    %418 = vector.extract_strided_slice %1 {offsets = [7, 3, 0], sizes = [9, 9, 4], strides = [1, 1, 1]} : vector<16x16x4xf32> to vector<9x9x4xf32>
    %419 = vector.extract_strided_slice %3 {offsets = [7, 3, 0], sizes = [1, 1, 4], strides = [1, 1, 1]} : vector<8x8x4xf32> to vector<1x1x4xf32>
    %420 = vector.shape_cast %419 : vector<1x1x4xf32> to vector<4xf32>
    %421 = vector.shape_cast %420 : vector<4xf32> to vector<1x1x4xf32>
    %422 = vector.broadcast %421 : vector<1x1x4xf32> to vector<9x9x4xf32>
    %423 = arith.mulf %418, %422 : vector<9x9x4xf32>
    %424 = arith.addf %417, %423 : vector<9x9x4xf32>
    %425 = vector.extract_strided_slice %1 {offsets = [7, 4, 0], sizes = [9, 9, 4], strides = [1, 1, 1]} : vector<16x16x4xf32> to vector<9x9x4xf32>
    %426 = vector.extract_strided_slice %3 {offsets = [7, 4, 0], sizes = [1, 1, 4], strides = [1, 1, 1]} : vector<8x8x4xf32> to vector<1x1x4xf32>
    %427 = vector.shape_cast %426 : vector<1x1x4xf32> to vector<4xf32>
    %428 = vector.shape_cast %427 : vector<4xf32> to vector<1x1x4xf32>
    %429 = vector.broadcast %428 : vector<1x1x4xf32> to vector<9x9x4xf32>
    %430 = arith.mulf %425, %429 : vector<9x9x4xf32>
    %431 = arith.addf %424, %430 : vector<9x9x4xf32>
    %432 = vector.extract_strided_slice %1 {offsets = [7, 5, 0], sizes = [9, 9, 4], strides = [1, 1, 1]} : vector<16x16x4xf32> to vector<9x9x4xf32>
    %433 = vector.extract_strided_slice %3 {offsets = [7, 5, 0], sizes = [1, 1, 4], strides = [1, 1, 1]} : vector<8x8x4xf32> to vector<1x1x4xf32>
    %434 = vector.shape_cast %433 : vector<1x1x4xf32> to vector<4xf32>
    %435 = vector.shape_cast %434 : vector<4xf32> to vector<1x1x4xf32>
    %436 = vector.broadcast %435 : vector<1x1x4xf32> to vector<9x9x4xf32>
    %437 = arith.mulf %432, %436 : vector<9x9x4xf32>
    %438 = arith.addf %431, %437 : vector<9x9x4xf32>
    %439 = vector.extract_strided_slice %1 {offsets = [7, 6, 0], sizes = [9, 9, 4], strides = [1, 1, 1]} : vector<16x16x4xf32> to vector<9x9x4xf32>
    %440 = vector.extract_strided_slice %3 {offsets = [7, 6, 0], sizes = [1, 1, 4], strides = [1, 1, 1]} : vector<8x8x4xf32> to vector<1x1x4xf32>
    %441 = vector.shape_cast %440 : vector<1x1x4xf32> to vector<4xf32>
    %442 = vector.shape_cast %441 : vector<4xf32> to vector<1x1x4xf32>
    %443 = vector.broadcast %442 : vector<1x1x4xf32> to vector<9x9x4xf32>
    %444 = arith.mulf %439, %443 : vector<9x9x4xf32>
    %445 = arith.addf %438, %444 : vector<9x9x4xf32>
    %446 = vector.extract_strided_slice %1 {offsets = [7, 7, 0], sizes = [9, 9, 4], strides = [1, 1, 1]} : vector<16x16x4xf32> to vector<9x9x4xf32>
    %447 = vector.extract_strided_slice %3 {offsets = [7, 7, 0], sizes = [1, 1, 4], strides = [1, 1, 1]} : vector<8x8x4xf32> to vector<1x1x4xf32>
    %448 = vector.shape_cast %447 : vector<1x1x4xf32> to vector<4xf32>
    %449 = vector.shape_cast %448 : vector<4xf32> to vector<1x1x4xf32>
    %450 = vector.broadcast %449 : vector<1x1x4xf32> to vector<9x9x4xf32>
    %451 = arith.mulf %446, %450 : vector<9x9x4xf32>
    %452 = arith.addf %445, %451 : vector<9x9x4xf32>
    %c0_7 = arith.constant 0 : index
    %c0_8 = arith.constant 0 : index
    %c0_9 = arith.constant 0 : index
    %c0_10 = arith.constant 0 : index
    %453 = vector.load %arg3[%c0_7, %c0_8, %c0_9, %c0_10] : memref<1x9x9x4xf32, #tpu.memory_space<vmem>>, vector<1x9x9x4xf32>
    %454 = vector.shape_cast %453 : vector<1x9x9x4xf32> to vector<9x9x4xf32>
    %455 = vector.shape_cast %452 : vector<9x9x4xf32> to vector<1x9x9x4xf32>
    tpu.vector_store %arg3[%c0_7, %c0_8, %c0_9, %c0_10], %455 {strides = array<i32>} : memref<1x9x9x4xf32, #tpu.memory_space<vmem>>, vector<1x9x9x4xf32>,
    %cst_11 = arith.constant dense<0.000000e+00> : vector<9x9xf32>
    %456 = vector.multi_reduction <add>, %452, %cst_11 [2] : vector<9x9x4xf32> to vector<9x9xf32>
    %c0_12 = arith.constant 0 : index
    %c0_13 = arith.constant 0 : index
    %c0_14 = arith.constant 0 : index
    %457 = vector.load %arg4[%c0_12, %c0_13, %c0_14] : memref<1x9x9xf32, #tpu.memory_space<vmem>>, vector<1x9x9xf32>
    %458 = vector.shape_cast %457 : vector<1x9x9xf32> to vector<9x9xf32>
    %459 = vector.shape_cast %456 : vector<9x9xf32> to vector<1x9x9xf32>
    tpu.vector_store %arg4[%c0_12, %c0_13, %c0_14], %459 {strides = array<i32>} : memref<1x9x9xf32, #tpu.memory_space<vmem>>, vector<1x9x9xf32>,
    return
  }
  func.func @transform_0(%arg0: i32) -> (i32, i32, i32, i32) {
    %c0_i32 = arith.constant 0 : i32
    %c0_i32_0 = arith.constant 0 : i32
    %c0_i32_1 = arith.constant 0 : i32
    %c0_i32_2 = arith.constant 0 : i32
    return %arg0, %c0_i32, %c0_i32_0, %c0_i32_1 : i32, i32, i32, i32
  }
  func.func @transform_1(%arg0: i32) -> (i32, i32, i32, i32) {
    %c0_i32 = arith.constant 0 : i32
    %c0_i32_0 = arith.constant 0 : i32
    %c0_i32_1 = arith.constant 0 : i32
    %c0_i32_2 = arith.constant 0 : i32
    return %arg0, %c0_i32, %c0_i32_0, %c0_i32_1 : i32, i32, i32, i32
  }
  func.func @transform_2(%arg0: i32) -> (i32, i32, i32, i32) {
    %c0_i32 = arith.constant 0 : i32
    %c0_i32_0 = arith.constant 0 : i32
    %c0_i32_1 = arith.constant 0 : i32
    %c0_i32_2 = arith.constant 0 : i32
    return %arg0, %c0_i32, %c0_i32_0, %c0_i32_1 : i32, i32, i32, i32
  }
  func.func @transform_3(%arg0: i32) -> (i32, i32, i32) {
    %c0_i32 = arith.constant 0 : i32
    %c0_i32_0 = arith.constant 0 : i32
    %c0_i32_1 = arith.constant 0 : i32
    return %arg0, %c0_i32, %c0_i32_0 : i32, i32, i32
  }
}

</mosaic_0001>

<llo_original>
// kernel: tpu_custom_call.1
$region0: #{tpu_custom_call.1}
  #allocation0 [shape = 'u32[]', space=smem, size = 0x4, offset = 0x4, fixed_abs, tag = 'smem constant byte address 0x4 - core index']
  #allocation1 [shape = 'u32[144,128]{1,0:T(1,128)}', space=vmem, size = 0x12000, scoped, tag = 'internal scratch']
  %s0 = inlined_call_operand.vmem [shape: f32[2,16,16,4], index: 0, kind: input, shape index: {}]
  %s1 = inlined_call_operand.vmem [shape: f32[2,8,8,4], index: 1, kind: input, shape index: {}]
  %s2 = inlined_call_operand.vmem [shape: f32[2,9,9,4], index: 2, kind: output, shape index: {0}]
  %s3 = inlined_call_operand.vmem [shape: f32[2,9,9], index: 3, kind: output, shape index: {1}]
  %4 = xla_tuple %s2, %s3
  %s5 = sld [smem:[#allocation0]]
  $region49: #{tpu_custom_call.1} parent=0
    _
  %s7 = ssub.s32 1, %s5
  %s8 = scalar_select 0, %s7, %s5
  loop: start=0, step=1, limit=4
  $region2: #{tpu_custom_call.1} parent=0 // loop_pre_header
    _
  $region3: #{tpu_custom_call.1} parent=0 // loop_header
    %s10 = sphi 0, %s14
    %p11 = scmp.ge.s32.totalorder %s10, 4
    %s20 = sphi 0, %s22
    %s23 = sphi 0, %s20
    %s24 = sphi 0, %s23
    %s40 = sphi 0, %s24
    %s46 = sphi 0, %s48
    %s49 = sphi 0, %s46
    %s50 = sphi 0, %s49
    %s66 = sphi 0, %s50
    %s72 = sphi 0, %s74
    %s75 = sphi 0, %s72
    %s76 = sphi 0, %s75
    %s92 = sphi 0, %s76
    %s98 = sphi 0, %s100
    %s101 = sphi 0, %s98
    %s102 = sphi 0, %s101
    %s118 = sphi 0, %s102
  $region4: #{tpu_custom_call.1} parent=0 // loop_header_branch
    %13 = sbr.rel (%p11) target = $region8
  $region5: #{tpu_custom_call.1} parent=0 // loop_body
    %s15 = ssub.s32 %s10, 1
    %s16 = ssub.s32 %s10, 2
    %s17 = sadd.s32 %s10, 1
    %s18 = ssub.s32 %s10, %s17
    %p19 = scmp.eq.s32.totalorder %s18, 0
    %s21 = sadd.s32 %s20, 1
    %s22 = scalar_select %p19, %s20, %s21
    %p25 = pneg %p19
    %p26 = scmp.eq.s32.totalorder %s10, 1
    %p27 = por %p25, %p26
    %p28 = scmp.ne.s32.totalorder %s20, %s23
    %p29 = scmp.eq.s32.totalorder %s10, 0
    %p30 = por %p28, %p29
    %p31 = scmp.ne.s32.totalorder %s20, %s23
    %p32 = scmp.eq.s32.totalorder %s15, 1
    %p33 = por %p31, %p32
    %p34 = scmp.ne.s32.totalorder %s23, %s24
    %p35 = scmp.eq.s32.totalorder %s15, 0
    %p36 = por %p34, %p35
    %p37 = scmp.ne.s32.totalorder %s23, %s24
    %p38 = scmp.eq.s32.totalorder %s16, 1
    %p39 = por %p37, %p38
    %p41 = scmp.ne.s32.totalorder %s24, %s40
    %p42 = scmp.eq.s32.totalorder %s16, 0
    %p43 = por %p41, %p42
    %s44 = ssub.s32 %s10, %s17
    %p45 = scmp.eq.s32.totalorder %s44, 0
    %s47 = sadd.s32 %s46, 1
    %s48 = scalar_select %p45, %s46, %s47
    %p51 = pneg %p45
    %p52 = scmp.eq.s32.totalorder %s10, 1
    %p53 = por %p51, %p52
    %p54 = scmp.ne.s32.totalorder %s46, %s49
    %p55 = scmp.eq.s32.totalorder %s10, 0
    %p56 = por %p54, %p55
    %p57 = scmp.ne.s32.totalorder %s46, %s49
    %p58 = scmp.eq.s32.totalorder %s15, 1
    %p59 = por %p57, %p58
    %p60 = scmp.ne.s32.totalorder %s49, %s50
    %p61 = scmp.eq.s32.totalorder %s15, 0
    %p62 = por %p60, %p61
    %p63 = scmp.ne.s32.totalorder %s49, %s50
    %p64 = scmp.eq.s32.totalorder %s16, 1
    %p65 = por %p63, %p64
    %p67 = scmp.ne.s32.totalorder %s50, %s66
    %p68 = scmp.eq.s32.totalorder %s16, 0
    %p69 = por %p67, %p68
    %s70 = ssub.s32 %s10, %s17
    %p71 = scmp.eq.s32.totalorder %s70, 0
    %s73 = sadd.s32 %s72, 1
    %s74 = scalar_select %p71, %s72, %s73
    %p77 = pneg %p71
    %p78 = scmp.eq.s32.totalorder %s10, 1
    %p79 = por %p77, %p78
    %p80 = scmp.ne.s32.totalorder %s72, %s75
    %p81 = scmp.eq.s32.totalorder %s10, 0
    %p82 = por %p80, %p81
    %p83 = scmp.ne.s32.totalorder %s72, %s75
    %p84 = scmp.eq.s32.totalorder %s15, 1
    %p85 = por %p83, %p84
    %p86 = scmp.ne.s32.totalorder %s75, %s76
    %p87 = scmp.eq.s32.totalorder %s15, 0
    %p88 = por %p86, %p87
    %p89 = scmp.ne.s32.totalorder %s75, %s76
    %p90 = scmp.eq.s32.totalorder %s16, 1
    %p91 = por %p89, %p90
    %p93 = scmp.ne.s32.totalorder %s76, %s92
    %p94 = scmp.eq.s32.totalorder %s16, 0
    %p95 = por %p93, %p94
    %s96 = ssub.s32 %s10, %s17
    %p97 = scmp.eq.s32.totalorder %s96, 0
    %s99 = sadd.s32 %s98, 1
    %s100 = scalar_select %p97, %s98, %s99
    %p103 = pneg %p97
    %p104 = scmp.eq.s32.totalorder %s10, 1
    %p105 = por %p103, %p104
    %p106 = scmp.ne.s32.totalorder %s98, %s101
    %p107 = scmp.eq.s32.totalorder %s10, 0
    %p108 = por %p106, %p107
    %p109 = scmp.ne.s32.totalorder %s98, %s101
    %p110 = scmp.eq.s32.totalorder %s15, 1
    %p111 = por %p109, %p110
    %p112 = scmp.ne.s32.totalorder %s101, %s102
    %p113 = scmp.eq.s32.totalorder %s15, 0
    %p114 = por %p112, %p113
    %p115 = scmp.ne.s32.totalorder %s101, %s102
    %p116 = scmp.eq.s32.totalorder %s16, 1
    %p117 = por %p115, %p116
    %p119 = scmp.ne.s32.totalorder %s102, %s118
    %p120 = scmp.eq.s32.totalorder %s16, 0
    %p121 = por %p119, %p120
    %p122 = scmp.le.s32.totalorder 1, %s10
    %p123 = scmp.lt.s32.totalorder %s10, 3
    %p124 = pnand %p122, %p123
    %p125 = pneg %p124
    // Predicated region
    $region9: #{tpu_custom_call.1} parent=5 // pred_check
      _
    $region10: #{tpu_custom_call.1} parent=5 // pred_check_branch
      %127 = sbr.rel (%p124) target = $region12
    $region11: #{tpu_custom_call.1} parent=5 // pred_region
      %s128 = ssub.s32 %s10, 1
    $region12: #{tpu_custom_call.1} parent=5 // pred_fallthru
      _
    %p129 = scmp.lt.s32.totalorder %s10, 2
    // Predicated region
    $region13: #{tpu_custom_call.1} parent=5 // pred_check
      %p130 = pneg %p129
    $region14: #{tpu_custom_call.1} parent=5 // pred_check_branch
      %132 = sbr.rel (%p130) target = $region16
    $region15: #{tpu_custom_call.1} parent=5 // pred_region
      // Predicated region
      $region17: #{tpu_custom_call.1} parent=15 // pred_check
        %p133 = pneg %p30
      $region18: #{tpu_custom_call.1} parent=15 // pred_check_branch
        %135 = sbr.rel (%p133) target = $region20
      $region19: #{tpu_custom_call.1} parent=15 // pred_region
        %p136 = scmp.lt.s32.totalorder %s10, 1
        %s137 = scalar_select %p136, %s10, 1
        %s138 = smul.addr %s137, 32
        %s139 = smul.addr %s138, 8
        %s140 = scalar_lea.vmem %s0, %s139
      $region20: #{tpu_custom_call.1} parent=15 // pred_fallthru
        _
      // Predicated region
      $region21: #{tpu_custom_call.1} parent=15 // pred_check
        %p141 = pneg %p56
      $region22: #{tpu_custom_call.1} parent=15 // pred_check_branch
        %143 = sbr.rel (%p141) target = $region24
      $region23: #{tpu_custom_call.1} parent=15 // pred_region
        %p144 = scmp.lt.s32.totalorder %s10, 1
        %s145 = scalar_select %p144, %s10, 1
        %s146 = smul.addr %s145, 8
        %s147 = smul.addr %s146, 8
        %s148 = scalar_lea.vmem %s1, %s147
      $region24: #{tpu_custom_call.1} parent=15 // pred_fallthru
        _
    $region16: #{tpu_custom_call.1} parent=5 // pred_fallthru
      _
    %p149 = scmp.le.s32.totalorder 1, %s10
    %p150 = scmp.lt.s32.totalorder %s10, 3
    %p151 = pnand %p149, %p150
    %p152 = pneg %p151
    // Predicated region
    $region25: #{tpu_custom_call.1} parent=5 // pred_check
      _
    $region26: #{tpu_custom_call.1} parent=5 // pred_check_branch
      %154 = sbr.rel (%p151) target = $region28
    $region27: #{tpu_custom_call.1} parent=5 // pred_region
      %s155 = ssub.s32 %s10, 1
      %p156 = scmp.lt.s32.totalorder %s15, 1
      %s157 = scalar_select %p156, %s15, 1
      %s158 = smul.addr %s157, 32
      %s159 = smul.addr %s158, 8
      %s160 = scalar_lea.vmem %s0, %s159
      %p161 = pneg %p36
      %p162 = pneg %p33
      %p163 = scmp.lt.s32.totalorder %s15, 1
      %s164 = scalar_select %p163, %s15, 1
      %s165 = smul.addr %s164, 8
      %s166 = smul.addr %s165, 8
      %s167 = scalar_lea.vmem %s1, %s166
      %p168 = pneg %p62
      %p169 = pneg %p59
      %p170 = pneg %p88
      %p171 = pneg %p85
      %p172 = scmp.lt.s32.totalorder %s15, 1
      %s173 = scalar_select %p172, %s15, 1
      %s174 = smul.addr %s173, 18
      %s175 = smul.addr %s174, 8
      %s176 = scalar_lea.vmem %s2, %s175
      %p177 = pneg %p114
      %p178 = pneg %p111
      %p179 = scmp.lt.s32.totalorder %s15, 1
      %s180 = scalar_select %p179, %s15, 1
      %s181 = smul.addr %s180, 2
      %s182 = smul.addr %s181, 8
      %s183 = scalar_lea.vmem %s3, %s182
      %p184 = scmp.lt.s32.totalorder %s15, 1
      %s185 = scalar_select %p184, %s15, 1
      %s186 = smul.addr %s185, 32
      %s187 = smul.addr %s186, 8
      %s188 = scalar_lea.vmem %s0, %s187
      %p189 = scmp.lt.s32.totalorder %s15, 1
      %s190 = scalar_select %p189, %s15, 1
      %s191 = smul.addr %s190, 8
      %s192 = smul.addr %s191, 8
      %s193 = scalar_lea.vmem %s1, %s192
      %p194 = scmp.lt.s32.totalorder %s15, 1
      %s195 = scalar_select %p194, %s15, 1
      %s196 = smul.addr %s195, 18
      %s197 = smul.addr %s196, 8
      %s198 = scalar_lea.vmem %s2, %s197
      %p199 = scmp.lt.s32.totalorder %s15, 1
      %s200 = scalar_select %p199, %s15, 1
      %s201 = smul.addr %s200, 2
      %s202 = smul.addr %s201, 8
      %s203 = scalar_lea.vmem %s3, %s202
      %v204 = vld [vmem:[%s188] sm:$0xff]
      %v205 = vld [vmem:[%s188 + $0x8] sm:$0xff]
      %v206 = vld [vmem:[%s188 + $0x10] sm:$0xff]
      %v207 = vld [vmem:[%s188 + $0x18] sm:$0xff]
      %v208 = vld [vmem:[%s188 + $0x20] sm:$0xff]
      %v209 = vld [vmem:[%s188 + $0x28] sm:$0xff]
      %v210 = vld [vmem:[%s188 + $0x30] sm:$0xff]
      %v211 = vld [vmem:[%s188 + $0x38] sm:$0xff]
      %v212 = vld [vmem:[%s188 + $0x40] sm:$0xff]
      %v213 = vld [vmem:[%s188 + $0x48] sm:$0xff]
      %v214 = vld [vmem:[%s188 + $0x50] sm:$0xff]
      %v215 = vld [vmem:[%s188 + $0x58] sm:$0xff]
      %v216 = vld [vmem:[%s188 + $0x60] sm:$0xff]
      %v217 = vld [vmem:[%s188 + $0x68] sm:$0xff]
      %v218 = vld [vmem:[%s188 + $0x70] sm:$0xff]
      %v219 = vld [vmem:[%s188 + $0x78] sm:$0xff]
      %v220 = vld [vmem:[%s188 + $0x80] sm:$0xff]
      %v221 = vld [vmem:[%s188 + $0x88] sm:$0xff]
      %v222 = vld [vmem:[%s188 + $0x90] sm:$0xff]
      %v223 = vld [vmem:[%s188 + $0x98] sm:$0xff]
      %v224 = vld [vmem:[%s188 + $0xa0] sm:$0xff]
      %v225 = vld [vmem:[%s188 + $0xa8] sm:$0xff]
      %v226 = vld [vmem:[%s188 + $0xb0] sm:$0xff]
      %v227 = vld [vmem:[%s188 + $0xb8] sm:$0xff]
      %v228 = vld [vmem:[%s188 + $0xc0] sm:$0xff]
      %v229 = vld [vmem:[%s188 + $0xc8] sm:$0xff]
      %v230 = vld [vmem:[%s188 + $0xd0] sm:$0xff]
      %v231 = vld [vmem:[%s188 + $0xd8] sm:$0xff]
      %v232 = vld [vmem:[%s188 + $0xe0] sm:$0xff]
      %v233 = vld [vmem:[%s188 + $0xe8] sm:$0xff]
      %v234 = vld [vmem:[%s188 + $0xf0] sm:$0xff]
      %v235 = vld [vmem:[%s188 + $0xf8] sm:$0xff]
      %v236 = vld [vmem:[%s193] sm:$0xff]
      %v237 = vld [vmem:[%s193 + $0x8] sm:$0xff]
      %v238 = vld [vmem:[%s193 + $0x10] sm:$0xff]
      %v239 = vld [vmem:[%s193 + $0x18] sm:$0xff]
      %v240 = vld [vmem:[%s193 + $0x20] sm:$0xff]
      %v241 = vld [vmem:[%s193 + $0x28] sm:$0xff]
      %v242 = vld [vmem:[%s193 + $0x30] sm:$0xff]
      %v243 = vld [vmem:[%s193 + $0x38] sm:$0xff]
      %v244 = vlaneseq
      %v245 = vshrl.u32 %v244, 7
      %v246 = vsub.s32 0, %v245
      %v247 = vrot.slane %v236, %v246
      %v248 = vmul.f32 %v204, %v247
      %v249 = vmul.f32 %v205, %v247
      %v250 = vmul.f32 %v206, %v247
      %v251 = vmul.f32 %v207, %v247
      %v252 = vmul.f32 %v208, %v247
      %v253 = vmul.f32 %v209, %v247
      %v254 = vmul.f32 %v210, %v247
      %v255 = vmul.f32 %v211, %v247
      %v256 = vmul.f32 %v212, %v247
      %v257 = vmul.f32 %v213, %v247
      %v258 = vmul.f32 %v214, %v247
      %v259 = vmul.f32 %v215, %v247
      %v260 = vmul.f32 %v216, %v247
      %v261 = vmul.f32 %v217, %v247
      %v262 = vmul.f32 %v218, %v247
      %v263 = vmul.f32 %v219, %v247
      %v264 = vmul.f32 %v220, %v247
      %v265 = vmul.f32 %v221, %v247
      %v266 = vadd.f32 %v248, 0.0
      %v267 = vadd.f32 %v249, 0.0
      %v268 = vadd.f32 %v250, 0.0
      %v269 = vadd.f32 %v251, 0.0
      %v270 = vadd.f32 %v252, 0.0
      %v271 = vadd.f32 %v253, 0.0
      %v272 = vadd.f32 %v254, 0.0
      %v273 = vadd.f32 %v255, 0.0
      %v274 = vadd.f32 %v256, 0.0
      %v275 = vadd.f32 %v257, 0.0
      %v276 = vadd.f32 %v258, 0.0
      %v277 = vadd.f32 %v259, 0.0
      %v278 = vadd.f32 %v260, 0.0
      %v279 = vadd.f32 %v261, 0.0
      %v280 = vadd.f32 %v262, 0.0
      %v281 = vadd.f32 %v263, 0.0
      %v282 = vadd.f32 %v264, 0.0
      %v283 = vadd.f32 %v265, 0.0
      %v284 = vlaneseq
      %v285 = vshrl.u32 %v284, 7
      %v286 = vsub.s32 1, %v285
      %v287 = vrot.slane %v236, %v286
      %v288 = vmul.f32 %v204, %v287
      %v289 = vmul.f32 %v205, %v287
      %v290 = vmul.f32 %v206, %v287
      %v291 = vmul.f32 %v207, %v287
      %v292 = vmul.f32 %v208, %v287
      %v293 = vmul.f32 %v209, %v287
      %v294 = vmul.f32 %v210, %v287
      %v295 = vmul.f32 %v211, %v287
      %v296 = vmul.f32 %v212, %v287
      %v297 = vmul.f32 %v213, %v287
      %v298 = vmul.f32 %v214, %v287
      %v299 = vmul.f32 %v215, %v287
      %v300 = vmul.f32 %v216, %v287
      %v301 = vmul.f32 %v217, %v287
      %v302 = vmul.f32 %v218, %v287
      %v303 = vmul.f32 %v219, %v287
      %v304 = vmul.f32 %v220, %v287
      %v305 = vmul.f32 %v221, %v287
      %vm324 = vcmask 1046528
      %v325 = vrot.slane %v288, 1
      %v326 = vrot.slane %v289, 1
      %v327 = vsel %vm324, %v325, %v326
      %v328 = vrot.slane %v290, 1
      %v329 = vrot.slane %v291, 1
      %v330 = vsel %vm324, %v328, %v329
      %v331 = vrot.slane %v292, 1
      %v332 = vrot.slane %v293, 1
      %v333 = vsel %vm324, %v331, %v332
      %v334 = vrot.slane %v294, 1
      %v335 = vrot.slane %v295, 1
      %v336 = vsel %vm324, %v334, %v335
      %v337 = vrot.slane %v296, 1
      %v338 = vrot.slane %v297, 1
      %v339 = vsel %vm324, %v337, %v338
      %v340 = vrot.slane %v298, 1
      %v341 = vrot.slane %v299, 1
      %v342 = vsel %vm324, %v340, %v341
      %v343 = vrot.slane %v300, 1
      %v344 = vrot.slane %v301, 1
      %v345 = vsel %vm324, %v343, %v344
      %v346 = vrot.slane %v302, 1
      %v347 = vrot.slane %v303, 1
      %v348 = vsel %vm324, %v346, %v347
      %v349 = vrot.slane %v304, 1
      %v350 = vrot.slane %v305, 1
      %v351 = vsel %vm324, %v349, %v350
      %v370 = vadd.f32 %v266, %v327
      %v371 = vadd.f32 %v267, %v326
      %v372 = vadd.f32 %v268, %v330
      %v373 = vadd.f32 %v269, %v329
      %v374 = vadd.f32 %v270, %v333
      %v375 = vadd.f32 %v271, %v332
      %v376 = vadd.f32 %v272, %v336
      %v377 = vadd.f32 %v273, %v335
      %v378 = vadd.f32 %v274, %v339
      %v379 = vadd.f32 %v275, %v338
      %v380 = vadd.f32 %v276, %v342
      %v381 = vadd.f32 %v277, %v341
      %v382 = vadd.f32 %v278, %v345
      %v383 = vadd.f32 %v279, %v344
      %v384 = vadd.f32 %v280, %v348
      %v385 = vadd.f32 %v281, %v347
      %v386 = vadd.f32 %v282, %v351
      %v387 = vadd.f32 %v283, %v350
      %v388 = vlaneseq
      %v389 = vshrl.u32 %v388, 7
      %v390 = vsub.s32 2, %v389
      %v391 = vrot.slane %v236, %v390
      %v392 = vmul.f32 %v204, %v391
      %v393 = vmul.f32 %v205, %v391
      %v394 = vmul.f32 %v206, %v391
      %v395 = vmul.f32 %v207, %v391
      %v396 = vmul.f32 %v208, %v391
      %v397 = vmul.f32 %v209, %v391
      %v398 = vmul.f32 %v210, %v391
      %v399 = vmul.f32 %v211, %v391
      %v400 = vmul.f32 %v212, %v391
      %v401 = vmul.f32 %v213, %v391
      %v402 = vmul.f32 %v214, %v391
      %v403 = vmul.f32 %v215, %v391
      %v404 = vmul.f32 %v216, %v391
      %v405 = vmul.f32 %v217, %v391
      %v406 = vmul.f32 %v218, %v391
      %v407 = vmul.f32 %v219, %v391
      %v408 = vmul.f32 %v220, %v391
      %v409 = vmul.f32 %v221, %v391
      %vm428 = vcmask 1045504
      %v429 = vrot.slane %v392, 2
      %v430 = vrot.slane %v393, 2
      %v431 = vsel %vm428, %v429, %v430
      %v432 = vrot.slane %v394, 2
      %v433 = vrot.slane %v395, 2
      %v434 = vsel %vm428, %v432, %v433
      %v435 = vrot.slane %v396, 2
      %v436 = vrot.slane %v397, 2
      %v437 = vsel %vm428, %v435, %v436
      %v438 = vrot.slane %v398, 2
      %v439 = vrot.slane %v399, 2
      %v440 = vsel %vm428, %v438, %v439
      %v441 = vrot.slane %v400, 2
      %v442 = vrot.slane %v401, 2
      %v443 = vsel %vm428, %v441, %v442
      %v444 = vrot.slane %v402, 2
      %v445 = vrot.slane %v403, 2
      %v446 = vsel %vm428, %v444, %v445
      %v447 = vrot.slane %v404, 2
      %v448 = vrot.slane %v405, 2
      %v449 = vsel %vm428, %v447, %v448
      %v450 = vrot.slane %v406, 2
      %v451 = vrot.slane %v407, 2
      %v452 = vsel %vm428, %v450, %v451
      %v453 = vrot.slane %v408, 2
      %v454 = vrot.slane %v409, 2
      %v455 = vsel %vm428, %v453, %v454
      %v474 = vadd.f32 %v370, %v431
      %v475 = vadd.f32 %v371, %v430
      %v476 = vadd.f32 %v372, %v434
      %v477 = vadd.f32 %v373, %v433
      %v478 = vadd.f32 %v374, %v437
      %v479 = vadd.f32 %v375, %v436
      %v480 = vadd.f32 %v376, %v440
      %v481 = vadd.f32 %v377, %v439
      %v482 = vadd.f32 %v378, %v443
      %v483 = vadd.f32 %v379, %v442
      %v484 = vadd.f32 %v380, %v446
      %v485 = vadd.f32 %v381, %v445
      %v486 = vadd.f32 %v382, %v449
      %v487 = vadd.f32 %v383, %v448
      %v488 = vadd.f32 %v384, %v452
      %v489 = vadd.f32 %v385, %v451
      %v490 = vadd.f32 %v386, %v455
      %v491 = vadd.f32 %v387, %v454
      %v492 = vlaneseq
      %v493 = vshrl.u32 %v492, 7
      %v494 = vsub.s32 3, %v493
      %v495 = vrot.slane %v236, %v494
      %v496 = vmul.f32 %v204, %v495
      %v497 = vmul.f32 %v205, %v495
      %v498 = vmul.f32 %v206, %v495
      %v499 = vmul.f32 %v207, %v495
      %v500 = vmul.f32 %v208, %v495
      %v501 = vmul.f32 %v209, %v495
      %v502 = vmul.f32 %v210, %v495
      %v503 = vmul.f32 %v211, %v495
      %v504 = vmul.f32 %v212, %v495
      %v505 = vmul.f32 %v213, %v495
      %v506 = vmul.f32 %v214, %v495
      %v507 = vmul.f32 %v215, %v495
      %v508 = vmul.f32 %v216, %v495
      %v509 = vmul.f32 %v217, %v495
      %v510 = vmul.f32 %v218, %v495
      %v511 = vmul.f32 %v219, %v495
      %v512 = vmul.f32 %v220, %v495
      %v513 = vmul.f32 %v221, %v495
      %vm532 = vcmask 1044480
      %v533 = vrot.slane %v496, 3
      %v534 = vrot.slane %v497, 3
      %v535 = vsel %vm532, %v533, %v534
      %v536 = vrot.slane %v498, 3
      %v537 = vrot.slane %v499, 3
      %v538 = vsel %vm532, %v536, %v537
      %v539 = vrot.slane %v500, 3
      %v540 = vrot.slane %v501, 3
      %v541 = vsel %vm532, %v539, %v540
      %v542 = vrot.slane %v502, 3
      %v543 = vrot.slane %v503, 3
      %v544 = vsel %vm532, %v542, %v543
      %v545 = vrot.slane %v504, 3
      %v546 = vrot.slane %v505, 3
      %v547 = vsel %vm532, %v545, %v546
      %v548 = vrot.slane %v506, 3
      %v549 = vrot.slane %v507, 3
      %v550 = vsel %vm532, %v548, %v549
      %v551 = vrot.slane %v508, 3
      %v552 = vrot.slane %v509, 3
      %v553 = vsel %vm532, %v551, %v552
      %v554 = vrot.slane %v510, 3
      %v555 = vrot.slane %v511, 3
      %v556 = vsel %vm532, %v554, %v555
      %v557 = vrot.slane %v512, 3
      %v558 = vrot.slane %v513, 3
      %v559 = vsel %vm532, %v557, %v558
      %v578 = vadd.f32 %v474, %v535
      %v579 = vadd.f32 %v475, %v534
      %v580 = vadd.f32 %v476, %v538
      %v581 = vadd.f32 %v477, %v537
      %v582 = vadd.f32 %v478, %v541
      %v583 = vadd.f32 %v479, %v540
      %v584 = vadd.f32 %v480, %v544
      %v585 = vadd.f32 %v481, %v543
      %v586 = vadd.f32 %v482, %v547
      %v587 = vadd.f32 %v483, %v546
      %v588 = vadd.f32 %v484, %v550
      %v589 = vadd.f32 %v485, %v549
      %v590 = vadd.f32 %v486, %v553
      %v591 = vadd.f32 %v487, %v552
      %v592 = vadd.f32 %v488, %v556
      %v593 = vadd.f32 %v489, %v555
      %v594 = vadd.f32 %v490, %v559
      %v595 = vadd.f32 %v491, %v558
      %v596 = vlaneseq
      %v597 = vshrl.u32 %v596, 7
      %v598 = vsub.s32 4, %v597
      %v599 = vrot.slane %v236, %v598
      %v600 = vmul.f32 %v204, %v599
      %v601 = vmul.f32 %v205, %v599
      %v602 = vmul.f32 %v206, %v599
      %v603 = vmul.f32 %v207, %v599
      %v604 = vmul.f32 %v208, %v599
      %v605 = vmul.f32 %v209, %v599
      %v606 = vmul.f32 %v210, %v599
      %v607 = vmul.f32 %v211, %v599
      %v608 = vmul.f32 %v212, %v599
      %v609 = vmul.f32 %v213, %v599
      %v610 = vmul.f32 %v214, %v599
      %v611 = vmul.f32 %v215, %v599
      %v612 = vmul.f32 %v216, %v599
      %v613 = vmul.f32 %v217, %v599
      %v614 = vmul.f32 %v218, %v599
      %v615 = vmul.f32 %v219, %v599
      %v616 = vmul.f32 %v220, %v599
      %v617 = vmul.f32 %v221, %v599
      %vm636 = vcmask 1043456
      %v637 = vrot.slane %v600, 4
      %v638 = vrot.slane %v601, 4
      %v639 = vsel %vm636, %v637, %v638
      %v640 = vrot.slane %v602, 4
      %v641 = vrot.slane %v603, 4
      %v642 = vsel %vm636, %v640, %v641
      %v643 = vrot.slane %v604, 4
      %v644 = vrot.slane %v605, 4
      %v645 = vsel %vm636, %v643, %v644
      %v646 = vrot.slane %v606, 4
      %v647 = vrot.slane %v607, 4
      %v648 = vsel %vm636, %v646, %v647
      %v649 = vrot.slane %v608, 4
      %v650 = vrot.slane %v609, 4
      %v651 = vsel %vm636, %v649, %v650
      %v652 = vrot.slane %v610, 4
      %v653 = vrot.slane %v611, 4
      %v654 = vsel %vm636, %v652, %v653
      %v655 = vrot.slane %v612, 4
      %v656 = vrot.slane %v613, 4
      %v657 = vsel %vm636, %v655, %v656
      %v658 = vrot.slane %v614, 4
      %v659 = vrot.slane %v615, 4
      %v660 = vsel %vm636, %v658, %v659
      %v661 = vrot.slane %v616, 4
      %v662 = vrot.slane %v617, 4
      %v663 = vsel %vm636, %v661, %v662
      %v682 = vadd.f32 %v578, %v639
      %v683 = vadd.f32 %v579, %v638
      %v684 = vadd.f32 %v580, %v642
      %v685 = vadd.f32 %v581, %v641
      %v686 = vadd.f32 %v582, %v645
      %v687 = vadd.f32 %v583, %v644
      %v688 = vadd.f32 %v584, %v648
      %v689 = vadd.f32 %v585, %v647
      %v690 = vadd.f32 %v586, %v651
      %v691 = vadd.f32 %v587, %v650
      %v692 = vadd.f32 %v588, %v654
      %v693 = vadd.f32 %v589, %v653
      %v694 = vadd.f32 %v590, %v657
      %v695 = vadd.f32 %v591, %v656
      %v696 = vadd.f32 %v592, %v660
      %v697 = vadd.f32 %v593, %v659
      %v698 = vadd.f32 %v594, %v663
      %v699 = vadd.f32 %v595, %v662
      %v700 = vlaneseq
      %v701 = vshrl.u32 %v700, 7
      %v702 = vsub.s32 5, %v701
      %v703 = vrot.slane %v236, %v702
      %v704 = vmul.f32 %v204, %v703
      %v705 = vmul.f32 %v205, %v703
      %v706 = vmul.f32 %v206, %v703
      %v707 = vmul.f32 %v207, %v703
      %v708 = vmul.f32 %v208, %v703
      %v709 = vmul.f32 %v209, %v703
      %v710 = vmul.f32 %v210, %v703
      %v711 = vmul.f32 %v211, %v703
      %v712 = vmul.f32 %v212, %v703
      %v713 = vmul.f32 %v213, %v703
      %v714 = vmul.f32 %v214, %v703
      %v715 = vmul.f32 %v215, %v703
      %v716 = vmul.f32 %v216, %v703
      %v717 = vmul.f32 %v217, %v703
      %v718 = vmul.f32 %v218, %v703
      %v719 = vmul.f32 %v219, %v703
      %v720 = vmul.f32 %v220, %v703
      %v721 = vmul.f32 %v221, %v703
      %vm740 = vcmask 1042432
      %v741 = vrot.slane %v704, 5
      %v742 = vrot.slane %v705, 5
      %v743 = vsel %vm740, %v741, %v742
      %v744 = vrot.slane %v706, 5
      %v745 = vrot.slane %v707, 5
      %v746 = vsel %vm740, %v744, %v745
      %v747 = vrot.slane %v708, 5
      %v748 = vrot.slane %v709, 5
      %v749 = vsel %vm740, %v747, %v748
      %v750 = vrot.slane %v710, 5
      %v751 = vrot.slane %v711, 5
      %v752 = vsel %vm740, %v750, %v751
      %v753 = vrot.slane %v712, 5
      %v754 = vrot.slane %v713, 5
      %v755 = vsel %vm740, %v753, %v754
      %v756 = vrot.slane %v714, 5
      %v757 = vrot.slane %v715, 5
      %v758 = vsel %vm740, %v756, %v757
      %v759 = vrot.slane %v716, 5
      %v760 = vrot.slane %v717, 5
      %v761 = vsel %vm740, %v759, %v760
      %v762 = vrot.slane %v718, 5
      %v763 = vrot.slane %v719, 5
      %v764 = vsel %vm740, %v762, %v763
      %v765 = vrot.slane %v720, 5
      %v766 = vrot.slane %v721, 5
      %v767 = vsel %vm740, %v765, %v766
      %v786 = vadd.f32 %v682, %v743
      %v787 = vadd.f32 %v683, %v742
      %v788 = vadd.f32 %v684, %v746
      %v789 = vadd.f32 %v685, %v745
      %v790 = vadd.f32 %v686, %v749
      %v791 = vadd.f32 %v687, %v748
      %v792 = vadd.f32 %v688, %v752
      %v793 = vadd.f32 %v689, %v751
      %v794 = vadd.f32 %v690, %v755
      %v795 = vadd.f32 %v691, %v754
      %v796 = vadd.f32 %v692, %v758
      %v797 = vadd.f32 %v693, %v757
      %v798 = vadd.f32 %v694, %v761
      %v799 = vadd.f32 %v695, %v760
      %v800 = vadd.f32 %v696, %v764
      %v801 = vadd.f32 %v697, %v763
      %v802 = vadd.f32 %v698, %v767
      %v803 = vadd.f32 %v699, %v766
      %v804 = vlaneseq
      %v805 = vshrl.u32 %v804, 7
      %v806 = vsub.s32 6, %v805
      %v807 = vrot.slane %v236, %v806
      %v808 = vmul.f32 %v204, %v807
      %v809 = vmul.f32 %v205, %v807
      %v810 = vmul.f32 %v206, %v807
      %v811 = vmul.f32 %v207, %v807
      %v812 = vmul.f32 %v208, %v807
      %v813 = vmul.f32 %v209, %v807
      %v814 = vmul.f32 %v210, %v807
      %v815 = vmul.f32 %v211, %v807
      %v816 = vmul.f32 %v212, %v807
      %v817 = vmul.f32 %v213, %v807
      %v818 = vmul.f32 %v214, %v807
      %v819 = vmul.f32 %v215, %v807
      %v820 = vmul.f32 %v216, %v807
      %v821 = vmul.f32 %v217, %v807
      %v822 = vmul.f32 %v218, %v807
      %v823 = vmul.f32 %v219, %v807
      %v824 = vmul.f32 %v220, %v807
      %v825 = vmul.f32 %v221, %v807
      %vm844 = vcmask 1041408
      %v845 = vrot.slane %v808, 6
      %v846 = vrot.slane %v809, 6
      %v847 = vsel %vm844, %v845, %v846
      %v848 = vrot.slane %v810, 6
      %v849 = vrot.slane %v811, 6
      %v850 = vsel %vm844, %v848, %v849
      %v851 = vrot.slane %v812, 6
      %v852 = vrot.slane %v813, 6
      %v853 = vsel %vm844, %v851, %v852
      %v854 = vrot.slane %v814, 6
      %v855 = vrot.slane %v815, 6
      %v856 = vsel %vm844, %v854, %v855
      %v857 = vrot.slane %v816, 6
      %v858 = vrot.slane %v817, 6
      %v859 = vsel %vm844, %v857, %v858
      %v860 = vrot.slane %v818, 6
      %v861 = vrot.slane %v819, 6
      %v862 = vsel %vm844, %v860, %v861
      %v863 = vrot.slane %v820, 6
      %v864 = vrot.slane %v821, 6
      %v865 = vsel %vm844, %v863, %v864
      %v866 = vrot.slane %v822, 6
      %v867 = vrot.slane %v823, 6
      %v868 = vsel %vm844, %v866, %v867
      %v869 = vrot.slane %v824, 6
      %v870 = vrot.slane %v825, 6
      %v871 = vsel %vm844, %v869, %v870
      %v890 = vadd.f32 %v786, %v847
      %v891 = vadd.f32 %v787, %v846
      %v892 = vadd.f32 %v788, %v850
      %v893 = vadd.f32 %v789, %v849
      %v894 = vadd.f32 %v790, %v853
      %v895 = vadd.f32 %v791, %v852
      %v896 = vadd.f32 %v792, %v856
      %v897 = vadd.f32 %v793, %v855
      %v898 = vadd.f32 %v794, %v859
      %v899 = vadd.f32 %v795, %v858
      %v900 = vadd.f32 %v796, %v862
      %v901 = vadd.f32 %v797, %v861
      %v902 = vadd.f32 %v798, %v865
      %v903 = vadd.f32 %v799, %v864
      %v904 = vadd.f32 %v800, %v868
      %v905 = vadd.f32 %v801, %v867
      %v906 = vadd.f32 %v802, %v871
      %v907 = vadd.f32 %v803, %v870
      %v908 = vlaneseq
      %v909 = vshrl.u32 %v908, 7
      %v910 = vsub.s32 7, %v909
      %v911 = vrot.slane %v236, %v910
      %v912 = vmul.f32 %v204, %v911
      %v913 = vmul.f32 %v205, %v911
      %v914 = vmul.f32 %v206, %v911
      %v915 = vmul.f32 %v207, %v911
      %v916 = vmul.f32 %v208, %v911
      %v917 = vmul.f32 %v209, %v911
      %v918 = vmul.f32 %v210, %v911
      %v919 = vmul.f32 %v211, %v911
      %v920 = vmul.f32 %v212, %v911
      %v921 = vmul.f32 %v213, %v911
      %v922 = vmul.f32 %v214, %v911
      %v923 = vmul.f32 %v215, %v911
      %v924 = vmul.f32 %v216, %v911
      %v925 = vmul.f32 %v217, %v911
      %v926 = vmul.f32 %v218, %v911
      %v927 = vmul.f32 %v219, %v911
      %v928 = vmul.f32 %v220, %v911
      %v929 = vmul.f32 %v221, %v911
      %vm948 = vcmask 1040384
      %v949 = vrot.slane %v912, 7
      %v950 = vrot.slane %v913, 7
      %v951 = vsel %vm948, %v949, %v950
      %v952 = vrot.slane %v914, 7
      %v953 = vrot.slane %v915, 7
      %v954 = vsel %vm948, %v952, %v953
      %v955 = vrot.slane %v916, 7
      %v956 = vrot.slane %v917, 7
      %v957 = vsel %vm948, %v955, %v956
      %v958 = vrot.slane %v918, 7
      %v959 = vrot.slane %v919, 7
      %v960 = vsel %vm948, %v958, %v959
      %v961 = vrot.slane %v920, 7
      %v962 = vrot.slane %v921, 7
      %v963 = vsel %vm948, %v961, %v962
      %v964 = vrot.slane %v922, 7
      %v965 = vrot.slane %v923, 7
      %v966 = vsel %vm948, %v964, %v965
      %v967 = vrot.slane %v924, 7
      %v968 = vrot.slane %v925, 7
      %v969 = vsel %vm948, %v967, %v968
      %v970 = vrot.slane %v926, 7
      %v971 = vrot.slane %v927, 7
      %v972 = vsel %vm948, %v970, %v971
      %v973 = vrot.slane %v928, 7
      %v974 = vrot.slane %v929, 7
      %v975 = vsel %vm948, %v973, %v974
      %v994 = vadd.f32 %v890, %v951
      %v995 = vadd.f32 %v891, %v950
      %v996 = vadd.f32 %v892, %v954
      %v997 = vadd.f32 %v893, %v953
      %v998 = vadd.f32 %v894, %v957
      %v999 = vadd.f32 %v895, %v956
      %v1000 = vadd.f32 %v896, %v960
      %v1001 = vadd.f32 %v897, %v959
      %v1002 = vadd.f32 %v898, %v963
      %v1003 = vadd.f32 %v899, %v962
      %v1004 = vadd.f32 %v900, %v966
      %v1005 = vadd.f32 %v901, %v965
      %v1006 = vadd.f32 %v902, %v969
      %v1007 = vadd.f32 %v903, %v968
      %v1008 = vadd.f32 %v904, %v972
      %v1009 = vadd.f32 %v905, %v971
      %v1010 = vadd.f32 %v906, %v975
      %v1011 = vadd.f32 %v907, %v974
      %v1012 = vlaneseq
      %v1013 = vshrl.u32 %v1012, 7
      %v1014 = vsub.s32 0, %v1013
      %v1015 = vrot.slane %v237, %v1014
      %v1016 = vmul.f32 %v206, %v1015
      %v1017 = vmul.f32 %v207, %v1015
      %v1018 = vmul.f32 %v208, %v1015
      %v1019 = vmul.f32 %v209, %v1015
      %v1020 = vmul.f32 %v210, %v1015
      %v1021 = vmul.f32 %v211, %v1015
      %v1022 = vmul.f32 %v212, %v1015
      %v1023 = vmul.f32 %v213, %v1015
      %v1024 = vmul.f32 %v214, %v1015
      %v1025 = vmul.f32 %v215, %v1015
      %v1026 = vmul.f32 %v216, %v1015
      %v1027 = vmul.f32 %v217, %v1015
      %v1028 = vmul.f32 %v218, %v1015
      %v1029 = vmul.f32 %v219, %v1015
      %v1030 = vmul.f32 %v220, %v1015
      %v1031 = vmul.f32 %v221, %v1015
      %v1032 = vmul.f32 %v222, %v1015
      %v1033 = vmul.f32 %v223, %v1015
      %v1034 = vadd.f32 %v994, %v1016
      %v1035 = vadd.f32 %v995, %v1017
      %v1036 = vadd.f32 %v996, %v1018
      %v1037 = vadd.f32 %v997, %v1019
      %v1038 = vadd.f32 %v998, %v1020
      %v1039 = vadd.f32 %v999, %v1021
      %v1040 = vadd.f32 %v1000, %v1022
      %v1041 = vadd.f32 %v1001, %v1023
      %v1042 = vadd.f32 %v1002, %v1024
      %v1043 = vadd.f32 %v1003, %v1025
      %v1044 = vadd.f32 %v1004, %v1026
      %v1045 = vadd.f32 %v1005, %v1027
      %v1046 = vadd.f32 %v1006, %v1028
      %v1047 = vadd.f32 %v1007, %v1029
      %v1048 = vadd.f32 %v1008, %v1030
      %v1049 = vadd.f32 %v1009, %v1031
      %v1050 = vadd.f32 %v1010, %v1032
      %v1051 = vadd.f32 %v1011, %v1033
      %v1052 = vlaneseq
      %v1053 = vshrl.u32 %v1052, 7
      %v1054 = vsub.s32 1, %v1053
      %v1055 = vrot.slane %v237, %v1054
      %v1056 = vmul.f32 %v206, %v1055
      %v1057 = vmul.f32 %v207, %v1055
      %v1058 = vmul.f32 %v208, %v1055
      %v1059 = vmul.f32 %v209, %v1055
      %v1060 = vmul.f32 %v210, %v1055
      %v1061 = vmul.f32 %v211, %v1055
      %v1062 = vmul.f32 %v212, %v1055
      %v1063 = vmul.f32 %v213, %v1055
      %v1064 = vmul.f32 %v214, %v1055
      %v1065 = vmul.f32 %v215, %v1055
      %v1066 = vmul.f32 %v216, %v1055
      %v1067 = vmul.f32 %v217, %v1055
      %v1068 = vmul.f32 %v218, %v1055
      %v1069 = vmul.f32 %v219, %v1055
      %v1070 = vmul.f32 %v220, %v1055
      %v1071 = vmul.f32 %v221, %v1055
      %v1072 = vmul.f32 %v222, %v1055
      %v1073 = vmul.f32 %v223, %v1055
      %v1092 = vrot.slane %v1056, 1
      %v1093 = vrot.slane %v1057, 1
      %v1094 = vsel %vm324, %v1092, %v1093
      %v1095 = vrot.slane %v1058, 1
      %v1096 = vrot.slane %v1059, 1
      %v1097 = vsel %vm324, %v1095, %v1096
      %v1098 = vrot.slane %v1060, 1
      %v1099 = vrot.slane %v1061, 1
      %v1100 = vsel %vm324, %v1098, %v1099
      %v1101 = vrot.slane %v1062, 1
      %v1102 = vrot.slane %v1063, 1
      %v1103 = vsel %vm324, %v1101, %v1102
      %v1104 = vrot.slane %v1064, 1
      %v1105 = vrot.slane %v1065, 1
      %v1106 = vsel %vm324, %v1104, %v1105
      %v1107 = vrot.slane %v1066, 1
      %v1108 = vrot.slane %v1067, 1
      %v1109 = vsel %vm324, %v1107, %v1108
      %v1110 = vrot.slane %v1068, 1
      %v1111 = vrot.slane %v1069, 1
      %v1112 = vsel %vm324, %v1110, %v1111
      %v1113 = vrot.slane %v1070, 1
      %v1114 = vrot.slane %v1071, 1
      %v1115 = vsel %vm324, %v1113, %v1114
      %v1116 = vrot.slane %v1072, 1
      %v1117 = vrot.slane %v1073, 1
      %v1118 = vsel %vm324, %v1116, %v1117
      %v1137 = vadd.f32 %v1034, %v1094
      %v1138 = vadd.f32 %v1035, %v1093
      %v1139 = vadd.f32 %v1036, %v1097
      %v1140 = vadd.f32 %v1037, %v1096
      %v1141 = vadd.f32 %v1038, %v1100
      %v1142 = vadd.f32 %v1039, %v1099
      %v1143 = vadd.f32 %v1040, %v1103
      %v1144 = vadd.f32 %v1041, %v1102
      %v1145 = vadd.f32 %v1042, %v1106
      %v1146 = vadd.f32 %v1043, %v1105
      %v1147 = vadd.f32 %v1044, %v1109
      %v1148 = vadd.f32 %v1045, %v1108
      %v1149 = vadd.f32 %v1046, %v1112
      %v1150 = vadd.f32 %v1047, %v1111
      %v1151 = vadd.f32 %v1048, %v1115
      %v1152 = vadd.f32 %v1049, %v1114
      %v1153 = vadd.f32 %v1050, %v1118
      %v1154 = vadd.f32 %v1051, %v1117
      %v1155 = vlaneseq
      %v1156 = vshrl.u32 %v1155, 7
      %v1157 = vsub.s32 2, %v1156
      %v1158 = vrot.slane %v237, %v1157
      %v1159 = vmul.f32 %v206, %v1158
      %v1160 = vmul.f32 %v207, %v1158
      %v1161 = vmul.f32 %v208, %v1158
      %v1162 = vmul.f32 %v209, %v1158
      %v1163 = vmul.f32 %v210, %v1158
      %v1164 = vmul.f32 %v211, %v1158
      %v1165 = vmul.f32 %v212, %v1158
      %v1166 = vmul.f32 %v213, %v1158
      %v1167 = vmul.f32 %v214, %v1158
      %v1168 = vmul.f32 %v215, %v1158
      %v1169 = vmul.f32 %v216, %v1158
      %v1170 = vmul.f32 %v217, %v1158
      %v1171 = vmul.f32 %v218, %v1158
      %v1172 = vmul.f32 %v219, %v1158
      %v1173 = vmul.f32 %v220, %v1158
      %v1174 = vmul.f32 %v221, %v1158
      %v1175 = vmul.f32 %v222, %v1158
      %v1176 = vmul.f32 %v223, %v1158
      %v1195 = vrot.slane %v1159, 2
      %v1196 = vrot.slane %v1160, 2
      %v1197 = vsel %vm428, %v1195, %v1196
      %v1198 = vrot.slane %v1161, 2
      %v1199 = vrot.slane %v1162, 2
      %v1200 = vsel %vm428, %v1198, %v1199
      %v1201 = vrot.slane %v1163, 2
      %v1202 = vrot.slane %v1164, 2
      %v1203 = vsel %vm428, %v1201, %v1202
      %v1204 = vrot.slane %v1165, 2
      %v1205 = vrot.slane %v1166, 2
      %v1206 = vsel %vm428, %v1204, %v1205
      %v1207 = vrot.slane %v1167, 2
      %v1208 = vrot.slane %v1168, 2
      %v1209 = vsel %vm428, %v1207, %v1208
      %v1210 = vrot.slane %v1169, 2
      %v1211 = vrot.slane %v1170, 2
      %v1212 = vsel %vm428, %v1210, %v1211
      %v1213 = vrot.slane %v1171, 2
      %v1214 = vrot.slane %v1172, 2
      %v1215 = vsel %vm428, %v1213, %v1214
      %v1216 = vrot.slane %v1173, 2
      %v1217 = vrot.slane %v1174, 2
      %v1218 = vsel %vm428, %v1216, %v1217
      %v1219 = vrot.slane %v1175, 2
      %v1220 = vrot.slane %v1176, 2
      %v1221 = vsel %vm428, %v1219, %v1220
      %v1240 = vadd.f32 %v1137, %v1197
      %v1241 = vadd.f32 %v1138, %v1196
      %v1242 = vadd.f32 %v1139, %v1200
      %v1243 = vadd.f32 %v1140, %v1199
      %v1244 = vadd.f32 %v1141, %v1203
      %v1245 = vadd.f32 %v1142, %v1202
      %v1246 = vadd.f32 %v1143, %v1206
      %v1247 = vadd.f32 %v1144, %v1205
      %v1248 = vadd.f32 %v1145, %v1209
      %v1249 = vadd.f32 %v1146, %v1208
      %v1250 = vadd.f32 %v1147, %v1212
      %v1251 = vadd.f32 %v1148, %v1211
      %v1252 = vadd.f32 %v1149, %v1215
      %v1253 = vadd.f32 %v1150, %v1214
      %v1254 = vadd.f32 %v1151, %v1218
      %v1255 = vadd.f32 %v1152, %v1217
      %v1256 = vadd.f32 %v1153, %v1221
      %v1257 = vadd.f32 %v1154, %v1220
      %v1258 = vlaneseq
      %v1259 = vshrl.u32 %v1258, 7
      %v1260 = vsub.s32 3, %v1259
      %v1261 = vrot.slane %v237, %v1260
      %v1262 = vmul.f32 %v206, %v1261
      %v1263 = vmul.f32 %v207, %v1261
      %v1264 = vmul.f32 %v208, %v1261
      %v1265 = vmul.f32 %v209, %v1261
      %v1266 = vmul.f32 %v210, %v1261
      %v1267 = vmul.f32 %v211, %v1261
      %v1268 = vmul.f32 %v212, %v1261
      %v1269 = vmul.f32 %v213, %v1261
      %v1270 = vmul.f32 %v214, %v1261
      %v1271 = vmul.f32 %v215, %v1261
      %v1272 = vmul.f32 %v216, %v1261
      %v1273 = vmul.f32 %v217, %v1261
      %v1274 = vmul.f32 %v218, %v1261
      %v1275 = vmul.f32 %v219, %v1261
      %v1276 = vmul.f32 %v220, %v1261
      %v1277 = vmul.f32 %v221, %v1261
      %v1278 = vmul.f32 %v222, %v1261
      %v1279 = vmul.f32 %v223, %v1261
      %v1298 = vrot.slane %v1262, 3
      %v1299 = vrot.slane %v1263, 3
      %v1300 = vsel %vm532, %v1298, %v1299
      %v1301 = vrot.slane %v1264, 3
      %v1302 = vrot.slane %v1265, 3
      %v1303 = vsel %vm532, %v1301, %v1302
      %v1304 = vrot.slane %v1266, 3
      %v1305 = vrot.slane %v1267, 3
      %v1306 = vsel %vm532, %v1304, %v1305
      %v1307 = vrot.slane %v1268, 3
      %v1308 = vrot.slane %v1269, 3
      %v1309 = vsel %vm532, %v1307, %v1308
      %v1310 = vrot.slane %v1270, 3
      %v1311 = vrot.slane %v1271, 3
      %v1312 = vsel %vm532, %v1310, %v1311
      %v1313 = vrot.slane %v1272, 3
      %v1314 = vrot.slane %v1273, 3
      %v1315 = vsel %vm532, %v1313, %v1314
      %v1316 = vrot.slane %v1274, 3
      %v1317 = vrot.slane %v1275, 3
      %v1318 = vsel %vm532, %v1316, %v1317
      %v1319 = vrot.slane %v1276, 3
      %v1320 = vrot.slane %v1277, 3
      %v1321 = vsel %vm532, %v1319, %v1320
      %v1322 = vrot.slane %v1278, 3
      %v1323 = vrot.slane %v1279, 3
      %v1324 = vsel %vm532, %v1322, %v1323
      %v1343 = vadd.f32 %v1240, %v1300
      %v1344 = vadd.f32 %v1241, %v1299
      %v1345 = vadd.f32 %v1242, %v1303
      %v1346 = vadd.f32 %v1243, %v1302
      %v1347 = vadd.f32 %v1244, %v1306
      %v1348 = vadd.f32 %v1245, %v1305
      %v1349 = vadd.f32 %v1246, %v1309
      %v1350 = vadd.f32 %v1247, %v1308
      %v1351 = vadd.f32 %v1248, %v1312
      %v1352 = vadd.f32 %v1249, %v1311
      %v1353 = vadd.f32 %v1250, %v1315
      %v1354 = vadd.f32 %v1251, %v1314
      %v1355 = vadd.f32 %v1252, %v1318
      %v1356 = vadd.f32 %v1253, %v1317
      %v1357 = vadd.f32 %v1254, %v1321
      %v1358 = vadd.f32 %v1255, %v1320
      %v1359 = vadd.f32 %v1256, %v1324
      %v1360 = vadd.f32 %v1257, %v1323
      %v1361 = vlaneseq
      %v1362 = vshrl.u32 %v1361, 7
      %v1363 = vsub.s32 4, %v1362
      %v1364 = vrot.slane %v237, %v1363
      %v1365 = vmul.f32 %v206, %v1364
      %v1366 = vmul.f32 %v207, %v1364
      %v1367 = vmul.f32 %v208, %v1364
      %v1368 = vmul.f32 %v209, %v1364
      %v1369 = vmul.f32 %v210, %v1364
      %v1370 = vmul.f32 %v211, %v1364
      %v1371 = vmul.f32 %v212, %v1364
      %v1372 = vmul.f32 %v213, %v1364
      %v1373 = vmul.f32 %v214, %v1364
      %v1374 = vmul.f32 %v215, %v1364
      %v1375 = vmul.f32 %v216, %v1364
      %v1376 = vmul.f32 %v217, %v1364
      %v1377 = vmul.f32 %v218, %v1364
      %v1378 = vmul.f32 %v219, %v1364
      %v1379 = vmul.f32 %v220, %v1364
      %v1380 = vmul.f32 %v221, %v1364
      %v1381 = vmul.f32 %v222, %v1364
      %v1382 = vmul.f32 %v223, %v1364
      %v1401 = vrot.slane %v1365, 4
      %v1402 = vrot.slane %v1366, 4
      %v1403 = vsel %vm636, %v1401, %v1402
      %v1404 = vrot.slane %v1367, 4
      %v1405 = vrot.slane %v1368, 4
      %v1406 = vsel %vm636, %v1404, %v1405
      %v1407 = vrot.slane %v1369, 4
      %v1408 = vrot.slane %v1370, 4
      %v1409 = vsel %vm636, %v1407, %v1408
      %v1410 = vrot.slane %v1371, 4
      %v1411 = vrot.slane %v1372, 4
      %v1412 = vsel %vm636, %v1410, %v1411
      %v1413 = vrot.slane %v1373, 4
      %v1414 = vrot.slane %v1374, 4
      %v1415 = vsel %vm636, %v1413, %v1414
      %v1416 = vrot.slane %v1375, 4
      %v1417 = vrot.slane %v1376, 4
      %v1418 = vsel %vm636, %v1416, %v1417
      %v1419 = vrot.slane %v1377, 4
      %v1420 = vrot.slane %v1378, 4
      %v1421 = vsel %vm636, %v1419, %v1420
      %v1422 = vrot.slane %v1379, 4
      %v1423 = vrot.slane %v1380, 4
      %v1424 = vsel %vm636, %v1422, %v1423
      %v1425 = vrot.slane %v1381, 4
      %v1426 = vrot.slane %v1382, 4
      %v1427 = vsel %vm636, %v1425, %v1426
      %v1446 = vadd.f32 %v1343, %v1403
      %v1447 = vadd.f32 %v1344, %v1402
      %v1448 = vadd.f32 %v1345, %v1406
      %v1449 = vadd.f32 %v1346, %v1405
      %v1450 = vadd.f32 %v1347, %v1409
      %v1451 = vadd.f32 %v1348, %v1408
      %v1452 = vadd.f32 %v1349, %v1412
      %v1453 = vadd.f32 %v1350, %v1411
      %v1454 = vadd.f32 %v1351, %v1415
      %v1455 = vadd.f32 %v1352, %v1414
      %v1456 = vadd.f32 %v1353, %v1418
      %v1457 = vadd.f32 %v1354, %v1417
      %v1458 = vadd.f32 %v1355, %v1421
      %v1459 = vadd.f32 %v1356, %v1420
      %v1460 = vadd.f32 %v1357, %v1424
      %v1461 = vadd.f32 %v1358, %v1423
      %v1462 = vadd.f32 %v1359, %v1427
      %v1463 = vadd.f32 %v1360, %v1426
      %v1464 = vlaneseq
      %v1465 = vshrl.u32 %v1464, 7
      %v1466 = vsub.s32 5, %v1465
      %v1467 = vrot.slane %v237, %v1466
      %v1468 = vmul.f32 %v206, %v1467
      %v1469 = vmul.f32 %v207, %v1467
      %v1470 = vmul.f32 %v208, %v1467
      %v1471 = vmul.f32 %v209, %v1467
      %v1472 = vmul.f32 %v210, %v1467
      %v1473 = vmul.f32 %v211, %v1467
      %v1474 = vmul.f32 %v212, %v1467
      %v1475 = vmul.f32 %v213, %v1467
      %v1476 = vmul.f32 %v214, %v1467
      %v1477 = vmul.f32 %v215, %v1467
      %v1478 = vmul.f32 %v216, %v1467
      %v1479 = vmul.f32 %v217, %v1467
      %v1480 = vmul.f32 %v218, %v1467
      %v1481 = vmul.f32 %v219, %v1467
      %v1482 = vmul.f32 %v220, %v1467
      %v1483 = vmul.f32 %v221, %v1467
      %v1484 = vmul.f32 %v222, %v1467
      %v1485 = vmul.f32 %v223, %v1467
      %v1504 = vrot.slane %v1468, 5
      %v1505 = vrot.slane %v1469, 5
      %v1506 = vsel %vm740, %v1504, %v1505
      %v1507 = vrot.slane %v1470, 5
      %v1508 = vrot.slane %v1471, 5
      %v1509 = vsel %vm740, %v1507, %v1508
      %v1510 = vrot.slane %v1472, 5
      %v1511 = vrot.slane %v1473, 5
      %v1512 = vsel %vm740, %v1510, %v1511
      %v1513 = vrot.slane %v1474, 5
      %v1514 = vrot.slane %v1475, 5
      %v1515 = vsel %vm740, %v1513, %v1514
      %v1516 = vrot.slane %v1476, 5
      %v1517 = vrot.slane %v1477, 5
      %v1518 = vsel %vm740, %v1516, %v1517
      %v1519 = vrot.slane %v1478, 5
      %v1520 = vrot.slane %v1479, 5
      %v1521 = vsel %vm740, %v1519, %v1520
      %v1522 = vrot.slane %v1480, 5
      %v1523 = vrot.slane %v1481, 5
      %v1524 = vsel %vm740, %v1522, %v1523
      %v1525 = vrot.slane %v1482, 5
      %v1526 = vrot.slane %v1483, 5
      %v1527 = vsel %vm740, %v1525, %v1526
      %v1528 = vrot.slane %v1484, 5
      %v1529 = vrot.slane %v1485, 5
      %v1530 = vsel %vm740, %v1528, %v1529
      %v1549 = vadd.f32 %v1446, %v1506
      %v1550 = vadd.f32 %v1447, %v1505
      %v1551 = vadd.f32 %v1448, %v1509
      %v1552 = vadd.f32 %v1449, %v1508
      %v1553 = vadd.f32 %v1450, %v1512
      %v1554 = vadd.f32 %v1451, %v1511
      %v1555 = vadd.f32 %v1452, %v1515
      %v1556 = vadd.f32 %v1453, %v1514
      %v1557 = vadd.f32 %v1454, %v1518
      %v1558 = vadd.f32 %v1455, %v1517
      %v1559 = vadd.f32 %v1456, %v1521
      %v1560 = vadd.f32 %v1457, %v1520
      %v1561 = vadd.f32 %v1458, %v1524
      %v1562 = vadd.f32 %v1459, %v1523
      %v1563 = vadd.f32 %v1460, %v1527
      %v1564 = vadd.f32 %v1461, %v1526
      %v1565 = vadd.f32 %v1462, %v1530
      %v1566 = vadd.f32 %v1463, %v1529
      %v1567 = vlaneseq
      %v1568 = vshrl.u32 %v1567, 7
      %v1569 = vsub.s32 6, %v1568
      %v1570 = vrot.slane %v237, %v1569
      %v1571 = vmul.f32 %v206, %v1570
      %v1572 = vmul.f32 %v207, %v1570
      %v1573 = vmul.f32 %v208, %v1570
      %v1574 = vmul.f32 %v209, %v1570
      %v1575 = vmul.f32 %v210, %v1570
      %v1576 = vmul.f32 %v211, %v1570
      %v1577 = vmul.f32 %v212, %v1570
      %v1578 = vmul.f32 %v213, %v1570
      %v1579 = vmul.f32 %v214, %v1570
      %v1580 = vmul.f32 %v215, %v1570
      %v1581 = vmul.f32 %v216, %v1570
      %v1582 = vmul.f32 %v217, %v1570
      %v1583 = vmul.f32 %v218, %v1570
      %v1584 = vmul.f32 %v219, %v1570
      %v1585 = vmul.f32 %v220, %v1570
      %v1586 = vmul.f32 %v221, %v1570
      %v1587 = vmul.f32 %v222, %v1570
      %v1588 = vmul.f32 %v223, %v1570
      %v1607 = vrot.slane %v1571, 6
      %v1608 = vrot.slane %v1572, 6
      %v1609 = vsel %vm844, %v1607, %v1608
      %v1610 = vrot.slane %v1573, 6
      %v1611 = vrot.slane %v1574, 6
      %v1612 = vsel %vm844, %v1610, %v1611
      %v1613 = vrot.slane %v1575, 6
      %v1614 = vrot.slane %v1576, 6
      %v1615 = vsel %vm844, %v1613, %v1614
      %v1616 = vrot.slane %v1577, 6
      %v1617 = vrot.slane %v1578, 6
      %v1618 = vsel %vm844, %v1616, %v1617
      %v1619 = vrot.slane %v1579, 6
      %v1620 = vrot.slane %v1580, 6
      %v1621 = vsel %vm844, %v1619, %v1620
      %v1622 = vrot.slane %v1581, 6
      %v1623 = vrot.slane %v1582, 6
      %v1624 = vsel %vm844, %v1622, %v1623
      %v1625 = vrot.slane %v1583, 6
      %v1626 = vrot.slane %v1584, 6
      %v1627 = vsel %vm844, %v1625, %v1626
      %v1628 = vrot.slane %v1585, 6
      %v1629 = vrot.slane %v1586, 6
      %v1630 = vsel %vm844, %v1628, %v1629
      %v1631 = vrot.slane %v1587, 6
      %v1632 = vrot.slane %v1588, 6
      %v1633 = vsel %vm844, %v1631, %v1632
      %v1652 = vadd.f32 %v1549, %v1609
      %v1653 = vadd.f32 %v1550, %v1608
      %v1654 = vadd.f32 %v1551, %v1612
      %v1655 = vadd.f32 %v1552, %v1611
      %v1656 = vadd.f32 %v1553, %v1615
      %v1657 = vadd.f32 %v1554, %v1614
      %v1658 = vadd.f32 %v1555, %v1618
      %v1659 = vadd.f32 %v1556, %v1617
      %v1660 = vadd.f32 %v1557, %v1621
      %v1661 = vadd.f32 %v1558, %v1620
      %v1662 = vadd.f32 %v1559, %v1624
      %v1663 = vadd.f32 %v1560, %v1623
      %v1664 = vadd.f32 %v1561, %v1627
      %v1665 = vadd.f32 %v1562, %v1626
      %v1666 = vadd.f32 %v1563, %v1630
      %v1667 = vadd.f32 %v1564, %v1629
      %v1668 = vadd.f32 %v1565, %v1633
      %v1669 = vadd.f32 %v1566, %v1632
      %v1670 = vlaneseq
      %v1671 = vshrl.u32 %v1670, 7
      %v1672 = vsub.s32 7, %v1671
      %v1673 = vrot.slane %v237, %v1672
      %v1674 = vmul.f32 %v206, %v1673
      %v1675 = vmul.f32 %v207, %v1673
      %v1676 = vmul.f32 %v208, %v1673
      %v1677 = vmul.f32 %v209, %v1673
      %v1678 = vmul.f32 %v210, %v1673
      %v1679 = vmul.f32 %v211, %v1673
      %v1680 = vmul.f32 %v212, %v1673
      %v1681 = vmul.f32 %v213, %v1673
      %v1682 = vmul.f32 %v214, %v1673
      %v1683 = vmul.f32 %v215, %v1673
      %v1684 = vmul.f32 %v216, %v1673
      %v1685 = vmul.f32 %v217, %v1673
      %v1686 = vmul.f32 %v218, %v1673
      %v1687 = vmul.f32 %v219, %v1673
      %v1688 = vmul.f32 %v220, %v1673
      %v1689 = vmul.f32 %v221, %v1673
      %v1690 = vmul.f32 %v222, %v1673
      %v1691 = vmul.f32 %v223, %v1673
      %v1710 = vrot.slane %v1674, 7
      %v1711 = vrot.slane %v1675, 7
      %v1712 = vsel %vm948, %v1710, %v1711
      %v1713 = vrot.slane %v1676, 7
      %v1714 = vrot.slane %v1677, 7
      %v1715 = vsel %vm948, %v1713, %v1714
      %v1716 = vrot.slane %v1678, 7
      %v1717 = vrot.slane %v1679, 7
      %v1718 = vsel %vm948, %v1716, %v1717
      %v1719 = vrot.slane %v1680, 7
      %v1720 = vrot.slane %v1681, 7
      %v1721 = vsel %vm948, %v1719, %v1720
      %v1722 = vrot.slane %v1682, 7
      %v1723 = vrot.slane %v1683, 7
      %v1724 = vsel %vm948, %v1722, %v1723
      %v1725 = vrot.slane %v1684, 7
      %v1726 = vrot.slane %v1685, 7
      %v1727 = vsel %vm948, %v1725, %v1726
      %v1728 = vrot.slane %v1686, 7
      %v1729 = vrot.slane %v1687, 7
      %v1730 = vsel %vm948, %v1728, %v1729
      %v1731 = vrot.slane %v1688, 7
      %v1732 = vrot.slane %v1689, 7
      %v1733 = vsel %vm948, %v1731, %v1732
      %v1734 = vrot.slane %v1690, 7
      %v1735 = vrot.slane %v1691, 7
      %v1736 = vsel %vm948, %v1734, %v1735
      %v1755 = vadd.f32 %v1652, %v1712
      %v1756 = vadd.f32 %v1653, %v1711
      %v1757 = vadd.f32 %v1654, %v1715
      %v1758 = vadd.f32 %v1655, %v1714
      %v1759 = vadd.f32 %v1656, %v1718
      %v1760 = vadd.f32 %v1657, %v1717
      %v1761 = vadd.f32 %v1658, %v1721
      %v1762 = vadd.f32 %v1659, %v1720
      %v1763 = vadd.f32 %v1660, %v1724
      %v1764 = vadd.f32 %v1661, %v1723
      %v1765 = vadd.f32 %v1662, %v1727
      %v1766 = vadd.f32 %v1663, %v1726
      %v1767 = vadd.f32 %v1664, %v1730
      %v1768 = vadd.f32 %v1665, %v1729
      %v1769 = vadd.f32 %v1666, %v1733
      %v1770 = vadd.f32 %v1667, %v1732
      %v1771 = vadd.f32 %v1668, %v1736
      %v1772 = vadd.f32 %v1669, %v1735
      %v1773 = vlaneseq
      %v1774 = vshrl.u32 %v1773, 7
      %v1775 = vsub.s32 0, %v1774
      %v1776 = vrot.slane %v238, %v1775
      %v1777 = vmul.f32 %v208, %v1776
      %v1778 = vmul.f32 %v209, %v1776
      %v1779 = vmul.f32 %v210, %v1776
      %v1780 = vmul.f32 %v211, %v1776
      %v1781 = vmul.f32 %v212, %v1776
      %v1782 = vmul.f32 %v213, %v1776
      %v1783 = vmul.f32 %v214, %v1776
      %v1784 = vmul.f32 %v215, %v1776
      %v1785 = vmul.f32 %v216, %v1776
      %v1786 = vmul.f32 %v217, %v1776
      %v1787 = vmul.f32 %v218, %v1776
      %v1788 = vmul.f32 %v219, %v1776
      %v1789 = vmul.f32 %v220, %v1776
      %v1790 = vmul.f32 %v221, %v1776
      %v1791 = vmul.f32 %v222, %v1776
      %v1792 = vmul.f32 %v223, %v1776
      %v1793 = vmul.f32 %v224, %v1776
      %v1794 = vmul.f32 %v225, %v1776
      %v1795 = vadd.f32 %v1755, %v1777
      %v1796 = vadd.f32 %v1756, %v1778
      %v1797 = vadd.f32 %v1757, %v1779
      %v1798 = vadd.f32 %v1758, %v1780
      %v1799 = vadd.f32 %v1759, %v1781
      %v1800 = vadd.f32 %v1760, %v1782
      %v1801 = vadd.f32 %v1761, %v1783
      %v1802 = vadd.f32 %v1762, %v1784
      %v1803 = vadd.f32 %v1763, %v1785
      %v1804 = vadd.f32 %v1764, %v1786
      %v1805 = vadd.f32 %v1765, %v1787
      %v1806 = vadd.f32 %v1766, %v1788
      %v1807 = vadd.f32 %v1767, %v1789
      %v1808 = vadd.f32 %v1768, %v1790
      %v1809 = vadd.f32 %v1769, %v1791
      %v1810 = vadd.f32 %v1770, %v1792
      %v1811 = vadd.f32 %v1771, %v1793
      %v1812 = vadd.f32 %v1772, %v1794
      %v1813 = vlaneseq
      %v1814 = vshrl.u32 %v1813, 7
      %v1815 = vsub.s32 1, %v1814
      %v1816 = vrot.slane %v238, %v1815
      %v1817 = vmul.f32 %v208, %v1816
      %v1818 = vmul.f32 %v209, %v1816
      %v1819 = vmul.f32 %v210, %v1816
      %v1820 = vmul.f32 %v211, %v1816
      %v1821 = vmul.f32 %v212, %v1816
      %v1822 = vmul.f32 %v213, %v1816
      %v1823 = vmul.f32 %v214, %v1816
      %v1824 = vmul.f32 %v215, %v1816
      %v1825 = vmul.f32 %v216, %v1816
      %v1826 = vmul.f32 %v217, %v1816
      %v1827 = vmul.f32 %v218, %v1816
      %v1828 = vmul.f32 %v219, %v1816
      %v1829 = vmul.f32 %v220, %v1816
      %v1830 = vmul.f32 %v221, %v1816
      %v1831 = vmul.f32 %v222, %v1816
      %v1832 = vmul.f32 %v223, %v1816
      %v1833 = vmul.f32 %v224, %v1816
      %v1834 = vmul.f32 %v225, %v1816
      %v1853 = vrot.slane %v1817, 1
      %v1854 = vrot.slane %v1818, 1
      %v1855 = vsel %vm324, %v1853, %v1854
      %v1856 = vrot.slane %v1819, 1
      %v1857 = vrot.slane %v1820, 1
      %v1858 = vsel %vm324, %v1856, %v1857
      %v1859 = vrot.slane %v1821, 1
      %v1860 = vrot.slane %v1822, 1
      %v1861 = vsel %vm324, %v1859, %v1860
      %v1862 = vrot.slane %v1823, 1
      %v1863 = vrot.slane %v1824, 1
      %v1864 = vsel %vm324, %v1862, %v1863
      %v1865 = vrot.slane %v1825, 1
      %v1866 = vrot.slane %v1826, 1
      %v1867 = vsel %vm324, %v1865, %v1866
      %v1868 = vrot.slane %v1827, 1
      %v1869 = vrot.slane %v1828, 1
      %v1870 = vsel %vm324, %v1868, %v1869
      %v1871 = vrot.slane %v1829, 1
      %v1872 = vrot.slane %v1830, 1
      %v1873 = vsel %vm324, %v1871, %v1872
      %v1874 = vrot.slane %v1831, 1
      %v1875 = vrot.slane %v1832, 1
      %v1876 = vsel %vm324, %v1874, %v1875
      %v1877 = vrot.slane %v1833, 1
      %v1878 = vrot.slane %v1834, 1
      %v1879 = vsel %vm324, %v1877, %v1878
      %v1898 = vadd.f32 %v1795, %v1855
      %v1899 = vadd.f32 %v1796, %v1854
      %v1900 = vadd.f32 %v1797, %v1858
      %v1901 = vadd.f32 %v1798, %v1857
      %v1902 = vadd.f32 %v1799, %v1861
      %v1903 = vadd.f32 %v1800, %v1860
      %v1904 = vadd.f32 %v1801, %v1864
      %v1905 = vadd.f32 %v1802, %v1863
      %v1906 = vadd.f32 %v1803, %v1867
      %v1907 = vadd.f32 %v1804, %v1866
      %v1908 = vadd.f32 %v1805, %v1870
      %v1909 = vadd.f32 %v1806, %v1869
      %v1910 = vadd.f32 %v1807, %v1873
      %v1911 = vadd.f32 %v1808, %v1872
      %v1912 = vadd.f32 %v1809, %v1876
      %v1913 = vadd.f32 %v1810, %v1875
      %v1914 = vadd.f32 %v1811, %v1879
      %v1915 = vadd.f32 %v1812, %v1878
      %v1916 = vlaneseq
      %v1917 = vshrl.u32 %v1916, 7
      %v1918 = vsub.s32 2, %v1917
      %v1919 = vrot.slane %v238, %v1918
      %v1920 = vmul.f32 %v208, %v1919
      %v1921 = vmul.f32 %v209, %v1919
      %v1922 = vmul.f32 %v210, %v1919
      %v1923 = vmul.f32 %v211, %v1919
      %v1924 = vmul.f32 %v212, %v1919
      %v1925 = vmul.f32 %v213, %v1919
      %v1926 = vmul.f32 %v214, %v1919
      %v1927 = vmul.f32 %v215, %v1919
      %v1928 = vmul.f32 %v216, %v1919
      %v1929 = vmul.f32 %v217, %v1919
      %v1930 = vmul.f32 %v218, %v1919
      %v1931 = vmul.f32 %v219, %v1919
      %v1932 = vmul.f32 %v220, %v1919
      %v1933 = vmul.f32 %v221, %v1919
      %v1934 = vmul.f32 %v222, %v1919
      %v1935 = vmul.f32 %v223, %v1919
      %v1936 = vmul.f32 %v224, %v1919
      %v1937 = vmul.f32 %v225, %v1919
      %v1956 = vrot.slane %v1920, 2
      %v1957 = vrot.slane %v1921, 2
      %v1958 = vsel %vm428, %v1956, %v1957
      %v1959 = vrot.slane %v1922, 2
      %v1960 = vrot.slane %v1923, 2
      %v1961 = vsel %vm428, %v1959, %v1960
      %v1962 = vrot.slane %v1924, 2
      %v1963 = vrot.slane %v1925, 2
      %v1964 = vsel %vm428, %v1962, %v1963
      %v1965 = vrot.slane %v1926, 2
      %v1966 = vrot.slane %v1927, 2
      %v1967 = vsel %vm428, %v1965, %v1966
      %v1968 = vrot.slane %v1928, 2
      %v1969 = vrot.slane %v1929, 2
      %v1970 = vsel %vm428, %v1968, %v1969
      %v1971 = vrot.slane %v1930, 2
      %v1972 = vrot.slane %v1931, 2
      %v1973 = vsel %vm428, %v1971, %v1972
      %v1974 = vrot.slane %v1932, 2
      %v1975 = vrot.slane %v1933, 2
      %v1976 = vsel %vm428, %v1974, %v1975
      %v1977 = vrot.slane %v1934, 2
      %v1978 = vrot.slane %v1935, 2
      %v1979 = vsel %vm428, %v1977, %v1978
      %v1980 = vrot.slane %v1936, 2
      %v1981 = vrot.slane %v1937, 2
      %v1982 = vsel %vm428, %v1980, %v1981
      %v2001 = vadd.f32 %v1898, %v1958
      %v2002 = vadd.f32 %v1899, %v1957
      %v2003 = vadd.f32 %v1900, %v1961
      %v2004 = vadd.f32 %v1901, %v1960
      %v2005 = vadd.f32 %v1902, %v1964
      %v2006 = vadd.f32 %v1903, %v1963
      %v2007 = vadd.f32 %v1904, %v1967
      %v2008 = vadd.f32 %v1905, %v1966
      %v2009 = vadd.f32 %v1906, %v1970
      %v2010 = vadd.f32 %v1907, %v1969
      %v2011 = vadd.f32 %v1908, %v1973
      %v2012 = vadd.f32 %v1909, %v1972
      %v2013 = vadd.f32 %v1910, %v1976
      %v2014 = vadd.f32 %v1911, %v1975
      %v2015 = vadd.f32 %v1912, %v1979
      %v2016 = vadd.f32 %v1913, %v1978
      %v2017 = vadd.f32 %v1914, %v1982
      %v2018 = vadd.f32 %v1915, %v1981
      %v2019 = vlaneseq
      %v2020 = vshrl.u32 %v2019, 7
      %v2021 = vsub.s32 3, %v2020
      %v2022 = vrot.slane %v238, %v2021
      %v2023 = vmul.f32 %v208, %v2022
      %v2024 = vmul.f32 %v209, %v2022
      %v2025 = vmul.f32 %v210, %v2022
      %v2026 = vmul.f32 %v211, %v2022
      %v2027 = vmul.f32 %v212, %v2022
      %v2028 = vmul.f32 %v213, %v2022
      %v2029 = vmul.f32 %v214, %v2022
      %v2030 = vmul.f32 %v215, %v2022
      %v2031 = vmul.f32 %v216, %v2022
      %v2032 = vmul.f32 %v217, %v2022
      %v2033 = vmul.f32 %v218, %v2022
      %v2034 = vmul.f32 %v219, %v2022
      %v2035 = vmul.f32 %v220, %v2022
      %v2036 = vmul.f32 %v221, %v2022
      %v2037 = vmul.f32 %v222, %v2022
      %v2038 = vmul.f32 %v223, %v2022
      %v2039 = vmul.f32 %v224, %v2022
      %v2040 = vmul.f32 %v225, %v2022
      %v2059 = vrot.slane %v2023, 3
      %v2060 = vrot.slane %v2024, 3
      %v2061 = vsel %vm532, %v2059, %v2060
      %v2062 = vrot.slane %v2025, 3
      %v2063 = vrot.slane %v2026, 3
      %v2064 = vsel %vm532, %v2062, %v2063
      %v2065 = vrot.slane %v2027, 3
      %v2066 = vrot.slane %v2028, 3
      %v2067 = vsel %vm532, %v2065, %v2066
      %v2068 = vrot.slane %v2029, 3
      %v2069 = vrot.slane %v2030, 3
      %v2070 = vsel %vm532, %v2068, %v2069
      %v2071 = vrot.slane %v2031, 3
      %v2072 = vrot.slane %v2032, 3
      %v2073 = vsel %vm532, %v2071, %v2072
      %v2074 = vrot.slane %v2033, 3
      %v2075 = vrot.slane %v2034, 3
      %v2076 = vsel %vm532, %v2074, %v2075
      %v2077 = vrot.slane %v2035, 3
      %v2078 = vrot.slane %v2036, 3
      %v2079 = vsel %vm532, %v2077, %v2078
      %v2080 = vrot.slane %v2037, 3
      %v2081 = vrot.slane %v2038, 3
      %v2082 = vsel %vm532, %v2080, %v2081
      %v2083 = vrot.slane %v2039, 3
      %v2084 = vrot.slane %v2040, 3
      %v2085 = vsel %vm532, %v2083, %v2084
      %v2104 = vadd.f32 %v2001, %v2061
      %v2105 = vadd.f32 %v2002, %v2060
      %v2106 = vadd.f32 %v2003, %v2064
      %v2107 = vadd.f32 %v2004, %v2063
      %v2108 = vadd.f32 %v2005, %v2067
      %v2109 = vadd.f32 %v2006, %v2066
      %v2110 = vadd.f32 %v2007, %v2070
      %v2111 = vadd.f32 %v2008, %v2069
      %v2112 = vadd.f32 %v2009, %v2073
      %v2113 = vadd.f32 %v2010, %v2072
      %v2114 = vadd.f32 %v2011, %v2076
      %v2115 = vadd.f32 %v2012, %v2075
      %v2116 = vadd.f32 %v2013, %v2079
      %v2117 = vadd.f32 %v2014, %v2078
      %v2118 = vadd.f32 %v2015, %v2082
      %v2119 = vadd.f32 %v2016, %v2081
      %v2120 = vadd.f32 %v2017, %v2085
      %v2121 = vadd.f32 %v2018, %v2084
      %v2122 = vlaneseq
      %v2123 = vshrl.u32 %v2122, 7
      %v2124 = vsub.s32 4, %v2123
      %v2125 = vrot.slane %v238, %v2124
      %v2126 = vmul.f32 %v208, %v2125
      %v2127 = vmul.f32 %v209, %v2125
      %v2128 = vmul.f32 %v210, %v2125
      %v2129 = vmul.f32 %v211, %v2125
      %v2130 = vmul.f32 %v212, %v2125
      %v2131 = vmul.f32 %v213, %v2125
      %v2132 = vmul.f32 %v214, %v2125
      %v2133 = vmul.f32 %v215, %v2125
      %v2134 = vmul.f32 %v216, %v2125
      %v2135 = vmul.f32 %v217, %v2125
      %v2136 = vmul.f32 %v218, %v2125
      %v2137 = vmul.f32 %v219, %v2125
      %v2138 = vmul.f32 %v220, %v2125
      %v2139 = vmul.f32 %v221, %v2125
      %v2140 = vmul.f32 %v222, %v2125
      %v2141 = vmul.f32 %v223, %v2125
      %v2142 = vmul.f32 %v224, %v2125
      %v2143 = vmul.f32 %v225, %v2125
      %v2162 = vrot.slane %v2126, 4
      %v2163 = vrot.slane %v2127, 4
      %v2164 = vsel %vm636, %v2162, %v2163
      %v2165 = vrot.slane %v2128, 4
      %v2166 = vrot.slane %v2129, 4
      %v2167 = vsel %vm636, %v2165, %v2166
      %v2168 = vrot.slane %v2130, 4
      %v2169 = vrot.slane %v2131, 4
      %v2170 = vsel %vm636, %v2168, %v2169
      %v2171 = vrot.slane %v2132, 4
      %v2172 = vrot.slane %v2133, 4
      %v2173 = vsel %vm636, %v2171, %v2172
      %v2174 = vrot.slane %v2134, 4
      %v2175 = vrot.slane %v2135, 4
      %v2176 = vsel %vm636, %v2174, %v2175
      %v2177 = vrot.slane %v2136, 4
      %v2178 = vrot.slane %v2137, 4
      %v2179 = vsel %vm636, %v2177, %v2178
      %v2180 = vrot.slane %v2138, 4
      %v2181 = vrot.slane %v2139, 4
      %v2182 = vsel %vm636, %v2180, %v2181
      %v2183 = vrot.slane %v2140, 4
      %v2184 = vrot.slane %v2141, 4
      %v2185 = vsel %vm636, %v2183, %v2184
      %v2186 = vrot.slane %v2142, 4
      %v2187 = vrot.slane %v2143, 4
      %v2188 = vsel %vm636, %v2186, %v2187
      %v2207 = vadd.f32 %v2104, %v2164
      %v2208 = vadd.f32 %v2105, %v2163
      %v2209 = vadd.f32 %v2106, %v2167
      %v2210 = vadd.f32 %v2107, %v2166
      %v2211 = vadd.f32 %v2108, %v2170
      %v2212 = vadd.f32 %v2109, %v2169
      %v2213 = vadd.f32 %v2110, %v2173
      %v2214 = vadd.f32 %v2111, %v2172
      %v2215 = vadd.f32 %v2112, %v2176
      %v2216 = vadd.f32 %v2113, %v2175
      %v2217 = vadd.f32 %v2114, %v2179
      %v2218 = vadd.f32 %v2115, %v2178
      %v2219 = vadd.f32 %v2116, %v2182
      %v2220 = vadd.f32 %v2117, %v2181
      %v2221 = vadd.f32 %v2118, %v2185
      %v2222 = vadd.f32 %v2119, %v2184
      %v2223 = vadd.f32 %v2120, %v2188
      %v2224 = vadd.f32 %v2121, %v2187
      %v2225 = vlaneseq
      %v2226 = vshrl.u32 %v2225, 7
      %v2227 = vsub.s32 5, %v2226
      %v2228 = vrot.slane %v238, %v2227
      %v2229 = vmul.f32 %v208, %v2228
      %v2230 = vmul.f32 %v209, %v2228
      %v2231 = vmul.f32 %v210, %v2228
      %v2232 = vmul.f32 %v211, %v2228
      %v2233 = vmul.f32 %v212, %v2228
      %v2234 = vmul.f32 %v213, %v2228
      %v2235 = vmul.f32 %v214, %v2228
      %v2236 = vmul.f32 %v215, %v2228
      %v2237 = vmul.f32 %v216, %v2228
      %v2238 = vmul.f32 %v217, %v2228
      %v2239 = vmul.f32 %v218, %v2228
      %v2240 = vmul.f32 %v219, %v2228
      %v2241 = vmul.f32 %v220, %v2228
      %v2242 = vmul.f32 %v221, %v2228
      %v2243 = vmul.f32 %v222, %v2228
      %v2244 = vmul.f32 %v223, %v2228
      %v2245 = vmul.f32 %v224, %v2228
      %v2246 = vmul.f32 %v225, %v2228
      %v2265 = vrot.slane %v2229, 5
      %v2266 = vrot.slane %v2230, 5
      %v2267 = vsel %vm740, %v2265, %v2266
      %v2268 = vrot.slane %v2231, 5
      %v2269 = vrot.slane %v2232, 5
      %v2270 = vsel %vm740, %v2268, %v2269
      %v2271 = vrot.slane %v2233, 5
      %v2272 = vrot.slane %v2234, 5
      %v2273 = vsel %vm740, %v2271, %v2272
      %v2274 = vrot.slane %v2235, 5
      %v2275 = vrot.slane %v2236, 5
      %v2276 = vsel %vm740, %v2274, %v2275
      %v2277 = vrot.slane %v2237, 5
      %v2278 = vrot.slane %v2238, 5
      %v2279 = vsel %vm740, %v2277, %v2278
      %v2280 = vrot.slane %v2239, 5
      %v2281 = vrot.slane %v2240, 5
      %v2282 = vsel %vm740, %v2280, %v2281
      %v2283 = vrot.slane %v2241, 5
      %v2284 = vrot.slane %v2242, 5
      %v2285 = vsel %vm740, %v2283, %v2284
      %v2286 = vrot.slane %v2243, 5
      %v2287 = vrot.slane %v2244, 5
      %v2288 = vsel %vm740, %v2286, %v2287
      %v2289 = vrot.slane %v2245, 5
      %v2290 = vrot.slane %v2246, 5
      %v2291 = vsel %vm740, %v2289, %v2290
      %v2310 = vadd.f32 %v2207, %v2267
      %v2311 = vadd.f32 %v2208, %v2266
      %v2312 = vadd.f32 %v2209, %v2270
      %v2313 = vadd.f32 %v2210, %v2269
      %v2314 = vadd.f32 %v2211, %v2273
      %v2315 = vadd.f32 %v2212, %v2272
      %v2316 = vadd.f32 %v2213, %v2276
      %v2317 = vadd.f32 %v2214, %v2275
      %v2318 = vadd.f32 %v2215, %v2279
      %v2319 = vadd.f32 %v2216, %v2278
      %v2320 = vadd.f32 %v2217, %v2282
      %v2321 = vadd.f32 %v2218, %v2281
      %v2322 = vadd.f32 %v2219, %v2285
      %v2323 = vadd.f32 %v2220, %v2284
      %v2324 = vadd.f32 %v2221, %v2288
      %v2325 = vadd.f32 %v2222, %v2287
      %v2326 = vadd.f32 %v2223, %v2291
      %v2327 = vadd.f32 %v2224, %v2290
      %v2328 = vlaneseq
      %v2329 = vshrl.u32 %v2328, 7
      %v2330 = vsub.s32 6, %v2329
      %v2331 = vrot.slane %v238, %v2330
      %v2332 = vmul.f32 %v208, %v2331
      %v2333 = vmul.f32 %v209, %v2331
      %v2334 = vmul.f32 %v210, %v2331
      %v2335 = vmul.f32 %v211, %v2331
      %v2336 = vmul.f32 %v212, %v2331
      %v2337 = vmul.f32 %v213, %v2331
      %v2338 = vmul.f32 %v214, %v2331
      %v2339 = vmul.f32 %v215, %v2331
      %v2340 = vmul.f32 %v216, %v2331
      %v2341 = vmul.f32 %v217, %v2331
      %v2342 = vmul.f32 %v218, %v2331
      %v2343 = vmul.f32 %v219, %v2331
      %v2344 = vmul.f32 %v220, %v2331
      %v2345 = vmul.f32 %v221, %v2331
      %v2346 = vmul.f32 %v222, %v2331
      %v2347 = vmul.f32 %v223, %v2331
      %v2348 = vmul.f32 %v224, %v2331
      %v2349 = vmul.f32 %v225, %v2331
      %v2368 = vrot.slane %v2332, 6
      %v2369 = vrot.slane %v2333, 6
      %v2370 = vsel %vm844, %v2368, %v2369
      %v2371 = vrot.slane %v2334, 6
      %v2372 = vrot.slane %v2335, 6
      %v2373 = vsel %vm844, %v2371, %v2372
      %v2374 = vrot.slane %v2336, 6
      %v2375 = vrot.slane %v2337, 6
      %v2376 = vsel %vm844, %v2374, %v2375
      %v2377 = vrot.slane %v2338, 6
      %v2378 = vrot.slane %v2339, 6
      %v2379 = vsel %vm844, %v2377, %v2378
      %v2380 = vrot.slane %v2340, 6
      %v2381 = vrot.slane %v2341, 6
      %v2382 = vsel %vm844, %v2380, %v2381
      %v2383 = vrot.slane %v2342, 6
      %v2384 = vrot.slane %v2343, 6
      %v2385 = vsel %vm844, %v2383, %v2384
      %v2386 = vrot.slane %v2344, 6
      %v2387 = vrot.slane %v2345, 6
      %v2388 = vsel %vm844, %v2386, %v2387
      %v2389 = vrot.slane %v2346, 6
      %v2390 = vrot.slane %v2347, 6
      %v2391 = vsel %vm844, %v2389, %v2390
      %v2392 = vrot.slane %v2348, 6
      %v2393 = vrot.slane %v2349, 6
      %v2394 = vsel %vm844, %v2392, %v2393
      %v2413 = vadd.f32 %v2310, %v2370
      %v2414 = vadd.f32 %v2311, %v2369
      %v2415 = vadd.f32 %v2312, %v2373
      %v2416 = vadd.f32 %v2313, %v2372
      %v2417 = vadd.f32 %v2314, %v2376
      %v2418 = vadd.f32 %v2315, %v2375
      %v2419 = vadd.f32 %v2316, %v2379
      %v2420 = vadd.f32 %v2317, %v2378
      %v2421 = vadd.f32 %v2318, %v2382
      %v2422 = vadd.f32 %v2319, %v2381
      %v2423 = vadd.f32 %v2320, %v2385
      %v2424 = vadd.f32 %v2321, %v2384
      %v2425 = vadd.f32 %v2322, %v2388
      %v2426 = vadd.f32 %v2323, %v2387
      %v2427 = vadd.f32 %v2324, %v2391
      %v2428 = vadd.f32 %v2325, %v2390
      %v2429 = vadd.f32 %v2326, %v2394
      %v2430 = vadd.f32 %v2327, %v2393
      %v2431 = vlaneseq
      %v2432 = vshrl.u32 %v2431, 7
      %v2433 = vsub.s32 7, %v2432
      %v2434 = vrot.slane %v238, %v2433
      %v2435 = vmul.f32 %v208, %v2434
      %v2436 = vmul.f32 %v209, %v2434
      %v2437 = vmul.f32 %v210, %v2434
      %v2438 = vmul.f32 %v211, %v2434
      %v2439 = vmul.f32 %v212, %v2434
      %v2440 = vmul.f32 %v213, %v2434
      %v2441 = vmul.f32 %v214, %v2434
      %v2442 = vmul.f32 %v215, %v2434
      %v2443 = vmul.f32 %v216, %v2434
      %v2444 = vmul.f32 %v217, %v2434
      %v2445 = vmul.f32 %v218, %v2434
      %v2446 = vmul.f32 %v219, %v2434
      %v2447 = vmul.f32 %v220, %v2434
      %v2448 = vmul.f32 %v221, %v2434
      %v2449 = vmul.f32 %v222, %v2434
      %v2450 = vmul.f32 %v223, %v2434
      %v2451 = vmul.f32 %v224, %v2434
      %v2452 = vmul.f32 %v225, %v2434
      %v2471 = vrot.slane %v2435, 7
      %v2472 = vrot.slane %v2436, 7
      %v2473 = vsel %vm948, %v2471, %v2472
      %v2474 = vrot.slane %v2437, 7
      %v2475 = vrot.slane %v2438, 7
      %v2476 = vsel %vm948, %v2474, %v2475
      %v2477 = vrot.slane %v2439, 7
      %v2478 = vrot.slane %v2440, 7
      %v2479 = vsel %vm948, %v2477, %v2478
      %v2480 = vrot.slane %v2441, 7
      %v2481 = vrot.slane %v2442, 7
      %v2482 = vsel %vm948, %v2480, %v2481
      %v2483 = vrot.slane %v2443, 7
      %v2484 = vrot.slane %v2444, 7
      %v2485 = vsel %vm948, %v2483, %v2484
      %v2486 = vrot.slane %v2445, 7
      %v2487 = vrot.slane %v2446, 7
      %v2488 = vsel %vm948, %v2486, %v2487
      %v2489 = vrot.slane %v2447, 7
      %v2490 = vrot.slane %v2448, 7
      %v2491 = vsel %vm948, %v2489, %v2490
      %v2492 = vrot.slane %v2449, 7
      %v2493 = vrot.slane %v2450, 7
      %v2494 = vsel %vm948, %v2492, %v2493
      %v2495 = vrot.slane %v2451, 7
      %v2496 = vrot.slane %v2452, 7
      %v2497 = vsel %vm948, %v2495, %v2496
      %v2516 = vadd.f32 %v2413, %v2473
      %v2517 = vadd.f32 %v2414, %v2472
      %v2518 = vadd.f32 %v2415, %v2476
      %v2519 = vadd.f32 %v2416, %v2475
      %v2520 = vadd.f32 %v2417, %v2479
      %v2521 = vadd.f32 %v2418, %v2478
      %v2522 = vadd.f32 %v2419, %v2482
      %v2523 = vadd.f32 %v2420, %v2481
      %v2524 = vadd.f32 %v2421, %v2485
      %v2525 = vadd.f32 %v2422, %v2484
      %v2526 = vadd.f32 %v2423, %v2488
      %v2527 = vadd.f32 %v2424, %v2487
      %v2528 = vadd.f32 %v2425, %v2491
      %v2529 = vadd.f32 %v2426, %v2490
      %v2530 = vadd.f32 %v2427, %v2494
      %v2531 = vadd.f32 %v2428, %v2493
      %v2532 = vadd.f32 %v2429, %v2497
      %v2533 = vadd.f32 %v2430, %v2496
      %v2534 = vlaneseq
      %v2535 = vshrl.u32 %v2534, 7
      %v2536 = vsub.s32 0, %v2535
      %v2537 = vrot.slane %v239, %v2536
      %v2538 = vmul.f32 %v210, %v2537
      %v2539 = vmul.f32 %v211, %v2537
      %v2540 = vmul.f32 %v212, %v2537
      %v2541 = vmul.f32 %v213, %v2537
      %v2542 = vmul.f32 %v214, %v2537
      %v2543 = vmul.f32 %v215, %v2537
      %v2544 = vmul.f32 %v216, %v2537
      %v2545 = vmul.f32 %v217, %v2537
      %v2546 = vmul.f32 %v218, %v2537
      %v2547 = vmul.f32 %v219, %v2537
      %v2548 = vmul.f32 %v220, %v2537
      %v2549 = vmul.f32 %v221, %v2537
      %v2550 = vmul.f32 %v222, %v2537
      %v2551 = vmul.f32 %v223, %v2537
      %v2552 = vmul.f32 %v224, %v2537
      %v2553 = vmul.f32 %v225, %v2537
      %v2554 = vmul.f32 %v226, %v2537
      %v2555 = vmul.f32 %v227, %v2537
      %v2556 = vadd.f32 %v2516, %v2538
      %v2557 = vadd.f32 %v2517, %v2539
      %v2558 = vadd.f32 %v2518, %v2540
      %v2559 = vadd.f32 %v2519, %v2541
      %v2560 = vadd.f32 %v2520, %v2542
      %v2561 = vadd.f32 %v2521, %v2543
      %v2562 = vadd.f32 %v2522, %v2544
      %v2563 = vadd.f32 %v2523, %v2545
      %v2564 = vadd.f32 %v2524, %v2546
      %v2565 = vadd.f32 %v2525, %v2547
      %v2566 = vadd.f32 %v2526, %v2548
      %v2567 = vadd.f32 %v2527, %v2549
      %v2568 = vadd.f32 %v2528, %v2550
      %v2569 = vadd.f32 %v2529, %v2551
      %v2570 = vadd.f32 %v2530, %v2552
      %v2571 = vadd.f32 %v2531, %v2553
      %v2572 = vadd.f32 %v2532, %v2554
      %v2573 = vadd.f32 %v2533, %v2555
      %v2574 = vlaneseq
      %v2575 = vshrl.u32 %v2574, 7
      %v2576 = vsub.s32 1, %v2575
      %v2577 = vrot.slane %v239, %v2576
      %v2578 = vmul.f32 %v210, %v2577
      %v2579 = vmul.f32 %v211, %v2577
      %v2580 = vmul.f32 %v212, %v2577
      %v2581 = vmul.f32 %v213, %v2577
      %v2582 = vmul.f32 %v214, %v2577
      %v2583 = vmul.f32 %v215, %v2577
      %v2584 = vmul.f32 %v216, %v2577
      %v2585 = vmul.f32 %v217, %v2577
      %v2586 = vmul.f32 %v218, %v2577
      %v2587 = vmul.f32 %v219, %v2577
      %v2588 = vmul.f32 %v220, %v2577
      %v2589 = vmul.f32 %v221, %v2577
      %v2590 = vmul.f32 %v222, %v2577
      %v2591 = vmul.f32 %v223, %v2577
      %v2592 = vmul.f32 %v224, %v2577
      %v2593 = vmul.f32 %v225, %v2577
      %v2594 = vmul.f32 %v226, %v2577
      %v2595 = vmul.f32 %v227, %v2577
      %v2614 = vrot.slane %v2578, 1
      %v2615 = vrot.slane %v2579, 1
      %v2616 = vsel %vm324, %v2614, %v2615
      %v2617 = vrot.slane %v2580, 1
      %v2618 = vrot.slane %v2581, 1
      %v2619 = vsel %vm324, %v2617, %v2618
      %v2620 = vrot.slane %v2582, 1
      %v2621 = vrot.slane %v2583, 1
      %v2622 = vsel %vm324, %v2620, %v2621
      %v2623 = vrot.slane %v2584, 1
      %v2624 = vrot.slane %v2585, 1
      %v2625 = vsel %vm324, %v2623, %v2624
      %v2626 = vrot.slane %v2586, 1
      %v2627 = vrot.slane %v2587, 1
      %v2628 = vsel %vm324, %v2626, %v2627
      %v2629 = vrot.slane %v2588, 1
      %v2630 = vrot.slane %v2589, 1
      %v2631 = vsel %vm324, %v2629, %v2630
      %v2632 = vrot.slane %v2590, 1
      %v2633 = vrot.slane %v2591, 1
      %v2634 = vsel %vm324, %v2632, %v2633
      %v2635 = vrot.slane %v2592, 1
      %v2636 = vrot.slane %v2593, 1
      %v2637 = vsel %vm324, %v2635, %v2636
      %v2638 = vrot.slane %v2594, 1
      %v2639 = vrot.slane %v2595, 1
      %v2640 = vsel %vm324, %v2638, %v2639
      %v2659 = vadd.f32 %v2556, %v2616
      %v2660 = vadd.f32 %v2557, %v2615
      %v2661 = vadd.f32 %v2558, %v2619
      %v2662 = vadd.f32 %v2559, %v2618
      %v2663 = vadd.f32 %v2560, %v2622
      %v2664 = vadd.f32 %v2561, %v2621
      %v2665 = vadd.f32 %v2562, %v2625
      %v2666 = vadd.f32 %v2563, %v2624
      %v2667 = vadd.f32 %v2564, %v2628
      %v2668 = vadd.f32 %v2565, %v2627
      %v2669 = vadd.f32 %v2566, %v2631
      %v2670 = vadd.f32 %v2567, %v2630
      %v2671 = vadd.f32 %v2568, %v2634
      %v2672 = vadd.f32 %v2569, %v2633
      %v2673 = vadd.f32 %v2570, %v2637
      %v2674 = vadd.f32 %v2571, %v2636
      %v2675 = vadd.f32 %v2572, %v2640
      %v2676 = vadd.f32 %v2573, %v2639
      %v2677 = vlaneseq
      %v2678 = vshrl.u32 %v2677, 7
      %v2679 = vsub.s32 2, %v2678
      %v2680 = vrot.slane %v239, %v2679
      %v2681 = vmul.f32 %v210, %v2680
      %v2682 = vmul.f32 %v211, %v2680
      %v2683 = vmul.f32 %v212, %v2680
      %v2684 = vmul.f32 %v213, %v2680
      %v2685 = vmul.f32 %v214, %v2680
      %v2686 = vmul.f32 %v215, %v2680
      %v2687 = vmul.f32 %v216, %v2680
      %v2688 = vmul.f32 %v217, %v2680
      %v2689 = vmul.f32 %v218, %v2680
      %v2690 = vmul.f32 %v219, %v2680
      %v2691 = vmul.f32 %v220, %v2680
      %v2692 = vmul.f32 %v221, %v2680
      %v2693 = vmul.f32 %v222, %v2680
      %v2694 = vmul.f32 %v223, %v2680
      %v2695 = vmul.f32 %v224, %v2680
      %v2696 = vmul.f32 %v225, %v2680
      %v2697 = vmul.f32 %v226, %v2680
      %v2698 = vmul.f32 %v227, %v2680
      %v2717 = vrot.slane %v2681, 2
      %v2718 = vrot.slane %v2682, 2
      %v2719 = vsel %vm428, %v2717, %v2718
      %v2720 = vrot.slane %v2683, 2
      %v2721 = vrot.slane %v2684, 2
      %v2722 = vsel %vm428, %v2720, %v2721
      %v2723 = vrot.slane %v2685, 2
      %v2724 = vrot.slane %v2686, 2
      %v2725 = vsel %vm428, %v2723, %v2724
      %v2726 = vrot.slane %v2687, 2
      %v2727 = vrot.slane %v2688, 2
      %v2728 = vsel %vm428, %v2726, %v2727
      %v2729 = vrot.slane %v2689, 2
      %v2730 = vrot.slane %v2690, 2
      %v2731 = vsel %vm428, %v2729, %v2730
      %v2732 = vrot.slane %v2691, 2
      %v2733 = vrot.slane %v2692, 2
      %v2734 = vsel %vm428, %v2732, %v2733
      %v2735 = vrot.slane %v2693, 2
      %v2736 = vrot.slane %v2694, 2
      %v2737 = vsel %vm428, %v2735, %v2736
      %v2738 = vrot.slane %v2695, 2
      %v2739 = vrot.slane %v2696, 2
      %v2740 = vsel %vm428, %v2738, %v2739
      %v2741 = vrot.slane %v2697, 2
      %v2742 = vrot.slane %v2698, 2
      %v2743 = vsel %vm428, %v2741, %v2742
      %v2762 = vadd.f32 %v2659, %v2719
      %v2763 = vadd.f32 %v2660, %v2718
      %v2764 = vadd.f32 %v2661, %v2722
      %v2765 = vadd.f32 %v2662, %v2721
      %v2766 = vadd.f32 %v2663, %v2725
      %v2767 = vadd.f32 %v2664, %v2724
      %v2768 = vadd.f32 %v2665, %v2728
      %v2769 = vadd.f32 %v2666, %v2727
      %v2770 = vadd.f32 %v2667, %v2731
      %v2771 = vadd.f32 %v2668, %v2730
      %v2772 = vadd.f32 %v2669, %v2734
      %v2773 = vadd.f32 %v2670, %v2733
      %v2774 = vadd.f32 %v2671, %v2737
      %v2775 = vadd.f32 %v2672, %v2736
      %v2776 = vadd.f32 %v2673, %v2740
      %v2777 = vadd.f32 %v2674, %v2739
      %v2778 = vadd.f32 %v2675, %v2743
      %v2779 = vadd.f32 %v2676, %v2742
      %v2780 = vlaneseq
      %v2781 = vshrl.u32 %v2780, 7
      %v2782 = vsub.s32 3, %v2781
      %v2783 = vrot.slane %v239, %v2782
      %v2784 = vmul.f32 %v210, %v2783
      %v2785 = vmul.f32 %v211, %v2783
      %v2786 = vmul.f32 %v212, %v2783
      %v2787 = vmul.f32 %v213, %v2783
      %v2788 = vmul.f32 %v214, %v2783
      %v2789 = vmul.f32 %v215, %v2783
      %v2790 = vmul.f32 %v216, %v2783
      %v2791 = vmul.f32 %v217, %v2783
      %v2792 = vmul.f32 %v218, %v2783
      %v2793 = vmul.f32 %v219, %v2783
      %v2794 = vmul.f32 %v220, %v2783
      %v2795 = vmul.f32 %v221, %v2783
      %v2796 = vmul.f32 %v222, %v2783
      %v2797 = vmul.f32 %v223, %v2783
      %v2798 = vmul.f32 %v224, %v2783
      %v2799 = vmul.f32 %v225, %v2783
      %v2800 = vmul.f32 %v226, %v2783
      %v2801 = vmul.f32 %v227, %v2783
      %v2820 = vrot.slane %v2784, 3
      %v2821 = vrot.slane %v2785, 3
      %v2822 = vsel %vm532, %v2820, %v2821
      %v2823 = vrot.slane %v2786, 3
      %v2824 = vrot.slane %v2787, 3
      %v2825 = vsel %vm532, %v2823, %v2824
      %v2826 = vrot.slane %v2788, 3
      %v2827 = vrot.slane %v2789, 3
      %v2828 = vsel %vm532, %v2826, %v2827
      %v2829 = vrot.slane %v2790, 3
      %v2830 = vrot.slane %v2791, 3
      %v2831 = vsel %vm532, %v2829, %v2830
      %v2832 = vrot.slane %v2792, 3
      %v2833 = vrot.slane %v2793, 3
      %v2834 = vsel %vm532, %v2832, %v2833
      %v2835 = vrot.slane %v2794, 3
      %v2836 = vrot.slane %v2795, 3
      %v2837 = vsel %vm532, %v2835, %v2836
      %v2838 = vrot.slane %v2796, 3
      %v2839 = vrot.slane %v2797, 3
      %v2840 = vsel %vm532, %v2838, %v2839
      %v2841 = vrot.slane %v2798, 3
      %v2842 = vrot.slane %v2799, 3
      %v2843 = vsel %vm532, %v2841, %v2842
      %v2844 = vrot.slane %v2800, 3
      %v2845 = vrot.slane %v2801, 3
      %v2846 = vsel %vm532, %v2844, %v2845
      %v2865 = vadd.f32 %v2762, %v2822
      %v2866 = vadd.f32 %v2763, %v2821
      %v2867 = vadd.f32 %v2764, %v2825
      %v2868 = vadd.f32 %v2765, %v2824
      %v2869 = vadd.f32 %v2766, %v2828
      %v2870 = vadd.f32 %v2767, %v2827
      %v2871 = vadd.f32 %v2768, %v2831
      %v2872 = vadd.f32 %v2769, %v2830
      %v2873 = vadd.f32 %v2770, %v2834
      %v2874 = vadd.f32 %v2771, %v2833
      %v2875 = vadd.f32 %v2772, %v2837
      %v2876 = vadd.f32 %v2773, %v2836
      %v2877 = vadd.f32 %v2774, %v2840
      %v2878 = vadd.f32 %v2775, %v2839
      %v2879 = vadd.f32 %v2776, %v2843
      %v2880 = vadd.f32 %v2777, %v2842
      %v2881 = vadd.f32 %v2778, %v2846
      %v2882 = vadd.f32 %v2779, %v2845
      %v2883 = vlaneseq
      %v2884 = vshrl.u32 %v2883, 7
      %v2885 = vsub.s32 4, %v2884
      %v2886 = vrot.slane %v239, %v2885
      %v2887 = vmul.f32 %v210, %v2886
      %v2888 = vmul.f32 %v211, %v2886
      %v2889 = vmul.f32 %v212, %v2886
      %v2890 = vmul.f32 %v213, %v2886
      %v2891 = vmul.f32 %v214, %v2886
      %v2892 = vmul.f32 %v215, %v2886
      %v2893 = vmul.f32 %v216, %v2886
      %v2894 = vmul.f32 %v217, %v2886
      %v2895 = vmul.f32 %v218, %v2886
      %v2896 = vmul.f32 %v219, %v2886
      %v2897 = vmul.f32 %v220, %v2886
      %v2898 = vmul.f32 %v221, %v2886
      %v2899 = vmul.f32 %v222, %v2886
      %v2900 = vmul.f32 %v223, %v2886
      %v2901 = vmul.f32 %v224, %v2886
      %v2902 = vmul.f32 %v225, %v2886
      %v2903 = vmul.f32 %v226, %v2886
      %v2904 = vmul.f32 %v227, %v2886
      %v2923 = vrot.slane %v2887, 4
      %v2924 = vrot.slane %v2888, 4
      %v2925 = vsel %vm636, %v2923, %v2924
      %v2926 = vrot.slane %v2889, 4
      %v2927 = vrot.slane %v2890, 4
      %v2928 = vsel %vm636, %v2926, %v2927
      %v2929 = vrot.slane %v2891, 4
      %v2930 = vrot.slane %v2892, 4
      %v2931 = vsel %vm636, %v2929, %v2930
      %v2932 = vrot.slane %v2893, 4
      %v2933 = vrot.slane %v2894, 4
      %v2934 = vsel %vm636, %v2932, %v2933
      %v2935 = vrot.slane %v2895, 4
      %v2936 = vrot.slane %v2896, 4
      %v2937 = vsel %vm636, %v2935, %v2936
      %v2938 = vrot.slane %v2897, 4
      %v2939 = vrot.slane %v2898, 4
      %v2940 = vsel %vm636, %v2938, %v2939
      %v2941 = vrot.slane %v2899, 4
      %v2942 = vrot.slane %v2900, 4
      %v2943 = vsel %vm636, %v2941, %v2942
      %v2944 = vrot.slane %v2901, 4
      %v2945 = vrot.slane %v2902, 4
      %v2946 = vsel %vm636, %v2944, %v2945
      %v2947 = vrot.slane %v2903, 4
      %v2948 = vrot.slane %v2904, 4
      %v2949 = vsel %vm636, %v2947, %v2948
      %v2968 = vadd.f32 %v2865, %v2925
      %v2969 = vadd.f32 %v2866, %v2924
      %v2970 = vadd.f32 %v2867, %v2928
      %v2971 = vadd.f32 %v2868, %v2927
      %v2972 = vadd.f32 %v2869, %v2931
      %v2973 = vadd.f32 %v2870, %v2930
      %v2974 = vadd.f32 %v2871, %v2934
      %v2975 = vadd.f32 %v2872, %v2933
      %v2976 = vadd.f32 %v2873, %v2937
      %v2977 = vadd.f32 %v2874, %v2936
      %v2978 = vadd.f32 %v2875, %v2940
      %v2979 = vadd.f32 %v2876, %v2939
      %v2980 = vadd.f32 %v2877, %v2943
      %v2981 = vadd.f32 %v2878, %v2942
      %v2982 = vadd.f32 %v2879, %v2946
      %v2983 = vadd.f32 %v2880, %v2945
      %v2984 = vadd.f32 %v2881, %v2949
      %v2985 = vadd.f32 %v2882, %v2948
      %v2986 = vlaneseq
      %v2987 = vshrl.u32 %v2986, 7
      %v2988 = vsub.s32 5, %v2987
      %v2989 = vrot.slane %v239, %v2988
      %v2990 = vmul.f32 %v210, %v2989
      %v2991 = vmul.f32 %v211, %v2989
      %v2992 = vmul.f32 %v212, %v2989
      %v2993 = vmul.f32 %v213, %v2989
      %v2994 = vmul.f32 %v214, %v2989
      %v2995 = vmul.f32 %v215, %v2989
      %v2996 = vmul.f32 %v216, %v2989
      %v2997 = vmul.f32 %v217, %v2989
      %v2998 = vmul.f32 %v218, %v2989
      %v2999 = vmul.f32 %v219, %v2989
      %v3000 = vmul.f32 %v220, %v2989
      %v3001 = vmul.f32 %v221, %v2989
      %v3002 = vmul.f32 %v222, %v2989
      %v3003 = vmul.f32 %v223, %v2989
      %v3004 = vmul.f32 %v224, %v2989
      %v3005 = vmul.f32 %v225, %v2989
      %v3006 = vmul.f32 %v226, %v2989
      %v3007 = vmul.f32 %v227, %v2989
      %v3026 = vrot.slane %v2990, 5
      %v3027 = vrot.slane %v2991, 5
      %v3028 = vsel %vm740, %v3026, %v3027
      %v3029 = vrot.slane %v2992, 5
      %v3030 = vrot.slane %v2993, 5
      %v3031 = vsel %vm740, %v3029, %v3030
      %v3032 = vrot.slane %v2994, 5
      %v3033 = vrot.slane %v2995, 5
      %v3034 = vsel %vm740, %v3032, %v3033
      %v3035 = vrot.slane %v2996, 5
      %v3036 = vrot.slane %v2997, 5
      %v3037 = vsel %vm740, %v3035, %v3036
      %v3038 = vrot.slane %v2998, 5
      %v3039 = vrot.slane %v2999, 5
      %v3040 = vsel %vm740, %v3038, %v3039
      %v3041 = vrot.slane %v3000, 5
      %v3042 = vrot.slane %v3001, 5
      %v3043 = vsel %vm740, %v3041, %v3042
      %v3044 = vrot.slane %v3002, 5
      %v3045 = vrot.slane %v3003, 5
      %v3046 = vsel %vm740, %v3044, %v3045
      %v3047 = vrot.slane %v3004, 5
      %v3048 = vrot.slane %v3005, 5
      %v3049 = vsel %vm740, %v3047, %v3048
      %v3050 = vrot.slane %v3006, 5
      %v3051 = vrot.slane %v3007, 5
      %v3052 = vsel %vm740, %v3050, %v3051
      %v3071 = vadd.f32 %v2968, %v3028
      %v3072 = vadd.f32 %v2969, %v3027
      %v3073 = vadd.f32 %v2970, %v3031
      %v3074 = vadd.f32 %v2971, %v3030
      %v3075 = vadd.f32 %v2972, %v3034
      %v3076 = vadd.f32 %v2973, %v3033
      %v3077 = vadd.f32 %v2974, %v3037
      %v3078 = vadd.f32 %v2975, %v3036
      %v3079 = vadd.f32 %v2976, %v3040
      %v3080 = vadd.f32 %v2977, %v3039
      %v3081 = vadd.f32 %v2978, %v3043
      %v3082 = vadd.f32 %v2979, %v3042
      %v3083 = vadd.f32 %v2980, %v3046
      %v3084 = vadd.f32 %v2981, %v3045
      %v3085 = vadd.f32 %v2982, %v3049
      %v3086 = vadd.f32 %v2983, %v3048
      %v3087 = vadd.f32 %v2984, %v3052
      %v3088 = vadd.f32 %v2985, %v3051
      %v3089 = vlaneseq
      %v3090 = vshrl.u32 %v3089, 7
      %v3091 = vsub.s32 6, %v3090
      %v3092 = vrot.slane %v239, %v3091
      %v3093 = vmul.f32 %v210, %v3092
      %v3094 = vmul.f32 %v211, %v3092
      %v3095 = vmul.f32 %v212, %v3092
      %v3096 = vmul.f32 %v213, %v3092
      %v3097 = vmul.f32 %v214, %v3092
      %v3098 = vmul.f32 %v215, %v3092
      %v3099 = vmul.f32 %v216, %v3092
      %v3100 = vmul.f32 %v217, %v3092
      %v3101 = vmul.f32 %v218, %v3092
      %v3102 = vmul.f32 %v219, %v3092
      %v3103 = vmul.f32 %v220, %v3092
      %v3104 = vmul.f32 %v221, %v3092
      %v3105 = vmul.f32 %v222, %v3092
      %v3106 = vmul.f32 %v223, %v3092
      %v3107 = vmul.f32 %v224, %v3092
      %v3108 = vmul.f32 %v225, %v3092
      %v3109 = vmul.f32 %v226, %v3092
      %v3110 = vmul.f32 %v227, %v3092
      %v3129 = vrot.slane %v3093, 6
      %v3130 = vrot.slane %v3094, 6
      %v3131 = vsel %vm844, %v3129, %v3130
      %v3132 = vrot.slane %v3095, 6
      %v3133 = vrot.slane %v3096, 6
      %v3134 = vsel %vm844, %v3132, %v3133
      %v3135 = vrot.slane %v3097, 6
      %v3136 = vrot.slane %v3098, 6
      %v3137 = vsel %vm844, %v3135, %v3136
      %v3138 = vrot.slane %v3099, 6
      %v3139 = vrot.slane %v3100, 6
      %v3140 = vsel %vm844, %v3138, %v3139
      %v3141 = vrot.slane %v3101, 6
      %v3142 = vrot.slane %v3102, 6
      %v3143 = vsel %vm844, %v3141, %v3142
      %v3144 = vrot.slane %v3103, 6
      %v3145 = vrot.slane %v3104, 6
      %v3146 = vsel %vm844, %v3144, %v3145
      %v3147 = vrot.slane %v3105, 6
      %v3148 = vrot.slane %v3106, 6
      %v3149 = vsel %vm844, %v3147, %v3148
      %v3150 = vrot.slane %v3107, 6
      %v3151 = vrot.slane %v3108, 6
      %v3152 = vsel %vm844, %v3150, %v3151
      %v3153 = vrot.slane %v3109, 6
      %v3154 = vrot.slane %v3110, 6
      %v3155 = vsel %vm844, %v3153, %v3154
      %v3174 = vadd.f32 %v3071, %v3131
      %v3175 = vadd.f32 %v3072, %v3130
      %v3176 = vadd.f32 %v3073, %v3134
      %v3177 = vadd.f32 %v3074, %v3133
      %v3178 = vadd.f32 %v3075, %v3137
      %v3179 = vadd.f32 %v3076, %v3136
      %v3180 = vadd.f32 %v3077, %v3140
      %v3181 = vadd.f32 %v3078, %v3139
      %v3182 = vadd.f32 %v3079, %v3143
      %v3183 = vadd.f32 %v3080, %v3142
      %v3184 = vadd.f32 %v3081, %v3146
      %v3185 = vadd.f32 %v3082, %v3145
      %v3186 = vadd.f32 %v3083, %v3149
      %v3187 = vadd.f32 %v3084, %v3148
      %v3188 = vadd.f32 %v3085, %v3152
      %v3189 = vadd.f32 %v3086, %v3151
      %v3190 = vadd.f32 %v3087, %v3155
      %v3191 = vadd.f32 %v3088, %v3154
      %v3192 = vlaneseq
      %v3193 = vshrl.u32 %v3192, 7
      %v3194 = vsub.s32 7, %v3193
      %v3195 = vrot.slane %v239, %v3194
      %v3196 = vmul.f32 %v210, %v3195
      %v3197 = vmul.f32 %v211, %v3195
      %v3198 = vmul.f32 %v212, %v3195
      %v3199 = vmul.f32 %v213, %v3195
      %v3200 = vmul.f32 %v214, %v3195
      %v3201 = vmul.f32 %v215, %v3195
      %v3202 = vmul.f32 %v216, %v3195
      %v3203 = vmul.f32 %v217, %v3195
      %v3204 = vmul.f32 %v218, %v3195
      %v3205 = vmul.f32 %v219, %v3195
      %v3206 = vmul.f32 %v220, %v3195
      %v3207 = vmul.f32 %v221, %v3195
      %v3208 = vmul.f32 %v222, %v3195
      %v3209 = vmul.f32 %v223, %v3195
      %v3210 = vmul.f32 %v224, %v3195
      %v3211 = vmul.f32 %v225, %v3195
      %v3212 = vmul.f32 %v226, %v3195
      %v3213 = vmul.f32 %v227, %v3195
      %v3232 = vrot.slane %v3196, 7
      %v3233 = vrot.slane %v3197, 7
      %v3234 = vsel %vm948, %v3232, %v3233
      %v3235 = vrot.slane %v3198, 7
      %v3236 = vrot.slane %v3199, 7
      %v3237 = vsel %vm948, %v3235, %v3236
      %v3238 = vrot.slane %v3200, 7
      %v3239 = vrot.slane %v3201, 7
      %v3240 = vsel %vm948, %v3238, %v3239
      %v3241 = vrot.slane %v3202, 7
      %v3242 = vrot.slane %v3203, 7
      %v3243 = vsel %vm948, %v3241, %v3242
      %v3244 = vrot.slane %v3204, 7
      %v3245 = vrot.slane %v3205, 7
      %v3246 = vsel %vm948, %v3244, %v3245
      %v3247 = vrot.slane %v3206, 7
      %v3248 = vrot.slane %v3207, 7
      %v3249 = vsel %vm948, %v3247, %v3248
      %v3250 = vrot.slane %v3208, 7
      %v3251 = vrot.slane %v3209, 7
      %v3252 = vsel %vm948, %v3250, %v3251
      %v3253 = vrot.slane %v3210, 7
      %v3254 = vrot.slane %v3211, 7
      %v3255 = vsel %vm948, %v3253, %v3254
      %v3256 = vrot.slane %v3212, 7
      %v3257 = vrot.slane %v3213, 7
      %v3258 = vsel %vm948, %v3256, %v3257
      %v3277 = vadd.f32 %v3174, %v3234
      %v3278 = vadd.f32 %v3175, %v3233
      %v3279 = vadd.f32 %v3176, %v3237
      %v3280 = vadd.f32 %v3177, %v3236
      %v3281 = vadd.f32 %v3178, %v3240
      %v3282 = vadd.f32 %v3179, %v3239
      %v3283 = vadd.f32 %v3180, %v3243
      %v3284 = vadd.f32 %v3181, %v3242
      %v3285 = vadd.f32 %v3182, %v3246
      %v3286 = vadd.f32 %v3183, %v3245
      %v3287 = vadd.f32 %v3184, %v3249
      %v3288 = vadd.f32 %v3185, %v3248
      %v3289 = vadd.f32 %v3186, %v3252
      %v3290 = vadd.f32 %v3187, %v3251
      %v3291 = vadd.f32 %v3188, %v3255
      %v3292 = vadd.f32 %v3189, %v3254
      %v3293 = vadd.f32 %v3190, %v3258
      %v3294 = vadd.f32 %v3191, %v3257
      %v3295 = vlaneseq
      %v3296 = vshrl.u32 %v3295, 7
      %v3297 = vsub.s32 0, %v3296
      %v3298 = vrot.slane %v240, %v3297
      %v3299 = vmul.f32 %v212, %v3298
      %v3300 = vmul.f32 %v213, %v3298
      %v3301 = vmul.f32 %v214, %v3298
      %v3302 = vmul.f32 %v215, %v3298
      %v3303 = vmul.f32 %v216, %v3298
      %v3304 = vmul.f32 %v217, %v3298
      %v3305 = vmul.f32 %v218, %v3298
      %v3306 = vmul.f32 %v219, %v3298
      %v3307 = vmul.f32 %v220, %v3298
      %v3308 = vmul.f32 %v221, %v3298
      %v3309 = vmul.f32 %v222, %v3298
      %v3310 = vmul.f32 %v223, %v3298
      %v3311 = vmul.f32 %v224, %v3298
      %v3312 = vmul.f32 %v225, %v3298
      %v3313 = vmul.f32 %v226, %v3298
      %v3314 = vmul.f32 %v227, %v3298
      %v3315 = vmul.f32 %v228, %v3298
      %v3316 = vmul.f32 %v229, %v3298
      %v3317 = vadd.f32 %v3277, %v3299
      %v3318 = vadd.f32 %v3278, %v3300
      %v3319 = vadd.f32 %v3279, %v3301
      %v3320 = vadd.f32 %v3280, %v3302
      %v3321 = vadd.f32 %v3281, %v3303
      %v3322 = vadd.f32 %v3282, %v3304
      %v3323 = vadd.f32 %v3283, %v3305
      %v3324 = vadd.f32 %v3284, %v3306
      %v3325 = vadd.f32 %v3285, %v3307
      %v3326 = vadd.f32 %v3286, %v3308
      %v3327 = vadd.f32 %v3287, %v3309
      %v3328 = vadd.f32 %v3288, %v3310
      %v3329 = vadd.f32 %v3289, %v3311
      %v3330 = vadd.f32 %v3290, %v3312
      %v3331 = vadd.f32 %v3291, %v3313
      %v3332 = vadd.f32 %v3292, %v3314
      %v3333 = vadd.f32 %v3293, %v3315
      %v3334 = vadd.f32 %v3294, %v3316
      %v3335 = vlaneseq
      %v3336 = vshrl.u32 %v3335, 7
      %v3337 = vsub.s32 1, %v3336
      %v3338 = vrot.slane %v240, %v3337
      %v3339 = vmul.f32 %v212, %v3338
      %v3340 = vmul.f32 %v213, %v3338
      %v3341 = vmul.f32 %v214, %v3338
      %v3342 = vmul.f32 %v215, %v3338
      %v3343 = vmul.f32 %v216, %v3338
      %v3344 = vmul.f32 %v217, %v3338
      %v3345 = vmul.f32 %v218, %v3338
      %v3346 = vmul.f32 %v219, %v3338
      %v3347 = vmul.f32 %v220, %v3338
      %v3348 = vmul.f32 %v221, %v3338
      %v3349 = vmul.f32 %v222, %v3338
      %v3350 = vmul.f32 %v223, %v3338
      %v3351 = vmul.f32 %v224, %v3338
      %v3352 = vmul.f32 %v225, %v3338
      %v3353 = vmul.f32 %v226, %v3338
      %v3354 = vmul.f32 %v227, %v3338
      %v3355 = vmul.f32 %v228, %v3338
      %v3356 = vmul.f32 %v229, %v3338
      %v3375 = vrot.slane %v3339, 1
      %v3376 = vrot.slane %v3340, 1
      %v3377 = vsel %vm324, %v3375, %v3376
      %v3378 = vrot.slane %v3341, 1
      %v3379 = vrot.slane %v3342, 1
      %v3380 = vsel %vm324, %v3378, %v3379
      %v3381 = vrot.slane %v3343, 1
      %v3382 = vrot.slane %v3344, 1
      %v3383 = vsel %vm324, %v3381, %v3382
      %v3384 = vrot.slane %v3345, 1
      %v3385 = vrot.slane %v3346, 1
      %v3386 = vsel %vm324, %v3384, %v3385
      %v3387 = vrot.slane %v3347, 1
      %v3388 = vrot.slane %v3348, 1
      %v3389 = vsel %vm324, %v3387, %v3388
      %v3390 = vrot.slane %v3349, 1
      %v3391 = vrot.slane %v3350, 1
      %v3392 = vsel %vm324, %v3390, %v3391
      %v3393 = vrot.slane %v3351, 1
      %v3394 = vrot.slane %v3352, 1
      %v3395 = vsel %vm324, %v3393, %v3394
      %v3396 = vrot.slane %v3353, 1
      %v3397 = vrot.slane %v3354, 1
      %v3398 = vsel %vm324, %v3396, %v3397
      %v3399 = vrot.slane %v3355, 1
      %v3400 = vrot.slane %v3356, 1
      %v3401 = vsel %vm324, %v3399, %v3400
      %v3420 = vadd.f32 %v3317, %v3377
      %v3421 = vadd.f32 %v3318, %v3376
      %v3422 = vadd.f32 %v3319, %v3380
      %v3423 = vadd.f32 %v3320, %v3379
      %v3424 = vadd.f32 %v3321, %v3383
      %v3425 = vadd.f32 %v3322, %v3382
      %v3426 = vadd.f32 %v3323, %v3386
      %v3427 = vadd.f32 %v3324, %v3385
      %v3428 = vadd.f32 %v3325, %v3389
      %v3429 = vadd.f32 %v3326, %v3388
      %v3430 = vadd.f32 %v3327, %v3392
      %v3431 = vadd.f32 %v3328, %v3391
      %v3432 = vadd.f32 %v3329, %v3395
      %v3433 = vadd.f32 %v3330, %v3394
      %v3434 = vadd.f32 %v3331, %v3398
      %v3435 = vadd.f32 %v3332, %v3397
      %v3436 = vadd.f32 %v3333, %v3401
      %v3437 = vadd.f32 %v3334, %v3400
      %v3438 = vlaneseq
      %v3439 = vshrl.u32 %v3438, 7
      %v3440 = vsub.s32 2, %v3439
      %v3441 = vrot.slane %v240, %v3440
      %v3442 = vmul.f32 %v212, %v3441
      %v3443 = vmul.f32 %v213, %v3441
      %v3444 = vmul.f32 %v214, %v3441
      %v3445 = vmul.f32 %v215, %v3441
      %v3446 = vmul.f32 %v216, %v3441
      %v3447 = vmul.f32 %v217, %v3441
      %v3448 = vmul.f32 %v218, %v3441
      %v3449 = vmul.f32 %v219, %v3441
      %v3450 = vmul.f32 %v220, %v3441
      %v3451 = vmul.f32 %v221, %v3441
      %v3452 = vmul.f32 %v222, %v3441
      %v3453 = vmul.f32 %v223, %v3441
      %v3454 = vmul.f32 %v224, %v3441
      %v3455 = vmul.f32 %v225, %v3441
      %v3456 = vmul.f32 %v226, %v3441
      %v3457 = vmul.f32 %v227, %v3441
      %v3458 = vmul.f32 %v228, %v3441
      %v3459 = vmul.f32 %v229, %v3441
      %v3478 = vrot.slane %v3442, 2
      %v3479 = vrot.slane %v3443, 2
      %v3480 = vsel %vm428, %v3478, %v3479
      %v3481 = vrot.slane %v3444, 2
      %v3482 = vrot.slane %v3445, 2
      %v3483 = vsel %vm428, %v3481, %v3482
      %v3484 = vrot.slane %v3446, 2
      %v3485 = vrot.slane %v3447, 2
      %v3486 = vsel %vm428, %v3484, %v3485
      %v3487 = vrot.slane %v3448, 2
      %v3488 = vrot.slane %v3449, 2
      %v3489 = vsel %vm428, %v3487, %v3488
      %v3490 = vrot.slane %v3450, 2
      %v3491 = vrot.slane %v3451, 2
      %v3492 = vsel %vm428, %v3490, %v3491
      %v3493 = vrot.slane %v3452, 2
      %v3494 = vrot.slane %v3453, 2
      %v3495 = vsel %vm428, %v3493, %v3494
      %v3496 = vrot.slane %v3454, 2
      %v3497 = vrot.slane %v3455, 2
      %v3498 = vsel %vm428, %v3496, %v3497
      %v3499 = vrot.slane %v3456, 2
      %v3500 = vrot.slane %v3457, 2
      %v3501 = vsel %vm428, %v3499, %v3500
      %v3502 = vrot.slane %v3458, 2
      %v3503 = vrot.slane %v3459, 2
      %v3504 = vsel %vm428, %v3502, %v3503
      %v3523 = vadd.f32 %v3420, %v3480
      %v3524 = vadd.f32 %v3421, %v3479
      %v3525 = vadd.f32 %v3422, %v3483
      %v3526 = vadd.f32 %v3423, %v3482
      %v3527 = vadd.f32 %v3424, %v3486
      %v3528 = vadd.f32 %v3425, %v3485
      %v3529 = vadd.f32 %v3426, %v3489
      %v3530 = vadd.f32 %v3427, %v3488
      %v3531 = vadd.f32 %v3428, %v3492
      %v3532 = vadd.f32 %v3429, %v3491
      %v3533 = vadd.f32 %v3430, %v3495
      %v3534 = vadd.f32 %v3431, %v3494
      %v3535 = vadd.f32 %v3432, %v3498
      %v3536 = vadd.f32 %v3433, %v3497
      %v3537 = vadd.f32 %v3434, %v3501
      %v3538 = vadd.f32 %v3435, %v3500
      %v3539 = vadd.f32 %v3436, %v3504
      %v3540 = vadd.f32 %v3437, %v3503
      %v3541 = vlaneseq
      %v3542 = vshrl.u32 %v3541, 7
      %v3543 = vsub.s32 3, %v3542
      %v3544 = vrot.slane %v240, %v3543
      %v3545 = vmul.f32 %v212, %v3544
      %v3546 = vmul.f32 %v213, %v3544
      %v3547 = vmul.f32 %v214, %v3544
      %v3548 = vmul.f32 %v215, %v3544
      %v3549 = vmul.f32 %v216, %v3544
      %v3550 = vmul.f32 %v217, %v3544
      %v3551 = vmul.f32 %v218, %v3544
      %v3552 = vmul.f32 %v219, %v3544
      %v3553 = vmul.f32 %v220, %v3544
      %v3554 = vmul.f32 %v221, %v3544
      %v3555 = vmul.f32 %v222, %v3544
      %v3556 = vmul.f32 %v223, %v3544
      %v3557 = vmul.f32 %v224, %v3544
      %v3558 = vmul.f32 %v225, %v3544
      %v3559 = vmul.f32 %v226, %v3544
      %v3560 = vmul.f32 %v227, %v3544
      %v3561 = vmul.f32 %v228, %v3544
      %v3562 = vmul.f32 %v229, %v3544
      %v3581 = vrot.slane %v3545, 3
      %v3582 = vrot.slane %v3546, 3
      %v3583 = vsel %vm532, %v3581, %v3582
      %v3584 = vrot.slane %v3547, 3
      %v3585 = vrot.slane %v3548, 3
      %v3586 = vsel %vm532, %v3584, %v3585
      %v3587 = vrot.slane %v3549, 3
      %v3588 = vrot.slane %v3550, 3
      %v3589 = vsel %vm532, %v3587, %v3588
      %v3590 = vrot.slane %v3551, 3
      %v3591 = vrot.slane %v3552, 3
      %v3592 = vsel %vm532, %v3590, %v3591
      %v3593 = vrot.slane %v3553, 3
      %v3594 = vrot.slane %v3554, 3
      %v3595 = vsel %vm532, %v3593, %v3594
      %v3596 = vrot.slane %v3555, 3
      %v3597 = vrot.slane %v3556, 3
      %v3598 = vsel %vm532, %v3596, %v3597
      %v3599 = vrot.slane %v3557, 3
      %v3600 = vrot.slane %v3558, 3
      %v3601 = vsel %vm532, %v3599, %v3600
      %v3602 = vrot.slane %v3559, 3
      %v3603 = vrot.slane %v3560, 3
      %v3604 = vsel %vm532, %v3602, %v3603
      %v3605 = vrot.slane %v3561, 3
      %v3606 = vrot.slane %v3562, 3
      %v3607 = vsel %vm532, %v3605, %v3606
      %v3626 = vadd.f32 %v3523, %v3583
      %v3627 = vadd.f32 %v3524, %v3582
      %v3628 = vadd.f32 %v3525, %v3586
      %v3629 = vadd.f32 %v3526, %v3585
      %v3630 = vadd.f32 %v3527, %v3589
      %v3631 = vadd.f32 %v3528, %v3588
      %v3632 = vadd.f32 %v3529, %v3592
      %v3633 = vadd.f32 %v3530, %v3591
      %v3634 = vadd.f32 %v3531, %v3595
      %v3635 = vadd.f32 %v3532, %v3594
      %v3636 = vadd.f32 %v3533, %v3598
      %v3637 = vadd.f32 %v3534, %v3597
      %v3638 = vadd.f32 %v3535, %v3601
      %v3639 = vadd.f32 %v3536, %v3600
      %v3640 = vadd.f32 %v3537, %v3604
      %v3641 = vadd.f32 %v3538, %v3603
      %v3642 = vadd.f32 %v3539, %v3607
      %v3643 = vadd.f32 %v3540, %v3606
      %v3644 = vlaneseq
      %v3645 = vshrl.u32 %v3644, 7
      %v3646 = vsub.s32 4, %v3645
      %v3647 = vrot.slane %v240, %v3646
      %v3648 = vmul.f32 %v212, %v3647
      %v3649 = vmul.f32 %v213, %v3647
      %v3650 = vmul.f32 %v214, %v3647
      %v3651 = vmul.f32 %v215, %v3647
      %v3652 = vmul.f32 %v216, %v3647
      %v3653 = vmul.f32 %v217, %v3647
      %v3654 = vmul.f32 %v218, %v3647
      %v3655 = vmul.f32 %v219, %v3647
      %v3656 = vmul.f32 %v220, %v3647
      %v3657 = vmul.f32 %v221, %v3647
      %v3658 = vmul.f32 %v222, %v3647
      %v3659 = vmul.f32 %v223, %v3647
      %v3660 = vmul.f32 %v224, %v3647
      %v3661 = vmul.f32 %v225, %v3647
      %v3662 = vmul.f32 %v226, %v3647
      %v3663 = vmul.f32 %v227, %v3647
      %v3664 = vmul.f32 %v228, %v3647
      %v3665 = vmul.f32 %v229, %v3647
      %v3684 = vrot.slane %v3648, 4
      %v3685 = vrot.slane %v3649, 4
      %v3686 = vsel %vm636, %v3684, %v3685
      %v3687 = vrot.slane %v3650, 4
      %v3688 = vrot.slane %v3651, 4
      %v3689 = vsel %vm636, %v3687, %v3688
      %v3690 = vrot.slane %v3652, 4
      %v3691 = vrot.slane %v3653, 4
      %v3692 = vsel %vm636, %v3690, %v3691
      %v3693 = vrot.slane %v3654, 4
      %v3694 = vrot.slane %v3655, 4
      %v3695 = vsel %vm636, %v3693, %v3694
      %v3696 = vrot.slane %v3656, 4
      %v3697 = vrot.slane %v3657, 4
      %v3698 = vsel %vm636, %v3696, %v3697
      %v3699 = vrot.slane %v3658, 4
      %v3700 = vrot.slane %v3659, 4
      %v3701 = vsel %vm636, %v3699, %v3700
      %v3702 = vrot.slane %v3660, 4
      %v3703 = vrot.slane %v3661, 4
      %v3704 = vsel %vm636, %v3702, %v3703
      %v3705 = vrot.slane %v3662, 4
      %v3706 = vrot.slane %v3663, 4
      %v3707 = vsel %vm636, %v3705, %v3706
      %v3708 = vrot.slane %v3664, 4
      %v3709 = vrot.slane %v3665, 4
      %v3710 = vsel %vm636, %v3708, %v3709
      %v3729 = vadd.f32 %v3626, %v3686
      %v3730 = vadd.f32 %v3627, %v3685
      %v3731 = vadd.f32 %v3628, %v3689
      %v3732 = vadd.f32 %v3629, %v3688
      %v3733 = vadd.f32 %v3630, %v3692
      %v3734 = vadd.f32 %v3631, %v3691
      %v3735 = vadd.f32 %v3632, %v3695
      %v3736 = vadd.f32 %v3633, %v3694
      %v3737 = vadd.f32 %v3634, %v3698
      %v3738 = vadd.f32 %v3635, %v3697
      %v3739 = vadd.f32 %v3636, %v3701
      %v3740 = vadd.f32 %v3637, %v3700
      %v3741 = vadd.f32 %v3638, %v3704
      %v3742 = vadd.f32 %v3639, %v3703
      %v3743 = vadd.f32 %v3640, %v3707
      %v3744 = vadd.f32 %v3641, %v3706
      %v3745 = vadd.f32 %v3642, %v3710
      %v3746 = vadd.f32 %v3643, %v3709
      %v3747 = vlaneseq
      %v3748 = vshrl.u32 %v3747, 7
      %v3749 = vsub.s32 5, %v3748
      %v3750 = vrot.slane %v240, %v3749
      %v3751 = vmul.f32 %v212, %v3750
      %v3752 = vmul.f32 %v213, %v3750
      %v3753 = vmul.f32 %v214, %v3750
      %v3754 = vmul.f32 %v215, %v3750
      %v3755 = vmul.f32 %v216, %v3750
      %v3756 = vmul.f32 %v217, %v3750
      %v3757 = vmul.f32 %v218, %v3750
      %v3758 = vmul.f32 %v219, %v3750
      %v3759 = vmul.f32 %v220, %v3750
      %v3760 = vmul.f32 %v221, %v3750
      %v3761 = vmul.f32 %v222, %v3750
      %v3762 = vmul.f32 %v223, %v3750
      %v3763 = vmul.f32 %v224, %v3750
      %v3764 = vmul.f32 %v225, %v3750
      %v3765 = vmul.f32 %v226, %v3750
      %v3766 = vmul.f32 %v227, %v3750
      %v3767 = vmul.f32 %v228, %v3750
      %v3768 = vmul.f32 %v229, %v3750
      %v3787 = vrot.slane %v3751, 5
      %v3788 = vrot.slane %v3752, 5
      %v3789 = vsel %vm740, %v3787, %v3788
      %v3790 = vrot.slane %v3753, 5
      %v3791 = vrot.slane %v3754, 5
      %v3792 = vsel %vm740, %v3790, %v3791
      %v3793 = vrot.slane %v3755, 5
      %v3794 = vrot.slane %v3756, 5
      %v3795 = vsel %vm740, %v3793, %v3794
      %v3796 = vrot.slane %v3757, 5
      %v3797 = vrot.slane %v3758, 5
      %v3798 = vsel %vm740, %v3796, %v3797
      %v3799 = vrot.slane %v3759, 5
      %v3800 = vrot.slane %v3760, 5
      %v3801 = vsel %vm740, %v3799, %v3800
      %v3802 = vrot.slane %v3761, 5
      %v3803 = vrot.slane %v3762, 5
      %v3804 = vsel %vm740, %v3802, %v3803
      %v3805 = vrot.slane %v3763, 5
      %v3806 = vrot.slane %v3764, 5
      %v3807 = vsel %vm740, %v3805, %v3806
      %v3808 = vrot.slane %v3765, 5
      %v3809 = vrot.slane %v3766, 5
      %v3810 = vsel %vm740, %v3808, %v3809
      %v3811 = vrot.slane %v3767, 5
      %v3812 = vrot.slane %v3768, 5
      %v3813 = vsel %vm740, %v3811, %v3812
      %v3832 = vadd.f32 %v3729, %v3789
      %v3833 = vadd.f32 %v3730, %v3788
      %v3834 = vadd.f32 %v3731, %v3792
      %v3835 = vadd.f32 %v3732, %v3791
      %v3836 = vadd.f32 %v3733, %v3795
      %v3837 = vadd.f32 %v3734, %v3794
      %v3838 = vadd.f32 %v3735, %v3798
      %v3839 = vadd.f32 %v3736, %v3797
      %v3840 = vadd.f32 %v3737, %v3801
      %v3841 = vadd.f32 %v3738, %v3800
      %v3842 = vadd.f32 %v3739, %v3804
      %v3843 = vadd.f32 %v3740, %v3803
      %v3844 = vadd.f32 %v3741, %v3807
      %v3845 = vadd.f32 %v3742, %v3806
      %v3846 = vadd.f32 %v3743, %v3810
      %v3847 = vadd.f32 %v3744, %v3809
      %v3848 = vadd.f32 %v3745, %v3813
      %v3849 = vadd.f32 %v3746, %v3812
      %v3850 = vlaneseq
      %v3851 = vshrl.u32 %v3850, 7
      %v3852 = vsub.s32 6, %v3851
      %v3853 = vrot.slane %v240, %v3852
      %v3854 = vmul.f32 %v212, %v3853
      %v3855 = vmul.f32 %v213, %v3853
      %v3856 = vmul.f32 %v214, %v3853
      %v3857 = vmul.f32 %v215, %v3853
      %v3858 = vmul.f32 %v216, %v3853
      %v3859 = vmul.f32 %v217, %v3853
      %v3860 = vmul.f32 %v218, %v3853
      %v3861 = vmul.f32 %v219, %v3853
      %v3862 = vmul.f32 %v220, %v3853
      %v3863 = vmul.f32 %v221, %v3853
      %v3864 = vmul.f32 %v222, %v3853
      %v3865 = vmul.f32 %v223, %v3853
      %v3866 = vmul.f32 %v224, %v3853
      %v3867 = vmul.f32 %v225, %v3853
      %v3868 = vmul.f32 %v226, %v3853
      %v3869 = vmul.f32 %v227, %v3853
      %v3870 = vmul.f32 %v228, %v3853
      %v3871 = vmul.f32 %v229, %v3853
      %v3890 = vrot.slane %v3854, 6
      %v3891 = vrot.slane %v3855, 6
      %v3892 = vsel %vm844, %v3890, %v3891
      %v3893 = vrot.slane %v3856, 6
      %v3894 = vrot.slane %v3857, 6
      %v3895 = vsel %vm844, %v3893, %v3894
      %v3896 = vrot.slane %v3858, 6
      %v3897 = vrot.slane %v3859, 6
      %v3898 = vsel %vm844, %v3896, %v3897
      %v3899 = vrot.slane %v3860, 6
      %v3900 = vrot.slane %v3861, 6
      %v3901 = vsel %vm844, %v3899, %v3900
      %v3902 = vrot.slane %v3862, 6
      %v3903 = vrot.slane %v3863, 6
      %v3904 = vsel %vm844, %v3902, %v3903
      %v3905 = vrot.slane %v3864, 6
      %v3906 = vrot.slane %v3865, 6
      %v3907 = vsel %vm844, %v3905, %v3906
      %v3908 = vrot.slane %v3866, 6
      %v3909 = vrot.slane %v3867, 6
      %v3910 = vsel %vm844, %v3908, %v3909
      %v3911 = vrot.slane %v3868, 6
      %v3912 = vrot.slane %v3869, 6
      %v3913 = vsel %vm844, %v3911, %v3912
      %v3914 = vrot.slane %v3870, 6
      %v3915 = vrot.slane %v3871, 6
      %v3916 = vsel %vm844, %v3914, %v3915
      %v3935 = vadd.f32 %v3832, %v3892
      %v3936 = vadd.f32 %v3833, %v3891
      %v3937 = vadd.f32 %v3834, %v3895
      %v3938 = vadd.f32 %v3835, %v3894
      %v3939 = vadd.f32 %v3836, %v3898
      %v3940 = vadd.f32 %v3837, %v3897
      %v3941 = vadd.f32 %v3838, %v3901
      %v3942 = vadd.f32 %v3839, %v3900
      %v3943 = vadd.f32 %v3840, %v3904
      %v3944 = vadd.f32 %v3841, %v3903
      %v3945 = vadd.f32 %v3842, %v3907
      %v3946 = vadd.f32 %v3843, %v3906
      %v3947 = vadd.f32 %v3844, %v3910
      %v3948 = vadd.f32 %v3845, %v3909
      %v3949 = vadd.f32 %v3846, %v3913
      %v3950 = vadd.f32 %v3847, %v3912
      %v3951 = vadd.f32 %v3848, %v3916
      %v3952 = vadd.f32 %v3849, %v3915
      %v3953 = vlaneseq
      %v3954 = vshrl.u32 %v3953, 7
      %v3955 = vsub.s32 7, %v3954
      %v3956 = vrot.slane %v240, %v3955
      %v3957 = vmul.f32 %v212, %v3956
      %v3958 = vmul.f32 %v213, %v3956
      %v3959 = vmul.f32 %v214, %v3956
      %v3960 = vmul.f32 %v215, %v3956
      %v3961 = vmul.f32 %v216, %v3956
      %v3962 = vmul.f32 %v217, %v3956
      %v3963 = vmul.f32 %v218, %v3956
      %v3964 = vmul.f32 %v219, %v3956
      %v3965 = vmul.f32 %v220, %v3956
      %v3966 = vmul.f32 %v221, %v3956
      %v3967 = vmul.f32 %v222, %v3956
      %v3968 = vmul.f32 %v223, %v3956
      %v3969 = vmul.f32 %v224, %v3956
      %v3970 = vmul.f32 %v225, %v3956
      %v3971 = vmul.f32 %v226, %v3956
      %v3972 = vmul.f32 %v227, %v3956
      %v3973 = vmul.f32 %v228, %v3956
      %v3974 = vmul.f32 %v229, %v3956
      %v3993 = vrot.slane %v3957, 7
      %v3994 = vrot.slane %v3958, 7
      %v3995 = vsel %vm948, %v3993, %v3994
      %v3996 = vrot.slane %v3959, 7
      %v3997 = vrot.slane %v3960, 7
      %v3998 = vsel %vm948, %v3996, %v3997
      %v3999 = vrot.slane %v3961, 7
      %v4000 = vrot.slane %v3962, 7
      %v4001 = vsel %vm948, %v3999, %v4000
      %v4002 = vrot.slane %v3963, 7
      %v4003 = vrot.slane %v3964, 7
      %v4004 = vsel %vm948, %v4002, %v4003
      %v4005 = vrot.slane %v3965, 7
      %v4006 = vrot.slane %v3966, 7
      %v4007 = vsel %vm948, %v4005, %v4006
      %v4008 = vrot.slane %v3967, 7
      %v4009 = vrot.slane %v3968, 7
      %v4010 = vsel %vm948, %v4008, %v4009
      %v4011 = vrot.slane %v3969, 7
      %v4012 = vrot.slane %v3970, 7
      %v4013 = vsel %vm948, %v4011, %v4012
      %v4014 = vrot.slane %v3971, 7
      %v4015 = vrot.slane %v3972, 7
      %v4016 = vsel %vm948, %v4014, %v4015
      %v4017 = vrot.slane %v3973, 7
      %v4018 = vrot.slane %v3974, 7
      %v4019 = vsel %vm948, %v4017, %v4018
      %v4038 = vadd.f32 %v3935, %v3995
      %v4039 = vadd.f32 %v3936, %v3994
      %v4040 = vadd.f32 %v3937, %v3998
      %v4041 = vadd.f32 %v3938, %v3997
      %v4042 = vadd.f32 %v3939, %v4001
      %v4043 = vadd.f32 %v3940, %v4000
      %v4044 = vadd.f32 %v3941, %v4004
      %v4045 = vadd.f32 %v3942, %v4003
      %v4046 = vadd.f32 %v3943, %v4007
      %v4047 = vadd.f32 %v3944, %v4006
      %v4048 = vadd.f32 %v3945, %v4010
      %v4049 = vadd.f32 %v3946, %v4009
      %v4050 = vadd.f32 %v3947, %v4013
      %v4051 = vadd.f32 %v3948, %v4012
      %v4052 = vadd.f32 %v3949, %v4016
      %v4053 = vadd.f32 %v3950, %v4015
      %v4054 = vadd.f32 %v3951, %v4019
      %v4055 = vadd.f32 %v3952, %v4018
      %v4056 = vlaneseq
      %v4057 = vshrl.u32 %v4056, 7
      %v4058 = vsub.s32 0, %v4057
      %v4059 = vrot.slane %v241, %v4058
      %v4060 = vmul.f32 %v214, %v4059
      %v4061 = vmul.f32 %v215, %v4059
      %v4062 = vmul.f32 %v216, %v4059
      %v4063 = vmul.f32 %v217, %v4059
      %v4064 = vmul.f32 %v218, %v4059
      %v4065 = vmul.f32 %v219, %v4059
      %v4066 = vmul.f32 %v220, %v4059
      %v4067 = vmul.f32 %v221, %v4059
      %v4068 = vmul.f32 %v222, %v4059
      %v4069 = vmul.f32 %v223, %v4059
      %v4070 = vmul.f32 %v224, %v4059
      %v4071 = vmul.f32 %v225, %v4059
      %v4072 = vmul.f32 %v226, %v4059
      %v4073 = vmul.f32 %v227, %v4059
      %v4074 = vmul.f32 %v228, %v4059
      %v4075 = vmul.f32 %v229, %v4059
      %v4076 = vmul.f32 %v230, %v4059
      %v4077 = vmul.f32 %v231, %v4059
      %v4078 = vadd.f32 %v4038, %v4060
      %v4079 = vadd.f32 %v4039, %v4061
      %v4080 = vadd.f32 %v4040, %v4062
      %v4081 = vadd.f32 %v4041, %v4063
      %v4082 = vadd.f32 %v4042, %v4064
      %v4083 = vadd.f32 %v4043, %v4065
      %v4084 = vadd.f32 %v4044, %v4066
      %v4085 = vadd.f32 %v4045, %v4067
      %v4086 = vadd.f32 %v4046, %v4068
      %v4087 = vadd.f32 %v4047, %v4069
      %v4088 = vadd.f32 %v4048, %v4070
      %v4089 = vadd.f32 %v4049, %v4071
      %v4090 = vadd.f32 %v4050, %v4072
      %v4091 = vadd.f32 %v4051, %v4073
      %v4092 = vadd.f32 %v4052, %v4074
      %v4093 = vadd.f32 %v4053, %v4075
      %v4094 = vadd.f32 %v4054, %v4076
      %v4095 = vadd.f32 %v4055, %v4077
      %v4096 = vlaneseq
      %v4097 = vshrl.u32 %v4096, 7
      %v4098 = vsub.s32 1, %v4097
      %v4099 = vrot.slane %v241, %v4098
      %v4100 = vmul.f32 %v214, %v4099
      %v4101 = vmul.f32 %v215, %v4099
      %v4102 = vmul.f32 %v216, %v4099
      %v4103 = vmul.f32 %v217, %v4099
      %v4104 = vmul.f32 %v218, %v4099
      %v4105 = vmul.f32 %v219, %v4099
      %v4106 = vmul.f32 %v220, %v4099
      %v4107 = vmul.f32 %v221, %v4099
      %v4108 = vmul.f32 %v222, %v4099
      %v4109 = vmul.f32 %v223, %v4099
      %v4110 = vmul.f32 %v224, %v4099
      %v4111 = vmul.f32 %v225, %v4099
      %v4112 = vmul.f32 %v226, %v4099
      %v4113 = vmul.f32 %v227, %v4099
      %v4114 = vmul.f32 %v228, %v4099
      %v4115 = vmul.f32 %v229, %v4099
      %v4116 = vmul.f32 %v230, %v4099
      %v4117 = vmul.f32 %v231, %v4099
      %v4136 = vrot.slane %v4100, 1
      %v4137 = vrot.slane %v4101, 1
      %v4138 = vsel %vm324, %v4136, %v4137
      %v4139 = vrot.slane %v4102, 1
      %v4140 = vrot.slane %v4103, 1
      %v4141 = vsel %vm324, %v4139, %v4140
      %v4142 = vrot.slane %v4104, 1
      %v4143 = vrot.slane %v4105, 1
      %v4144 = vsel %vm324, %v4142, %v4143
      %v4145 = vrot.slane %v4106, 1
      %v4146 = vrot.slane %v4107, 1
      %v4147 = vsel %vm324, %v4145, %v4146
      %v4148 = vrot.slane %v4108, 1
      %v4149 = vrot.slane %v4109, 1
      %v4150 = vsel %vm324, %v4148, %v4149
      %v4151 = vrot.slane %v4110, 1
      %v4152 = vrot.slane %v4111, 1
      %v4153 = vsel %vm324, %v4151, %v4152
      %v4154 = vrot.slane %v4112, 1
      %v4155 = vrot.slane %v4113, 1
      %v4156 = vsel %vm324, %v4154, %v4155
      %v4157 = vrot.slane %v4114, 1
      %v4158 = vrot.slane %v4115, 1
      %v4159 = vsel %vm324, %v4157, %v4158
      %v4160 = vrot.slane %v4116, 1
      %v4161 = vrot.slane %v4117, 1
      %v4162 = vsel %vm324, %v4160, %v4161
      %v4181 = vadd.f32 %v4078, %v4138
      %v4182 = vadd.f32 %v4079, %v4137
      %v4183 = vadd.f32 %v4080, %v4141
      %v4184 = vadd.f32 %v4081, %v4140
      %v4185 = vadd.f32 %v4082, %v4144
      %v4186 = vadd.f32 %v4083, %v4143
      %v4187 = vadd.f32 %v4084, %v4147
      %v4188 = vadd.f32 %v4085, %v4146
      %v4189 = vadd.f32 %v4086, %v4150
      %v4190 = vadd.f32 %v4087, %v4149
      %v4191 = vadd.f32 %v4088, %v4153
      %v4192 = vadd.f32 %v4089, %v4152
      %v4193 = vadd.f32 %v4090, %v4156
      %v4194 = vadd.f32 %v4091, %v4155
      %v4195 = vadd.f32 %v4092, %v4159
      %v4196 = vadd.f32 %v4093, %v4158
      %v4197 = vadd.f32 %v4094, %v4162
      %v4198 = vadd.f32 %v4095, %v4161
      %v4199 = vlaneseq
      %v4200 = vshrl.u32 %v4199, 7
      %v4201 = vsub.s32 2, %v4200
      %v4202 = vrot.slane %v241, %v4201
      %v4203 = vmul.f32 %v214, %v4202
      %v4204 = vmul.f32 %v215, %v4202
      %v4205 = vmul.f32 %v216, %v4202
      %v4206 = vmul.f32 %v217, %v4202
      %v4207 = vmul.f32 %v218, %v4202
      %v4208 = vmul.f32 %v219, %v4202
      %v4209 = vmul.f32 %v220, %v4202
      %v4210 = vmul.f32 %v221, %v4202
      %v4211 = vmul.f32 %v222, %v4202
      %v4212 = vmul.f32 %v223, %v4202
      %v4213 = vmul.f32 %v224, %v4202
      %v4214 = vmul.f32 %v225, %v4202
      %v4215 = vmul.f32 %v226, %v4202
      %v4216 = vmul.f32 %v227, %v4202
      %v4217 = vmul.f32 %v228, %v4202
      %v4218 = vmul.f32 %v229, %v4202
      %v4219 = vmul.f32 %v230, %v4202
      %v4220 = vmul.f32 %v231, %v4202
      %v4239 = vrot.slane %v4203, 2
      %v4240 = vrot.slane %v4204, 2
      %v4241 = vsel %vm428, %v4239, %v4240
      %v4242 = vrot.slane %v4205, 2
      %v4243 = vrot.slane %v4206, 2
      %v4244 = vsel %vm428, %v4242, %v4243
      %v4245 = vrot.slane %v4207, 2
      %v4246 = vrot.slane %v4208, 2
      %v4247 = vsel %vm428, %v4245, %v4246
      %v4248 = vrot.slane %v4209, 2
      %v4249 = vrot.slane %v4210, 2
      %v4250 = vsel %vm428, %v4248, %v4249
      %v4251 = vrot.slane %v4211, 2
      %v4252 = vrot.slane %v4212, 2
      %v4253 = vsel %vm428, %v4251, %v4252
      %v4254 = vrot.slane %v4213, 2
      %v4255 = vrot.slane %v4214, 2
      %v4256 = vsel %vm428, %v4254, %v4255
      %v4257 = vrot.slane %v4215, 2
      %v4258 = vrot.slane %v4216, 2
      %v4259 = vsel %vm428, %v4257, %v4258
      %v4260 = vrot.slane %v4217, 2
      %v4261 = vrot.slane %v4218, 2
      %v4262 = vsel %vm428, %v4260, %v4261
      %v4263 = vrot.slane %v4219, 2
      %v4264 = vrot.slane %v4220, 2
      %v4265 = vsel %vm428, %v4263, %v4264
      %v4284 = vadd.f32 %v4181, %v4241
      %v4285 = vadd.f32 %v4182, %v4240
      %v4286 = vadd.f32 %v4183, %v4244
      %v4287 = vadd.f32 %v4184, %v4243
      %v4288 = vadd.f32 %v4185, %v4247
      %v4289 = vadd.f32 %v4186, %v4246
      %v4290 = vadd.f32 %v4187, %v4250
      %v4291 = vadd.f32 %v4188, %v4249
      %v4292 = vadd.f32 %v4189, %v4253
      %v4293 = vadd.f32 %v4190, %v4252
      %v4294 = vadd.f32 %v4191, %v4256
      %v4295 = vadd.f32 %v4192, %v4255
      %v4296 = vadd.f32 %v4193, %v4259
      %v4297 = vadd.f32 %v4194, %v4258
      %v4298 = vadd.f32 %v4195, %v4262
      %v4299 = vadd.f32 %v4196, %v4261
      %v4300 = vadd.f32 %v4197, %v4265
      %v4301 = vadd.f32 %v4198, %v4264
      %v4302 = vlaneseq
      %v4303 = vshrl.u32 %v4302, 7
      %v4304 = vsub.s32 3, %v4303
      %v4305 = vrot.slane %v241, %v4304
      %v4306 = vmul.f32 %v214, %v4305
      %v4307 = vmul.f32 %v215, %v4305
      %v4308 = vmul.f32 %v216, %v4305
      %v4309 = vmul.f32 %v217, %v4305
      %v4310 = vmul.f32 %v218, %v4305
      %v4311 = vmul.f32 %v219, %v4305
      %v4312 = vmul.f32 %v220, %v4305
      %v4313 = vmul.f32 %v221, %v4305
      %v4314 = vmul.f32 %v222, %v4305
      %v4315 = vmul.f32 %v223, %v4305
      %v4316 = vmul.f32 %v224, %v4305
      %v4317 = vmul.f32 %v225, %v4305
      %v4318 = vmul.f32 %v226, %v4305
      %v4319 = vmul.f32 %v227, %v4305
      %v4320 = vmul.f32 %v228, %v4305
      %v4321 = vmul.f32 %v229, %v4305
      %v4322 = vmul.f32 %v230, %v4305
      %v4323 = vmul.f32 %v231, %v4305
      %v4342 = vrot.slane %v4306, 3
      %v4343 = vrot.slane %v4307, 3
      %v4344 = vsel %vm532, %v4342, %v4343
      %v4345 = vrot.slane %v4308, 3
      %v4346 = vrot.slane %v4309, 3
      %v4347 = vsel %vm532, %v4345, %v4346
      %v4348 = vrot.slane %v4310, 3
      %v4349 = vrot.slane %v4311, 3
      %v4350 = vsel %vm532, %v4348, %v4349
      %v4351 = vrot.slane %v4312, 3
      %v4352 = vrot.slane %v4313, 3
      %v4353 = vsel %vm532, %v4351, %v4352
      %v4354 = vrot.slane %v4314, 3
      %v4355 = vrot.slane %v4315, 3
      %v4356 = vsel %vm532, %v4354, %v4355
      %v4357 = vrot.slane %v4316, 3
      %v4358 = vrot.slane %v4317, 3
      %v4359 = vsel %vm532, %v4357, %v4358
      %v4360 = vrot.slane %v4318, 3
      %v4361 = vrot.slane %v4319, 3
      %v4362 = vsel %vm532, %v4360, %v4361
      %v4363 = vrot.slane %v4320, 3
      %v4364 = vrot.slane %v4321, 3
      %v4365 = vsel %vm532, %v4363, %v4364
      %v4366 = vrot.slane %v4322, 3
      %v4367 = vrot.slane %v4323, 3
      %v4368 = vsel %vm532, %v4366, %v4367
      %v4387 = vadd.f32 %v4284, %v4344
      %v4388 = vadd.f32 %v4285, %v4343
      %v4389 = vadd.f32 %v4286, %v4347
      %v4390 = vadd.f32 %v4287, %v4346
      %v4391 = vadd.f32 %v4288, %v4350
      %v4392 = vadd.f32 %v4289, %v4349
      %v4393 = vadd.f32 %v4290, %v4353
      %v4394 = vadd.f32 %v4291, %v4352
      %v4395 = vadd.f32 %v4292, %v4356
      %v4396 = vadd.f32 %v4293, %v4355
      %v4397 = vadd.f32 %v4294, %v4359
      %v4398 = vadd.f32 %v4295, %v4358
      %v4399 = vadd.f32 %v4296, %v4362
      %v4400 = vadd.f32 %v4297, %v4361
      %v4401 = vadd.f32 %v4298, %v4365
      %v4402 = vadd.f32 %v4299, %v4364
      %v4403 = vadd.f32 %v4300, %v4368
      %v4404 = vadd.f32 %v4301, %v4367
      %v4405 = vlaneseq
      %v4406 = vshrl.u32 %v4405, 7
      %v4407 = vsub.s32 4, %v4406
      %v4408 = vrot.slane %v241, %v4407
      %v4409 = vmul.f32 %v214, %v4408
      %v4410 = vmul.f32 %v215, %v4408
      %v4411 = vmul.f32 %v216, %v4408
      %v4412 = vmul.f32 %v217, %v4408
      %v4413 = vmul.f32 %v218, %v4408
      %v4414 = vmul.f32 %v219, %v4408
      %v4415 = vmul.f32 %v220, %v4408
      %v4416 = vmul.f32 %v221, %v4408
      %v4417 = vmul.f32 %v222, %v4408
      %v4418 = vmul.f32 %v223, %v4408
      %v4419 = vmul.f32 %v224, %v4408
      %v4420 = vmul.f32 %v225, %v4408
      %v4421 = vmul.f32 %v226, %v4408
      %v4422 = vmul.f32 %v227, %v4408
      %v4423 = vmul.f32 %v228, %v4408
      %v4424 = vmul.f32 %v229, %v4408
      %v4425 = vmul.f32 %v230, %v4408
      %v4426 = vmul.f32 %v231, %v4408
      %v4445 = vrot.slane %v4409, 4
      %v4446 = vrot.slane %v4410, 4
      %v4447 = vsel %vm636, %v4445, %v4446
      %v4448 = vrot.slane %v4411, 4
      %v4449 = vrot.slane %v4412, 4
      %v4450 = vsel %vm636, %v4448, %v4449
      %v4451 = vrot.slane %v4413, 4
      %v4452 = vrot.slane %v4414, 4
      %v4453 = vsel %vm636, %v4451, %v4452
      %v4454 = vrot.slane %v4415, 4
      %v4455 = vrot.slane %v4416, 4
      %v4456 = vsel %vm636, %v4454, %v4455
      %v4457 = vrot.slane %v4417, 4
      %v4458 = vrot.slane %v4418, 4
      %v4459 = vsel %vm636, %v4457, %v4458
      %v4460 = vrot.slane %v4419, 4
      %v4461 = vrot.slane %v4420, 4
      %v4462 = vsel %vm636, %v4460, %v4461
      %v4463 = vrot.slane %v4421, 4
      %v4464 = vrot.slane %v4422, 4
      %v4465 = vsel %vm636, %v4463, %v4464
      %v4466 = vrot.slane %v4423, 4
      %v4467 = vrot.slane %v4424, 4
      %v4468 = vsel %vm636, %v4466, %v4467
      %v4469 = vrot.slane %v4425, 4
      %v4470 = vrot.slane %v4426, 4
      %v4471 = vsel %vm636, %v4469, %v4470
      %v4490 = vadd.f32 %v4387, %v4447
      %v4491 = vadd.f32 %v4388, %v4446
      %v4492 = vadd.f32 %v4389, %v4450
      %v4493 = vadd.f32 %v4390, %v4449
      %v4494 = vadd.f32 %v4391, %v4453
      %v4495 = vadd.f32 %v4392, %v4452
      %v4496 = vadd.f32 %v4393, %v4456
      %v4497 = vadd.f32 %v4394, %v4455
      %v4498 = vadd.f32 %v4395, %v4459
      %v4499 = vadd.f32 %v4396, %v4458
      %v4500 = vadd.f32 %v4397, %v4462
      %v4501 = vadd.f32 %v4398, %v4461
      %v4502 = vadd.f32 %v4399, %v4465
      %v4503 = vadd.f32 %v4400, %v4464
      %v4504 = vadd.f32 %v4401, %v4468
      %v4505 = vadd.f32 %v4402, %v4467
      %v4506 = vadd.f32 %v4403, %v4471
      %v4507 = vadd.f32 %v4404, %v4470
      %v4508 = vlaneseq
      %v4509 = vshrl.u32 %v4508, 7
      %v4510 = vsub.s32 5, %v4509
      %v4511 = vrot.slane %v241, %v4510
      %v4512 = vmul.f32 %v214, %v4511
      %v4513 = vmul.f32 %v215, %v4511
      %v4514 = vmul.f32 %v216, %v4511
      %v4515 = vmul.f32 %v217, %v4511
      %v4516 = vmul.f32 %v218, %v4511
      %v4517 = vmul.f32 %v219, %v4511
      %v4518 = vmul.f32 %v220, %v4511
      %v4519 = vmul.f32 %v221, %v4511
      %v4520 = vmul.f32 %v222, %v4511
      %v4521 = vmul.f32 %v223, %v4511
      %v4522 = vmul.f32 %v224, %v4511
      %v4523 = vmul.f32 %v225, %v4511
      %v4524 = vmul.f32 %v226, %v4511
      %v4525 = vmul.f32 %v227, %v4511
      %v4526 = vmul.f32 %v228, %v4511
      %v4527 = vmul.f32 %v229, %v4511
      %v4528 = vmul.f32 %v230, %v4511
      %v4529 = vmul.f32 %v231, %v4511
      %v4548 = vrot.slane %v4512, 5
      %v4549 = vrot.slane %v4513, 5
      %v4550 = vsel %vm740, %v4548, %v4549
      %v4551 = vrot.slane %v4514, 5
      %v4552 = vrot.slane %v4515, 5
      %v4553 = vsel %vm740, %v4551, %v4552
      %v4554 = vrot.slane %v4516, 5
      %v4555 = vrot.slane %v4517, 5
      %v4556 = vsel %vm740, %v4554, %v4555
      %v4557 = vrot.slane %v4518, 5
      %v4558 = vrot.slane %v4519, 5
      %v4559 = vsel %vm740, %v4557, %v4558
      %v4560 = vrot.slane %v4520, 5
      %v4561 = vrot.slane %v4521, 5
      %v4562 = vsel %vm740, %v4560, %v4561
      %v4563 = vrot.slane %v4522, 5
      %v4564 = vrot.slane %v4523, 5
      %v4565 = vsel %vm740, %v4563, %v4564
      %v4566 = vrot.slane %v4524, 5
      %v4567 = vrot.slane %v4525, 5
      %v4568 = vsel %vm740, %v4566, %v4567
      %v4569 = vrot.slane %v4526, 5
      %v4570 = vrot.slane %v4527, 5
      %v4571 = vsel %vm740, %v4569, %v4570
      %v4572 = vrot.slane %v4528, 5
      %v4573 = vrot.slane %v4529, 5
      %v4574 = vsel %vm740, %v4572, %v4573
      %v4593 = vadd.f32 %v4490, %v4550
      %v4594 = vadd.f32 %v4491, %v4549
      %v4595 = vadd.f32 %v4492, %v4553
      %v4596 = vadd.f32 %v4493, %v4552
      %v4597 = vadd.f32 %v4494, %v4556
      %v4598 = vadd.f32 %v4495, %v4555
      %v4599 = vadd.f32 %v4496, %v4559
      %v4600 = vadd.f32 %v4497, %v4558
      %v4601 = vadd.f32 %v4498, %v4562
      %v4602 = vadd.f32 %v4499, %v4561
      %v4603 = vadd.f32 %v4500, %v4565
      %v4604 = vadd.f32 %v4501, %v4564
      %v4605 = vadd.f32 %v4502, %v4568
      %v4606 = vadd.f32 %v4503, %v4567
      %v4607 = vadd.f32 %v4504, %v4571
      %v4608 = vadd.f32 %v4505, %v4570
      %v4609 = vadd.f32 %v4506, %v4574
      %v4610 = vadd.f32 %v4507, %v4573
      %v4611 = vlaneseq
      %v4612 = vshrl.u32 %v4611, 7
      %v4613 = vsub.s32 6, %v4612
      %v4614 = vrot.slane %v241, %v4613
      %v4615 = vmul.f32 %v214, %v4614
      %v4616 = vmul.f32 %v215, %v4614
      %v4617 = vmul.f32 %v216, %v4614
      %v4618 = vmul.f32 %v217, %v4614
      %v4619 = vmul.f32 %v218, %v4614
      %v4620 = vmul.f32 %v219, %v4614
      %v4621 = vmul.f32 %v220, %v4614
      %v4622 = vmul.f32 %v221, %v4614
      %v4623 = vmul.f32 %v222, %v4614
      %v4624 = vmul.f32 %v223, %v4614
      %v4625 = vmul.f32 %v224, %v4614
      %v4626 = vmul.f32 %v225, %v4614
      %v4627 = vmul.f32 %v226, %v4614
      %v4628 = vmul.f32 %v227, %v4614
      %v4629 = vmul.f32 %v228, %v4614
      %v4630 = vmul.f32 %v229, %v4614
      %v4631 = vmul.f32 %v230, %v4614
      %v4632 = vmul.f32 %v231, %v4614
      %v4651 = vrot.slane %v4615, 6
      %v4652 = vrot.slane %v4616, 6
      %v4653 = vsel %vm844, %v4651, %v4652
      %v4654 = vrot.slane %v4617, 6
      %v4655 = vrot.slane %v4618, 6
      %v4656 = vsel %vm844, %v4654, %v4655
      %v4657 = vrot.slane %v4619, 6
      %v4658 = vrot.slane %v4620, 6
      %v4659 = vsel %vm844, %v4657, %v4658
      %v4660 = vrot.slane %v4621, 6
      %v4661 = vrot.slane %v4622, 6
      %v4662 = vsel %vm844, %v4660, %v4661
      %v4663 = vrot.slane %v4623, 6
      %v4664 = vrot.slane %v4624, 6
      %v4665 = vsel %vm844, %v4663, %v4664
      %v4666 = vrot.slane %v4625, 6
      %v4667 = vrot.slane %v4626, 6
      %v4668 = vsel %vm844, %v4666, %v4667
      %v4669 = vrot.slane %v4627, 6
      %v4670 = vrot.slane %v4628, 6
      %v4671 = vsel %vm844, %v4669, %v4670
      %v4672 = vrot.slane %v4629, 6
      %v4673 = vrot.slane %v4630, 6
      %v4674 = vsel %vm844, %v4672, %v4673
      %v4675 = vrot.slane %v4631, 6
      %v4676 = vrot.slane %v4632, 6
      %v4677 = vsel %vm844, %v4675, %v4676
      %v4696 = vadd.f32 %v4593, %v4653
      %v4697 = vadd.f32 %v4594, %v4652
      %v4698 = vadd.f32 %v4595, %v4656
      %v4699 = vadd.f32 %v4596, %v4655
      %v4700 = vadd.f32 %v4597, %v4659
      %v4701 = vadd.f32 %v4598, %v4658
      %v4702 = vadd.f32 %v4599, %v4662
      %v4703 = vadd.f32 %v4600, %v4661
      %v4704 = vadd.f32 %v4601, %v4665
      %v4705 = vadd.f32 %v4602, %v4664
      %v4706 = vadd.f32 %v4603, %v4668
      %v4707 = vadd.f32 %v4604, %v4667
      %v4708 = vadd.f32 %v4605, %v4671
      %v4709 = vadd.f32 %v4606, %v4670
      %v4710 = vadd.f32 %v4607, %v4674
      %v4711 = vadd.f32 %v4608, %v4673
      %v4712 = vadd.f32 %v4609, %v4677
      %v4713 = vadd.f32 %v4610, %v4676
      %v4714 = vlaneseq
      %v4715 = vshrl.u32 %v4714, 7
      %v4716 = vsub.s32 7, %v4715
      %v4717 = vrot.slane %v241, %v4716
      %v4718 = vmul.f32 %v214, %v4717
      %v4719 = vmul.f32 %v215, %v4717
      %v4720 = vmul.f32 %v216, %v4717
      %v4721 = vmul.f32 %v217, %v4717
      %v4722 = vmul.f32 %v218, %v4717
      %v4723 = vmul.f32 %v219, %v4717
      %v4724 = vmul.f32 %v220, %v4717
      %v4725 = vmul.f32 %v221, %v4717
      %v4726 = vmul.f32 %v222, %v4717
      %v4727 = vmul.f32 %v223, %v4717
      %v4728 = vmul.f32 %v224, %v4717
      %v4729 = vmul.f32 %v225, %v4717
      %v4730 = vmul.f32 %v226, %v4717
      %v4731 = vmul.f32 %v227, %v4717
      %v4732 = vmul.f32 %v228, %v4717
      %v4733 = vmul.f32 %v229, %v4717
      %v4734 = vmul.f32 %v230, %v4717
      %v4735 = vmul.f32 %v231, %v4717
      %v4754 = vrot.slane %v4718, 7
      %v4755 = vrot.slane %v4719, 7
      %v4756 = vsel %vm948, %v4754, %v4755
      %v4757 = vrot.slane %v4720, 7
      %v4758 = vrot.slane %v4721, 7
      %v4759 = vsel %vm948, %v4757, %v4758
      %v4760 = vrot.slane %v4722, 7
      %v4761 = vrot.slane %v4723, 7
      %v4762 = vsel %vm948, %v4760, %v4761
      %v4763 = vrot.slane %v4724, 7
      %v4764 = vrot.slane %v4725, 7
      %v4765 = vsel %vm948, %v4763, %v4764
      %v4766 = vrot.slane %v4726, 7
      %v4767 = vrot.slane %v4727, 7
      %v4768 = vsel %vm948, %v4766, %v4767
      %v4769 = vrot.slane %v4728, 7
      %v4770 = vrot.slane %v4729, 7
      %v4771 = vsel %vm948, %v4769, %v4770
      %v4772 = vrot.slane %v4730, 7
      %v4773 = vrot.slane %v4731, 7
      %v4774 = vsel %vm948, %v4772, %v4773
      %v4775 = vrot.slane %v4732, 7
      %v4776 = vrot.slane %v4733, 7
      %v4777 = vsel %vm948, %v4775, %v4776
      %v4778 = vrot.slane %v4734, 7
      %v4779 = vrot.slane %v4735, 7
      %v4780 = vsel %vm948, %v4778, %v4779
      %v4799 = vadd.f32 %v4696, %v4756
      %v4800 = vadd.f32 %v4697, %v4755
      %v4801 = vadd.f32 %v4698, %v4759
      %v4802 = vadd.f32 %v4699, %v4758
      %v4803 = vadd.f32 %v4700, %v4762
      %v4804 = vadd.f32 %v4701, %v4761
      %v4805 = vadd.f32 %v4702, %v4765
      %v4806 = vadd.f32 %v4703, %v4764
      %v4807 = vadd.f32 %v4704, %v4768
      %v4808 = vadd.f32 %v4705, %v4767
      %v4809 = vadd.f32 %v4706, %v4771
      %v4810 = vadd.f32 %v4707, %v4770
      %v4811 = vadd.f32 %v4708, %v4774
      %v4812 = vadd.f32 %v4709, %v4773
      %v4813 = vadd.f32 %v4710, %v4777
      %v4814 = vadd.f32 %v4711, %v4776
      %v4815 = vadd.f32 %v4712, %v4780
      %v4816 = vadd.f32 %v4713, %v4779
      %v4817 = vlaneseq
      %v4818 = vshrl.u32 %v4817, 7
      %v4819 = vsub.s32 0, %v4818
      %v4820 = vrot.slane %v242, %v4819
      %v4821 = vmul.f32 %v216, %v4820
      %v4822 = vmul.f32 %v217, %v4820
      %v4823 = vmul.f32 %v218, %v4820
      %v4824 = vmul.f32 %v219, %v4820
      %v4825 = vmul.f32 %v220, %v4820
      %v4826 = vmul.f32 %v221, %v4820
      %v4827 = vmul.f32 %v222, %v4820
      %v4828 = vmul.f32 %v223, %v4820
      %v4829 = vmul.f32 %v224, %v4820
      %v4830 = vmul.f32 %v225, %v4820
      %v4831 = vmul.f32 %v226, %v4820
      %v4832 = vmul.f32 %v227, %v4820
      %v4833 = vmul.f32 %v228, %v4820
      %v4834 = vmul.f32 %v229, %v4820
      %v4835 = vmul.f32 %v230, %v4820
      %v4836 = vmul.f32 %v231, %v4820
      %v4837 = vmul.f32 %v232, %v4820
      %v4838 = vmul.f32 %v233, %v4820
      %v4839 = vadd.f32 %v4799, %v4821
      %v4840 = vadd.f32 %v4800, %v4822
      %v4841 = vadd.f32 %v4801, %v4823
      %v4842 = vadd.f32 %v4802, %v4824
      %v4843 = vadd.f32 %v4803, %v4825
      %v4844 = vadd.f32 %v4804, %v4826
      %v4845 = vadd.f32 %v4805, %v4827
      %v4846 = vadd.f32 %v4806, %v4828
      %v4847 = vadd.f32 %v4807, %v4829
      %v4848 = vadd.f32 %v4808, %v4830
      %v4849 = vadd.f32 %v4809, %v4831
      %v4850 = vadd.f32 %v4810, %v4832
      %v4851 = vadd.f32 %v4811, %v4833
      %v4852 = vadd.f32 %v4812, %v4834
      %v4853 = vadd.f32 %v4813, %v4835
      %v4854 = vadd.f32 %v4814, %v4836
      %v4855 = vadd.f32 %v4815, %v4837
      %v4856 = vadd.f32 %v4816, %v4838
      %v4857 = vlaneseq
      %v4858 = vshrl.u32 %v4857, 7
      %v4859 = vsub.s32 1, %v4858
      %v4860 = vrot.slane %v242, %v4859
      %v4861 = vmul.f32 %v216, %v4860
      %v4862 = vmul.f32 %v217, %v4860
      %v4863 = vmul.f32 %v218, %v4860
      %v4864 = vmul.f32 %v219, %v4860
      %v4865 = vmul.f32 %v220, %v4860
      %v4866 = vmul.f32 %v221, %v4860
      %v4867 = vmul.f32 %v222, %v4860
      %v4868 = vmul.f32 %v223, %v4860
      %v4869 = vmul.f32 %v224, %v4860
      %v4870 = vmul.f32 %v225, %v4860
      %v4871 = vmul.f32 %v226, %v4860
      %v4872 = vmul.f32 %v227, %v4860
      %v4873 = vmul.f32 %v228, %v4860
      %v4874 = vmul.f32 %v229, %v4860
      %v4875 = vmul.f32 %v230, %v4860
      %v4876 = vmul.f32 %v231, %v4860
      %v4877 = vmul.f32 %v232, %v4860
      %v4878 = vmul.f32 %v233, %v4860
      %v4897 = vrot.slane %v4861, 1
      %v4898 = vrot.slane %v4862, 1
      %v4899 = vsel %vm324, %v4897, %v4898
      %v4900 = vrot.slane %v4863, 1
      %v4901 = vrot.slane %v4864, 1
      %v4902 = vsel %vm324, %v4900, %v4901
      %v4903 = vrot.slane %v4865, 1
      %v4904 = vrot.slane %v4866, 1
      %v4905 = vsel %vm324, %v4903, %v4904
      %v4906 = vrot.slane %v4867, 1
      %v4907 = vrot.slane %v4868, 1
      %v4908 = vsel %vm324, %v4906, %v4907
      %v4909 = vrot.slane %v4869, 1
      %v4910 = vrot.slane %v4870, 1
      %v4911 = vsel %vm324, %v4909, %v4910
      %v4912 = vrot.slane %v4871, 1
      %v4913 = vrot.slane %v4872, 1
      %v4914 = vsel %vm324, %v4912, %v4913
      %v4915 = vrot.slane %v4873, 1
      %v4916 = vrot.slane %v4874, 1
      %v4917 = vsel %vm324, %v4915, %v4916
      %v4918 = vrot.slane %v4875, 1
      %v4919 = vrot.slane %v4876, 1
      %v4920 = vsel %vm324, %v4918, %v4919
      %v4921 = vrot.slane %v4877, 1
      %v4922 = vrot.slane %v4878, 1
      %v4923 = vsel %vm324, %v4921, %v4922
      %v4942 = vadd.f32 %v4839, %v4899
      %v4943 = vadd.f32 %v4840, %v4898
      %v4944 = vadd.f32 %v4841, %v4902
      %v4945 = vadd.f32 %v4842, %v4901
      %v4946 = vadd.f32 %v4843, %v4905
      %v4947 = vadd.f32 %v4844, %v4904
      %v4948 = vadd.f32 %v4845, %v4908
      %v4949 = vadd.f32 %v4846, %v4907
      %v4950 = vadd.f32 %v4847, %v4911
      %v4951 = vadd.f32 %v4848, %v4910
      %v4952 = vadd.f32 %v4849, %v4914
      %v4953 = vadd.f32 %v4850, %v4913
      %v4954 = vadd.f32 %v4851, %v4917
      %v4955 = vadd.f32 %v4852, %v4916
      %v4956 = vadd.f32 %v4853, %v4920
      %v4957 = vadd.f32 %v4854, %v4919
      %v4958 = vadd.f32 %v4855, %v4923
      %v4959 = vadd.f32 %v4856, %v4922
      %v4960 = vlaneseq
      %v4961 = vshrl.u32 %v4960, 7
      %v4962 = vsub.s32 2, %v4961
      %v4963 = vrot.slane %v242, %v4962
      %v4964 = vmul.f32 %v216, %v4963
      %v4965 = vmul.f32 %v217, %v4963
      %v4966 = vmul.f32 %v218, %v4963
      %v4967 = vmul.f32 %v219, %v4963
      %v4968 = vmul.f32 %v220, %v4963
      %v4969 = vmul.f32 %v221, %v4963
      %v4970 = vmul.f32 %v222, %v4963
      %v4971 = vmul.f32 %v223, %v4963
      %v4972 = vmul.f32 %v224, %v4963
      %v4973 = vmul.f32 %v225, %v4963
      %v4974 = vmul.f32 %v226, %v4963
      %v4975 = vmul.f32 %v227, %v4963
      %v4976 = vmul.f32 %v228, %v4963
      %v4977 = vmul.f32 %v229, %v4963
      %v4978 = vmul.f32 %v230, %v4963
      %v4979 = vmul.f32 %v231, %v4963
      %v4980 = vmul.f32 %v232, %v4963
      %v4981 = vmul.f32 %v233, %v4963
      %v5000 = vrot.slane %v4964, 2
      %v5001 = vrot.slane %v4965, 2
      %v5002 = vsel %vm428, %v5000, %v5001
      %v5003 = vrot.slane %v4966, 2
      %v5004 = vrot.slane %v4967, 2
      %v5005 = vsel %vm428, %v5003, %v5004
      %v5006 = vrot.slane %v4968, 2
      %v5007 = vrot.slane %v4969, 2
      %v5008 = vsel %vm428, %v5006, %v5007
      %v5009 = vrot.slane %v4970, 2
      %v5010 = vrot.slane %v4971, 2
      %v5011 = vsel %vm428, %v5009, %v5010
      %v5012 = vrot.slane %v4972, 2
      %v5013 = vrot.slane %v4973, 2
      %v5014 = vsel %vm428, %v5012, %v5013
      %v5015 = vrot.slane %v4974, 2
      %v5016 = vrot.slane %v4975, 2
      %v5017 = vsel %vm428, %v5015, %v5016
      %v5018 = vrot.slane %v4976, 2
      %v5019 = vrot.slane %v4977, 2
      %v5020 = vsel %vm428, %v5018, %v5019
      %v5021 = vrot.slane %v4978, 2
      %v5022 = vrot.slane %v4979, 2
      %v5023 = vsel %vm428, %v5021, %v5022
      %v5024 = vrot.slane %v4980, 2
      %v5025 = vrot.slane %v4981, 2
      %v5026 = vsel %vm428, %v5024, %v5025
      %v5045 = vadd.f32 %v4942, %v5002
      %v5046 = vadd.f32 %v4943, %v5001
      %v5047 = vadd.f32 %v4944, %v5005
      %v5048 = vadd.f32 %v4945, %v5004
      %v5049 = vadd.f32 %v4946, %v5008
      %v5050 = vadd.f32 %v4947, %v5007
      %v5051 = vadd.f32 %v4948, %v5011
      %v5052 = vadd.f32 %v4949, %v5010
      %v5053 = vadd.f32 %v4950, %v5014
      %v5054 = vadd.f32 %v4951, %v5013
      %v5055 = vadd.f32 %v4952, %v5017
      %v5056 = vadd.f32 %v4953, %v5016
      %v5057 = vadd.f32 %v4954, %v5020
      %v5058 = vadd.f32 %v4955, %v5019
      %v5059 = vadd.f32 %v4956, %v5023
      %v5060 = vadd.f32 %v4957, %v5022
      %v5061 = vadd.f32 %v4958, %v5026
      %v5062 = vadd.f32 %v4959, %v5025
      %v5063 = vlaneseq
      %v5064 = vshrl.u32 %v5063, 7
      %v5065 = vsub.s32 3, %v5064
      %v5066 = vrot.slane %v242, %v5065
      %v5067 = vmul.f32 %v216, %v5066
      %v5068 = vmul.f32 %v217, %v5066
      %v5069 = vmul.f32 %v218, %v5066
      %v5070 = vmul.f32 %v219, %v5066
      %v5071 = vmul.f32 %v220, %v5066
      %v5072 = vmul.f32 %v221, %v5066
      %v5073 = vmul.f32 %v222, %v5066
      %v5074 = vmul.f32 %v223, %v5066
      %v5075 = vmul.f32 %v224, %v5066
      %v5076 = vmul.f32 %v225, %v5066
      %v5077 = vmul.f32 %v226, %v5066
      %v5078 = vmul.f32 %v227, %v5066
      %v5079 = vmul.f32 %v228, %v5066
      %v5080 = vmul.f32 %v229, %v5066
      %v5081 = vmul.f32 %v230, %v5066
      %v5082 = vmul.f32 %v231, %v5066
      %v5083 = vmul.f32 %v232, %v5066
      %v5084 = vmul.f32 %v233, %v5066
      %v5103 = vrot.slane %v5067, 3
      %v5104 = vrot.slane %v5068, 3
      %v5105 = vsel %vm532, %v5103, %v5104
      %v5106 = vrot.slane %v5069, 3
      %v5107 = vrot.slane %v5070, 3
      %v5108 = vsel %vm532, %v5106, %v5107
      %v5109 = vrot.slane %v5071, 3
      %v5110 = vrot.slane %v5072, 3
      %v5111 = vsel %vm532, %v5109, %v5110
      %v5112 = vrot.slane %v5073, 3
      %v5113 = vrot.slane %v5074, 3
      %v5114 = vsel %vm532, %v5112, %v5113
      %v5115 = vrot.slane %v5075, 3
      %v5116 = vrot.slane %v5076, 3
      %v5117 = vsel %vm532, %v5115, %v5116
      %v5118 = vrot.slane %v5077, 3
      %v5119 = vrot.slane %v5078, 3
      %v5120 = vsel %vm532, %v5118, %v5119
      %v5121 = vrot.slane %v5079, 3
      %v5122 = vrot.slane %v5080, 3
      %v5123 = vsel %vm532, %v5121, %v5122
      %v5124 = vrot.slane %v5081, 3
      %v5125 = vrot.slane %v5082, 3
      %v5126 = vsel %vm532, %v5124, %v5125
      %v5127 = vrot.slane %v5083, 3
      %v5128 = vrot.slane %v5084, 3
      %v5129 = vsel %vm532, %v5127, %v5128
      %v5148 = vadd.f32 %v5045, %v5105
      %v5149 = vadd.f32 %v5046, %v5104
      %v5150 = vadd.f32 %v5047, %v5108
      %v5151 = vadd.f32 %v5048, %v5107
      %v5152 = vadd.f32 %v5049, %v5111
      %v5153 = vadd.f32 %v5050, %v5110
      %v5154 = vadd.f32 %v5051, %v5114
      %v5155 = vadd.f32 %v5052, %v5113
      %v5156 = vadd.f32 %v5053, %v5117
      %v5157 = vadd.f32 %v5054, %v5116
      %v5158 = vadd.f32 %v5055, %v5120
      %v5159 = vadd.f32 %v5056, %v5119
      %v5160 = vadd.f32 %v5057, %v5123
      %v5161 = vadd.f32 %v5058, %v5122
      %v5162 = vadd.f32 %v5059, %v5126
      %v5163 = vadd.f32 %v5060, %v5125
      %v5164 = vadd.f32 %v5061, %v5129
      %v5165 = vadd.f32 %v5062, %v5128
      %v5166 = vlaneseq
      %v5167 = vshrl.u32 %v5166, 7
      %v5168 = vsub.s32 4, %v5167
      %v5169 = vrot.slane %v242, %v5168
      %v5170 = vmul.f32 %v216, %v5169
      %v5171 = vmul.f32 %v217, %v5169
      %v5172 = vmul.f32 %v218, %v5169
      %v5173 = vmul.f32 %v219, %v5169
      %v5174 = vmul.f32 %v220, %v5169
      %v5175 = vmul.f32 %v221, %v5169
      %v5176 = vmul.f32 %v222, %v5169
      %v5177 = vmul.f32 %v223, %v5169
      %v5178 = vmul.f32 %v224, %v5169
      %v5179 = vmul.f32 %v225, %v5169
      %v5180 = vmul.f32 %v226, %v5169
      %v5181 = vmul.f32 %v227, %v5169
      %v5182 = vmul.f32 %v228, %v5169
      %v5183 = vmul.f32 %v229, %v5169
      %v5184 = vmul.f32 %v230, %v5169
      %v5185 = vmul.f32 %v231, %v5169
      %v5186 = vmul.f32 %v232, %v5169
      %v5187 = vmul.f32 %v233, %v5169
      %v5206 = vrot.slane %v5170, 4
      %v5207 = vrot.slane %v5171, 4
      %v5208 = vsel %vm636, %v5206, %v5207
      %v5209 = vrot.slane %v5172, 4
      %v5210 = vrot.slane %v5173, 4
      %v5211 = vsel %vm636, %v5209, %v5210
      %v5212 = vrot.slane %v5174, 4
      %v5213 = vrot.slane %v5175, 4
      %v5214 = vsel %vm636, %v5212, %v5213
      %v5215 = vrot.slane %v5176, 4
      %v5216 = vrot.slane %v5177, 4
      %v5217 = vsel %vm636, %v5215, %v5216
      %v5218 = vrot.slane %v5178, 4
      %v5219 = vrot.slane %v5179, 4
      %v5220 = vsel %vm636, %v5218, %v5219
      %v5221 = vrot.slane %v5180, 4
      %v5222 = vrot.slane %v5181, 4
      %v5223 = vsel %vm636, %v5221, %v5222
      %v5224 = vrot.slane %v5182, 4
      %v5225 = vrot.slane %v5183, 4
      %v5226 = vsel %vm636, %v5224, %v5225
      %v5227 = vrot.slane %v5184, 4
      %v5228 = vrot.slane %v5185, 4
      %v5229 = vsel %vm636, %v5227, %v5228
      %v5230 = vrot.slane %v5186, 4
      %v5231 = vrot.slane %v5187, 4
      %v5232 = vsel %vm636, %v5230, %v5231
      %v5251 = vadd.f32 %v5148, %v5208
      %v5252 = vadd.f32 %v5149, %v5207
      %v5253 = vadd.f32 %v5150, %v5211
      %v5254 = vadd.f32 %v5151, %v5210
      %v5255 = vadd.f32 %v5152, %v5214
      %v5256 = vadd.f32 %v5153, %v5213
      %v5257 = vadd.f32 %v5154, %v5217
      %v5258 = vadd.f32 %v5155, %v5216
      %v5259 = vadd.f32 %v5156, %v5220
      %v5260 = vadd.f32 %v5157, %v5219
      %v5261 = vadd.f32 %v5158, %v5223
      %v5262 = vadd.f32 %v5159, %v5222
      %v5263 = vadd.f32 %v5160, %v5226
      %v5264 = vadd.f32 %v5161, %v5225
      %v5265 = vadd.f32 %v5162, %v5229
      %v5266 = vadd.f32 %v5163, %v5228
      %v5267 = vadd.f32 %v5164, %v5232
      %v5268 = vadd.f32 %v5165, %v5231
      %v5269 = vlaneseq
      %v5270 = vshrl.u32 %v5269, 7
      %v5271 = vsub.s32 5, %v5270
      %v5272 = vrot.slane %v242, %v5271
      %v5273 = vmul.f32 %v216, %v5272
      %v5274 = vmul.f32 %v217, %v5272
      %v5275 = vmul.f32 %v218, %v5272
      %v5276 = vmul.f32 %v219, %v5272
      %v5277 = vmul.f32 %v220, %v5272
      %v5278 = vmul.f32 %v221, %v5272
      %v5279 = vmul.f32 %v222, %v5272
      %v5280 = vmul.f32 %v223, %v5272
      %v5281 = vmul.f32 %v224, %v5272
      %v5282 = vmul.f32 %v225, %v5272
      %v5283 = vmul.f32 %v226, %v5272
      %v5284 = vmul.f32 %v227, %v5272
      %v5285 = vmul.f32 %v228, %v5272
      %v5286 = vmul.f32 %v229, %v5272
      %v5287 = vmul.f32 %v230, %v5272
      %v5288 = vmul.f32 %v231, %v5272
      %v5289 = vmul.f32 %v232, %v5272
      %v5290 = vmul.f32 %v233, %v5272
      %v5309 = vrot.slane %v5273, 5
      %v5310 = vrot.slane %v5274, 5
      %v5311 = vsel %vm740, %v5309, %v5310
      %v5312 = vrot.slane %v5275, 5
      %v5313 = vrot.slane %v5276, 5
      %v5314 = vsel %vm740, %v5312, %v5313
      %v5315 = vrot.slane %v5277, 5
      %v5316 = vrot.slane %v5278, 5
      %v5317 = vsel %vm740, %v5315, %v5316
      %v5318 = vrot.slane %v5279, 5
      %v5319 = vrot.slane %v5280, 5
      %v5320 = vsel %vm740, %v5318, %v5319
      %v5321 = vrot.slane %v5281, 5
      %v5322 = vrot.slane %v5282, 5
      %v5323 = vsel %vm740, %v5321, %v5322
      %v5324 = vrot.slane %v5283, 5
      %v5325 = vrot.slane %v5284, 5
      %v5326 = vsel %vm740, %v5324, %v5325
      %v5327 = vrot.slane %v5285, 5
      %v5328 = vrot.slane %v5286, 5
      %v5329 = vsel %vm740, %v5327, %v5328
      %v5330 = vrot.slane %v5287, 5
      %v5331 = vrot.slane %v5288, 5
      %v5332 = vsel %vm740, %v5330, %v5331
      %v5333 = vrot.slane %v5289, 5
      %v5334 = vrot.slane %v5290, 5
      %v5335 = vsel %vm740, %v5333, %v5334
      %v5354 = vadd.f32 %v5251, %v5311
      %v5355 = vadd.f32 %v5252, %v5310
      %v5356 = vadd.f32 %v5253, %v5314
      %v5357 = vadd.f32 %v5254, %v5313
      %v5358 = vadd.f32 %v5255, %v5317
      %v5359 = vadd.f32 %v5256, %v5316
      %v5360 = vadd.f32 %v5257, %v5320
      %v5361 = vadd.f32 %v5258, %v5319
      %v5362 = vadd.f32 %v5259, %v5323
      %v5363 = vadd.f32 %v5260, %v5322
      %v5364 = vadd.f32 %v5261, %v5326
      %v5365 = vadd.f32 %v5262, %v5325
      %v5366 = vadd.f32 %v5263, %v5329
      %v5367 = vadd.f32 %v5264, %v5328
      %v5368 = vadd.f32 %v5265, %v5332
      %v5369 = vadd.f32 %v5266, %v5331
      %v5370 = vadd.f32 %v5267, %v5335
      %v5371 = vadd.f32 %v5268, %v5334
      %v5372 = vlaneseq
      %v5373 = vshrl.u32 %v5372, 7
      %v5374 = vsub.s32 6, %v5373
      %v5375 = vrot.slane %v242, %v5374
      %v5376 = vmul.f32 %v216, %v5375
      %v5377 = vmul.f32 %v217, %v5375
      %v5378 = vmul.f32 %v218, %v5375
      %v5379 = vmul.f32 %v219, %v5375
      %v5380 = vmul.f32 %v220, %v5375
      %v5381 = vmul.f32 %v221, %v5375
      %v5382 = vmul.f32 %v222, %v5375
      %v5383 = vmul.f32 %v223, %v5375
      %v5384 = vmul.f32 %v224, %v5375
      %v5385 = vmul.f32 %v225, %v5375
      %v5386 = vmul.f32 %v226, %v5375
      %v5387 = vmul.f32 %v227, %v5375
      %v5388 = vmul.f32 %v228, %v5375
      %v5389 = vmul.f32 %v229, %v5375
      %v5390 = vmul.f32 %v230, %v5375
      %v5391 = vmul.f32 %v231, %v5375
      %v5392 = vmul.f32 %v232, %v5375
      %v5393 = vmul.f32 %v233, %v5375
      %v5412 = vrot.slane %v5376, 6
      %v5413 = vrot.slane %v5377, 6
      %v5414 = vsel %vm844, %v5412, %v5413
      %v5415 = vrot.slane %v5378, 6
      %v5416 = vrot.slane %v5379, 6
      %v5417 = vsel %vm844, %v5415, %v5416
      %v5418 = vrot.slane %v5380, 6
      %v5419 = vrot.slane %v5381, 6
      %v5420 = vsel %vm844, %v5418, %v5419
      %v5421 = vrot.slane %v5382, 6
      %v5422 = vrot.slane %v5383, 6
      %v5423 = vsel %vm844, %v5421, %v5422
      %v5424 = vrot.slane %v5384, 6
      %v5425 = vrot.slane %v5385, 6
      %v5426 = vsel %vm844, %v5424, %v5425
      %v5427 = vrot.slane %v5386, 6
      %v5428 = vrot.slane %v5387, 6
      %v5429 = vsel %vm844, %v5427, %v5428
      %v5430 = vrot.slane %v5388, 6
      %v5431 = vrot.slane %v5389, 6
      %v5432 = vsel %vm844, %v5430, %v5431
      %v5433 = vrot.slane %v5390, 6
      %v5434 = vrot.slane %v5391, 6
      %v5435 = vsel %vm844, %v5433, %v5434
      %v5436 = vrot.slane %v5392, 6
      %v5437 = vrot.slane %v5393, 6
      %v5438 = vsel %vm844, %v5436, %v5437
      %v5457 = vadd.f32 %v5354, %v5414
      %v5458 = vadd.f32 %v5355, %v5413
      %v5459 = vadd.f32 %v5356, %v5417
      %v5460 = vadd.f32 %v5357, %v5416
      %v5461 = vadd.f32 %v5358, %v5420
      %v5462 = vadd.f32 %v5359, %v5419
      %v5463 = vadd.f32 %v5360, %v5423
      %v5464 = vadd.f32 %v5361, %v5422
      %v5465 = vadd.f32 %v5362, %v5426
      %v5466 = vadd.f32 %v5363, %v5425
      %v5467 = vadd.f32 %v5364, %v5429
      %v5468 = vadd.f32 %v5365, %v5428
      %v5469 = vadd.f32 %v5366, %v5432
      %v5470 = vadd.f32 %v5367, %v5431
      %v5471 = vadd.f32 %v5368, %v5435
      %v5472 = vadd.f32 %v5369, %v5434
      %v5473 = vadd.f32 %v5370, %v5438
      %v5474 = vadd.f32 %v5371, %v5437
      %v5475 = vlaneseq
      %v5476 = vshrl.u32 %v5475, 7
      %v5477 = vsub.s32 7, %v5476
      %v5478 = vrot.slane %v242, %v5477
      %v5479 = vmul.f32 %v216, %v5478
      %v5480 = vmul.f32 %v217, %v5478
      %v5481 = vmul.f32 %v218, %v5478
      %v5482 = vmul.f32 %v219, %v5478
      %v5483 = vmul.f32 %v220, %v5478
      %v5484 = vmul.f32 %v221, %v5478
      %v5485 = vmul.f32 %v222, %v5478
      %v5486 = vmul.f32 %v223, %v5478
      %v5487 = vmul.f32 %v224, %v5478
      %v5488 = vmul.f32 %v225, %v5478
      %v5489 = vmul.f32 %v226, %v5478
      %v5490 = vmul.f32 %v227, %v5478
      %v5491 = vmul.f32 %v228, %v5478
      %v5492 = vmul.f32 %v229, %v5478
      %v5493 = vmul.f32 %v230, %v5478
      %v5494 = vmul.f32 %v231, %v5478
      %v5495 = vmul.f32 %v232, %v5478
      %v5496 = vmul.f32 %v233, %v5478
      %v5515 = vrot.slane %v5479, 7
      %v5516 = vrot.slane %v5480, 7
      %v5517 = vsel %vm948, %v5515, %v5516
      %v5518 = vrot.slane %v5481, 7
      %v5519 = vrot.slane %v5482, 7
      %v5520 = vsel %vm948, %v5518, %v5519
      %v5521 = vrot.slane %v5483, 7
      %v5522 = vrot.slane %v5484, 7
      %v5523 = vsel %vm948, %v5521, %v5522
      %v5524 = vrot.slane %v5485, 7
      %v5525 = vrot.slane %v5486, 7
      %v5526 = vsel %vm948, %v5524, %v5525
      %v5527 = vrot.slane %v5487, 7
      %v5528 = vrot.slane %v5488, 7
      %v5529 = vsel %vm948, %v5527, %v5528
      %v5530 = vrot.slane %v5489, 7
      %v5531 = vrot.slane %v5490, 7
      %v5532 = vsel %vm948, %v5530, %v5531
      %v5533 = vrot.slane %v5491, 7
      %v5534 = vrot.slane %v5492, 7
      %v5535 = vsel %vm948, %v5533, %v5534
      %v5536 = vrot.slane %v5493, 7
      %v5537 = vrot.slane %v5494, 7
      %v5538 = vsel %vm948, %v5536, %v5537
      %v5539 = vrot.slane %v5495, 7
      %v5540 = vrot.slane %v5496, 7
      %v5541 = vsel %vm948, %v5539, %v5540
      %v5560 = vadd.f32 %v5457, %v5517
      %v5561 = vadd.f32 %v5458, %v5516
      %v5562 = vadd.f32 %v5459, %v5520
      %v5563 = vadd.f32 %v5460, %v5519
      %v5564 = vadd.f32 %v5461, %v5523
      %v5565 = vadd.f32 %v5462, %v5522
      %v5566 = vadd.f32 %v5463, %v5526
      %v5567 = vadd.f32 %v5464, %v5525
      %v5568 = vadd.f32 %v5465, %v5529
      %v5569 = vadd.f32 %v5466, %v5528
      %v5570 = vadd.f32 %v5467, %v5532
      %v5571 = vadd.f32 %v5468, %v5531
      %v5572 = vadd.f32 %v5469, %v5535
      %v5573 = vadd.f32 %v5470, %v5534
      %v5574 = vadd.f32 %v5471, %v5538
      %v5575 = vadd.f32 %v5472, %v5537
      %v5576 = vadd.f32 %v5473, %v5541
      %v5577 = vadd.f32 %v5474, %v5540
      %v5578 = vlaneseq
      %v5579 = vshrl.u32 %v5578, 7
      %v5580 = vsub.s32 0, %v5579
      %v5581 = vrot.slane %v243, %v5580
      %v5582 = vmul.f32 %v218, %v5581
      %v5583 = vmul.f32 %v219, %v5581
      %v5584 = vmul.f32 %v220, %v5581
      %v5585 = vmul.f32 %v221, %v5581
      %v5586 = vmul.f32 %v222, %v5581
      %v5587 = vmul.f32 %v223, %v5581
      %v5588 = vmul.f32 %v224, %v5581
      %v5589 = vmul.f32 %v225, %v5581
      %v5590 = vmul.f32 %v226, %v5581
      %v5591 = vmul.f32 %v227, %v5581
      %v5592 = vmul.f32 %v228, %v5581
      %v5593 = vmul.f32 %v229, %v5581
      %v5594 = vmul.f32 %v230, %v5581
      %v5595 = vmul.f32 %v231, %v5581
      %v5596 = vmul.f32 %v232, %v5581
      %v5597 = vmul.f32 %v233, %v5581
      %v5598 = vmul.f32 %v234, %v5581
      %v5599 = vmul.f32 %v235, %v5581
      %v5600 = vadd.f32 %v5560, %v5582
      %v5601 = vadd.f32 %v5561, %v5583
      %v5602 = vadd.f32 %v5562, %v5584
      %v5603 = vadd.f32 %v5563, %v5585
      %v5604 = vadd.f32 %v5564, %v5586
      %v5605 = vadd.f32 %v5565, %v5587
      %v5606 = vadd.f32 %v5566, %v5588
      %v5607 = vadd.f32 %v5567, %v5589
      %v5608 = vadd.f32 %v5568, %v5590
      %v5609 = vadd.f32 %v5569, %v5591
      %v5610 = vadd.f32 %v5570, %v5592
      %v5611 = vadd.f32 %v5571, %v5593
      %v5612 = vadd.f32 %v5572, %v5594
      %v5613 = vadd.f32 %v5573, %v5595
      %v5614 = vadd.f32 %v5574, %v5596
      %v5615 = vadd.f32 %v5575, %v5597
      %v5616 = vadd.f32 %v5576, %v5598
      %v5617 = vadd.f32 %v5577, %v5599
      %v5618 = vlaneseq
      %v5619 = vshrl.u32 %v5618, 7
      %v5620 = vsub.s32 1, %v5619
      %v5621 = vrot.slane %v243, %v5620
      %v5622 = vmul.f32 %v218, %v5621
      %v5623 = vmul.f32 %v219, %v5621
      %v5624 = vmul.f32 %v220, %v5621
      %v5625 = vmul.f32 %v221, %v5621
      %v5626 = vmul.f32 %v222, %v5621
      %v5627 = vmul.f32 %v223, %v5621
      %v5628 = vmul.f32 %v224, %v5621
      %v5629 = vmul.f32 %v225, %v5621
      %v5630 = vmul.f32 %v226, %v5621
      %v5631 = vmul.f32 %v227, %v5621
      %v5632 = vmul.f32 %v228, %v5621
      %v5633 = vmul.f32 %v229, %v5621
      %v5634 = vmul.f32 %v230, %v5621
      %v5635 = vmul.f32 %v231, %v5621
      %v5636 = vmul.f32 %v232, %v5621
      %v5637 = vmul.f32 %v233, %v5621
      %v5638 = vmul.f32 %v234, %v5621
      %v5639 = vmul.f32 %v235, %v5621
      %v5658 = vrot.slane %v5622, 1
      %v5659 = vrot.slane %v5623, 1
      %v5660 = vsel %vm324, %v5658, %v5659
      %v5661 = vrot.slane %v5624, 1
      %v5662 = vrot.slane %v5625, 1
      %v5663 = vsel %vm324, %v5661, %v5662
      %v5664 = vrot.slane %v5626, 1
      %v5665 = vrot.slane %v5627, 1
      %v5666 = vsel %vm324, %v5664, %v5665
      %v5667 = vrot.slane %v5628, 1
      %v5668 = vrot.slane %v5629, 1
      %v5669 = vsel %vm324, %v5667, %v5668
      %v5670 = vrot.slane %v5630, 1
      %v5671 = vrot.slane %v5631, 1
      %v5672 = vsel %vm324, %v5670, %v5671
      %v5673 = vrot.slane %v5632, 1
      %v5674 = vrot.slane %v5633, 1
      %v5675 = vsel %vm324, %v5673, %v5674
      %v5676 = vrot.slane %v5634, 1
      %v5677 = vrot.slane %v5635, 1
      %v5678 = vsel %vm324, %v5676, %v5677
      %v5679 = vrot.slane %v5636, 1
      %v5680 = vrot.slane %v5637, 1
      %v5681 = vsel %vm324, %v5679, %v5680
      %v5682 = vrot.slane %v5638, 1
      %v5683 = vrot.slane %v5639, 1
      %v5684 = vsel %vm324, %v5682, %v5683
      %v5703 = vadd.f32 %v5600, %v5660
      %v5704 = vadd.f32 %v5601, %v5659
      %v5705 = vadd.f32 %v5602, %v5663
      %v5706 = vadd.f32 %v5603, %v5662
      %v5707 = vadd.f32 %v5604, %v5666
      %v5708 = vadd.f32 %v5605, %v5665
      %v5709 = vadd.f32 %v5606, %v5669
      %v5710 = vadd.f32 %v5607, %v5668
      %v5711 = vadd.f32 %v5608, %v5672
      %v5712 = vadd.f32 %v5609, %v5671
      %v5713 = vadd.f32 %v5610, %v5675
      %v5714 = vadd.f32 %v5611, %v5674
      %v5715 = vadd.f32 %v5612, %v5678
      %v5716 = vadd.f32 %v5613, %v5677
      %v5717 = vadd.f32 %v5614, %v5681
      %v5718 = vadd.f32 %v5615, %v5680
      %v5719 = vadd.f32 %v5616, %v5684
      %v5720 = vadd.f32 %v5617, %v5683
      %v5721 = vlaneseq
      %v5722 = vshrl.u32 %v5721, 7
      %v5723 = vsub.s32 2, %v5722
      %v5724 = vrot.slane %v243, %v5723
      %v5725 = vmul.f32 %v218, %v5724
      %v5726 = vmul.f32 %v219, %v5724
      %v5727 = vmul.f32 %v220, %v5724
      %v5728 = vmul.f32 %v221, %v5724
      %v5729 = vmul.f32 %v222, %v5724
      %v5730 = vmul.f32 %v223, %v5724
      %v5731 = vmul.f32 %v224, %v5724
      %v5732 = vmul.f32 %v225, %v5724
      %v5733 = vmul.f32 %v226, %v5724
      %v5734 = vmul.f32 %v227, %v5724
      %v5735 = vmul.f32 %v228, %v5724
      %v5736 = vmul.f32 %v229, %v5724
      %v5737 = vmul.f32 %v230, %v5724
      %v5738 = vmul.f32 %v231, %v5724
      %v5739 = vmul.f32 %v232, %v5724
      %v5740 = vmul.f32 %v233, %v5724
      %v5741 = vmul.f32 %v234, %v5724
      %v5742 = vmul.f32 %v235, %v5724
      %v5761 = vrot.slane %v5725, 2
      %v5762 = vrot.slane %v5726, 2
      %v5763 = vsel %vm428, %v5761, %v5762
      %v5764 = vrot.slane %v5727, 2
      %v5765 = vrot.slane %v5728, 2
      %v5766 = vsel %vm428, %v5764, %v5765
      %v5767 = vrot.slane %v5729, 2
      %v5768 = vrot.slane %v5730, 2
      %v5769 = vsel %vm428, %v5767, %v5768
      %v5770 = vrot.slane %v5731, 2
      %v5771 = vrot.slane %v5732, 2
      %v5772 = vsel %vm428, %v5770, %v5771
      %v5773 = vrot.slane %v5733, 2
      %v5774 = vrot.slane %v5734, 2
      %v5775 = vsel %vm428, %v5773, %v5774
      %v5776 = vrot.slane %v5735, 2
      %v5777 = vrot.slane %v5736, 2
      %v5778 = vsel %vm428, %v5776, %v5777
      %v5779 = vrot.slane %v5737, 2
      %v5780 = vrot.slane %v5738, 2
      %v5781 = vsel %vm428, %v5779, %v5780
      %v5782 = vrot.slane %v5739, 2
      %v5783 = vrot.slane %v5740, 2
      %v5784 = vsel %vm428, %v5782, %v5783
      %v5785 = vrot.slane %v5741, 2
      %v5786 = vrot.slane %v5742, 2
      %v5787 = vsel %vm428, %v5785, %v5786
      %v5806 = vadd.f32 %v5703, %v5763
      %v5807 = vadd.f32 %v5704, %v5762
      %v5808 = vadd.f32 %v5705, %v5766
      %v5809 = vadd.f32 %v5706, %v5765
      %v5810 = vadd.f32 %v5707, %v5769
      %v5811 = vadd.f32 %v5708, %v5768
      %v5812 = vadd.f32 %v5709, %v5772
      %v5813 = vadd.f32 %v5710, %v5771
      %v5814 = vadd.f32 %v5711, %v5775
      %v5815 = vadd.f32 %v5712, %v5774
      %v5816 = vadd.f32 %v5713, %v5778
      %v5817 = vadd.f32 %v5714, %v5777
      %v5818 = vadd.f32 %v5715, %v5781
      %v5819 = vadd.f32 %v5716, %v5780
      %v5820 = vadd.f32 %v5717, %v5784
      %v5821 = vadd.f32 %v5718, %v5783
      %v5822 = vadd.f32 %v5719, %v5787
      %v5823 = vadd.f32 %v5720, %v5786
      %v5824 = vlaneseq
      %v5825 = vshrl.u32 %v5824, 7
      %v5826 = vsub.s32 3, %v5825
      %v5827 = vrot.slane %v243, %v5826
      %v5828 = vmul.f32 %v218, %v5827
      %v5829 = vmul.f32 %v219, %v5827
      %v5830 = vmul.f32 %v220, %v5827
      %v5831 = vmul.f32 %v221, %v5827
      %v5832 = vmul.f32 %v222, %v5827
      %v5833 = vmul.f32 %v223, %v5827
      %v5834 = vmul.f32 %v224, %v5827
      %v5835 = vmul.f32 %v225, %v5827
      %v5836 = vmul.f32 %v226, %v5827
      %v5837 = vmul.f32 %v227, %v5827
      %v5838 = vmul.f32 %v228, %v5827
      %v5839 = vmul.f32 %v229, %v5827
      %v5840 = vmul.f32 %v230, %v5827
      %v5841 = vmul.f32 %v231, %v5827
      %v5842 = vmul.f32 %v232, %v5827
      %v5843 = vmul.f32 %v233, %v5827
      %v5844 = vmul.f32 %v234, %v5827
      %v5845 = vmul.f32 %v235, %v5827
      %v5864 = vrot.slane %v5828, 3
      %v5865 = vrot.slane %v5829, 3
      %v5866 = vsel %vm532, %v5864, %v5865
      %v5867 = vrot.slane %v5830, 3
      %v5868 = vrot.slane %v5831, 3
      %v5869 = vsel %vm532, %v5867, %v5868
      %v5870 = vrot.slane %v5832, 3
      %v5871 = vrot.slane %v5833, 3
      %v5872 = vsel %vm532, %v5870, %v5871
      %v5873 = vrot.slane %v5834, 3
      %v5874 = vrot.slane %v5835, 3
      %v5875 = vsel %vm532, %v5873, %v5874
      %v5876 = vrot.slane %v5836, 3
      %v5877 = vrot.slane %v5837, 3
      %v5878 = vsel %vm532, %v5876, %v5877
      %v5879 = vrot.slane %v5838, 3
      %v5880 = vrot.slane %v5839, 3
      %v5881 = vsel %vm532, %v5879, %v5880
      %v5882 = vrot.slane %v5840, 3
      %v5883 = vrot.slane %v5841, 3
      %v5884 = vsel %vm532, %v5882, %v5883
      %v5885 = vrot.slane %v5842, 3
      %v5886 = vrot.slane %v5843, 3
      %v5887 = vsel %vm532, %v5885, %v5886
      %v5888 = vrot.slane %v5844, 3
      %v5889 = vrot.slane %v5845, 3
      %v5890 = vsel %vm532, %v5888, %v5889
      %v5909 = vadd.f32 %v5806, %v5866
      %v5910 = vadd.f32 %v5807, %v5865
      %v5911 = vadd.f32 %v5808, %v5869
      %v5912 = vadd.f32 %v5809, %v5868
      %v5913 = vadd.f32 %v5810, %v5872
      %v5914 = vadd.f32 %v5811, %v5871
      %v5915 = vadd.f32 %v5812, %v5875
      %v5916 = vadd.f32 %v5813, %v5874
      %v5917 = vadd.f32 %v5814, %v5878
      %v5918 = vadd.f32 %v5815, %v5877
      %v5919 = vadd.f32 %v5816, %v5881
      %v5920 = vadd.f32 %v5817, %v5880
      %v5921 = vadd.f32 %v5818, %v5884
      %v5922 = vadd.f32 %v5819, %v5883
      %v5923 = vadd.f32 %v5820, %v5887
      %v5924 = vadd.f32 %v5821, %v5886
      %v5925 = vadd.f32 %v5822, %v5890
      %v5926 = vadd.f32 %v5823, %v5889
      %v5927 = vlaneseq
      %v5928 = vshrl.u32 %v5927, 7
      %v5929 = vsub.s32 4, %v5928
      %v5930 = vrot.slane %v243, %v5929
      %v5931 = vmul.f32 %v218, %v5930
      %v5932 = vmul.f32 %v219, %v5930
      %v5933 = vmul.f32 %v220, %v5930
      %v5934 = vmul.f32 %v221, %v5930
      %v5935 = vmul.f32 %v222, %v5930
      %v5936 = vmul.f32 %v223, %v5930
      %v5937 = vmul.f32 %v224, %v5930
      %v5938 = vmul.f32 %v225, %v5930
      %v5939 = vmul.f32 %v226, %v5930
      %v5940 = vmul.f32 %v227, %v5930
      %v5941 = vmul.f32 %v228, %v5930
      %v5942 = vmul.f32 %v229, %v5930
      %v5943 = vmul.f32 %v230, %v5930
      %v5944 = vmul.f32 %v231, %v5930
      %v5945 = vmul.f32 %v232, %v5930
      %v5946 = vmul.f32 %v233, %v5930
      %v5947 = vmul.f32 %v234, %v5930
      %v5948 = vmul.f32 %v235, %v5930
      %v5967 = vrot.slane %v5931, 4
      %v5968 = vrot.slane %v5932, 4
      %v5969 = vsel %vm636, %v5967, %v5968
      %v5970 = vrot.slane %v5933, 4
      %v5971 = vrot.slane %v5934, 4
      %v5972 = vsel %vm636, %v5970, %v5971
      %v5973 = vrot.slane %v5935, 4
      %v5974 = vrot.slane %v5936, 4
      %v5975 = vsel %vm636, %v5973, %v5974
      %v5976 = vrot.slane %v5937, 4
      %v5977 = vrot.slane %v5938, 4
      %v5978 = vsel %vm636, %v5976, %v5977
      %v5979 = vrot.slane %v5939, 4
      %v5980 = vrot.slane %v5940, 4
      %v5981 = vsel %vm636, %v5979, %v5980
      %v5982 = vrot.slane %v5941, 4
      %v5983 = vrot.slane %v5942, 4
      %v5984 = vsel %vm636, %v5982, %v5983
      %v5985 = vrot.slane %v5943, 4
      %v5986 = vrot.slane %v5944, 4
      %v5987 = vsel %vm636, %v5985, %v5986
      %v5988 = vrot.slane %v5945, 4
      %v5989 = vrot.slane %v5946, 4
      %v5990 = vsel %vm636, %v5988, %v5989
      %v5991 = vrot.slane %v5947, 4
      %v5992 = vrot.slane %v5948, 4
      %v5993 = vsel %vm636, %v5991, %v5992
      %v6012 = vadd.f32 %v5909, %v5969
      %v6013 = vadd.f32 %v5910, %v5968
      %v6014 = vadd.f32 %v5911, %v5972
      %v6015 = vadd.f32 %v5912, %v5971
      %v6016 = vadd.f32 %v5913, %v5975
      %v6017 = vadd.f32 %v5914, %v5974
      %v6018 = vadd.f32 %v5915, %v5978
      %v6019 = vadd.f32 %v5916, %v5977
      %v6020 = vadd.f32 %v5917, %v5981
      %v6021 = vadd.f32 %v5918, %v5980
      %v6022 = vadd.f32 %v5919, %v5984
      %v6023 = vadd.f32 %v5920, %v5983
      %v6024 = vadd.f32 %v5921, %v5987
      %v6025 = vadd.f32 %v5922, %v5986
      %v6026 = vadd.f32 %v5923, %v5990
      %v6027 = vadd.f32 %v5924, %v5989
      %v6028 = vadd.f32 %v5925, %v5993
      %v6029 = vadd.f32 %v5926, %v5992
      %v6030 = vlaneseq
      %v6031 = vshrl.u32 %v6030, 7
      %v6032 = vsub.s32 5, %v6031
      %v6033 = vrot.slane %v243, %v6032
      %v6034 = vmul.f32 %v218, %v6033
      %v6035 = vmul.f32 %v219, %v6033
      %v6036 = vmul.f32 %v220, %v6033
      %v6037 = vmul.f32 %v221, %v6033
      %v6038 = vmul.f32 %v222, %v6033
      %v6039 = vmul.f32 %v223, %v6033
      %v6040 = vmul.f32 %v224, %v6033
      %v6041 = vmul.f32 %v225, %v6033
      %v6042 = vmul.f32 %v226, %v6033
      %v6043 = vmul.f32 %v227, %v6033
      %v6044 = vmul.f32 %v228, %v6033
      %v6045 = vmul.f32 %v229, %v6033
      %v6046 = vmul.f32 %v230, %v6033
      %v6047 = vmul.f32 %v231, %v6033
      %v6048 = vmul.f32 %v232, %v6033
      %v6049 = vmul.f32 %v233, %v6033
      %v6050 = vmul.f32 %v234, %v6033
      %v6051 = vmul.f32 %v235, %v6033
      %v6070 = vrot.slane %v6034, 5
      %v6071 = vrot.slane %v6035, 5
      %v6072 = vsel %vm740, %v6070, %v6071
      %v6073 = vrot.slane %v6036, 5
      %v6074 = vrot.slane %v6037, 5
      %v6075 = vsel %vm740, %v6073, %v6074
      %v6076 = vrot.slane %v6038, 5
      %v6077 = vrot.slane %v6039, 5
      %v6078 = vsel %vm740, %v6076, %v6077
      %v6079 = vrot.slane %v6040, 5
      %v6080 = vrot.slane %v6041, 5
      %v6081 = vsel %vm740, %v6079, %v6080
      %v6082 = vrot.slane %v6042, 5
      %v6083 = vrot.slane %v6043, 5
      %v6084 = vsel %vm740, %v6082, %v6083
      %v6085 = vrot.slane %v6044, 5
      %v6086 = vrot.slane %v6045, 5
      %v6087 = vsel %vm740, %v6085, %v6086
      %v6088 = vrot.slane %v6046, 5
      %v6089 = vrot.slane %v6047, 5
      %v6090 = vsel %vm740, %v6088, %v6089
      %v6091 = vrot.slane %v6048, 5
      %v6092 = vrot.slane %v6049, 5
      %v6093 = vsel %vm740, %v6091, %v6092
      %v6094 = vrot.slane %v6050, 5
      %v6095 = vrot.slane %v6051, 5
      %v6096 = vsel %vm740, %v6094, %v6095
      %v6115 = vadd.f32 %v6012, %v6072
      %v6116 = vadd.f32 %v6013, %v6071
      %v6117 = vadd.f32 %v6014, %v6075
      %v6118 = vadd.f32 %v6015, %v6074
      %v6119 = vadd.f32 %v6016, %v6078
      %v6120 = vadd.f32 %v6017, %v6077
      %v6121 = vadd.f32 %v6018, %v6081
      %v6122 = vadd.f32 %v6019, %v6080
      %v6123 = vadd.f32 %v6020, %v6084
      %v6124 = vadd.f32 %v6021, %v6083
      %v6125 = vadd.f32 %v6022, %v6087
      %v6126 = vadd.f32 %v6023, %v6086
      %v6127 = vadd.f32 %v6024, %v6090
      %v6128 = vadd.f32 %v6025, %v6089
      %v6129 = vadd.f32 %v6026, %v6093
      %v6130 = vadd.f32 %v6027, %v6092
      %v6131 = vadd.f32 %v6028, %v6096
      %v6132 = vadd.f32 %v6029, %v6095
      %v6133 = vlaneseq
      %v6134 = vshrl.u32 %v6133, 7
      %v6135 = vsub.s32 6, %v6134
      %v6136 = vrot.slane %v243, %v6135
      %v6137 = vmul.f32 %v218, %v6136
      %v6138 = vmul.f32 %v219, %v6136
      %v6139 = vmul.f32 %v220, %v6136
      %v6140 = vmul.f32 %v221, %v6136
      %v6141 = vmul.f32 %v222, %v6136
      %v6142 = vmul.f32 %v223, %v6136
      %v6143 = vmul.f32 %v224, %v6136
      %v6144 = vmul.f32 %v225, %v6136
      %v6145 = vmul.f32 %v226, %v6136
      %v6146 = vmul.f32 %v227, %v6136
      %v6147 = vmul.f32 %v228, %v6136
      %v6148 = vmul.f32 %v229, %v6136
      %v6149 = vmul.f32 %v230, %v6136
      %v6150 = vmul.f32 %v231, %v6136
      %v6151 = vmul.f32 %v232, %v6136
      %v6152 = vmul.f32 %v233, %v6136
      %v6153 = vmul.f32 %v234, %v6136
      %v6154 = vmul.f32 %v235, %v6136
      %v6173 = vrot.slane %v6137, 6
      %v6174 = vrot.slane %v6138, 6
      %v6175 = vsel %vm844, %v6173, %v6174
      %v6176 = vrot.slane %v6139, 6
      %v6177 = vrot.slane %v6140, 6
      %v6178 = vsel %vm844, %v6176, %v6177
      %v6179 = vrot.slane %v6141, 6
      %v6180 = vrot.slane %v6142, 6
      %v6181 = vsel %vm844, %v6179, %v6180
      %v6182 = vrot.slane %v6143, 6
      %v6183 = vrot.slane %v6144, 6
      %v6184 = vsel %vm844, %v6182, %v6183
      %v6185 = vrot.slane %v6145, 6
      %v6186 = vrot.slane %v6146, 6
      %v6187 = vsel %vm844, %v6185, %v6186
      %v6188 = vrot.slane %v6147, 6
      %v6189 = vrot.slane %v6148, 6
      %v6190 = vsel %vm844, %v6188, %v6189
      %v6191 = vrot.slane %v6149, 6
      %v6192 = vrot.slane %v6150, 6
      %v6193 = vsel %vm844, %v6191, %v6192
      %v6194 = vrot.slane %v6151, 6
      %v6195 = vrot.slane %v6152, 6
      %v6196 = vsel %vm844, %v6194, %v6195
      %v6197 = vrot.slane %v6153, 6
      %v6198 = vrot.slane %v6154, 6
      %v6199 = vsel %vm844, %v6197, %v6198
      %v6218 = vadd.f32 %v6115, %v6175
      %v6219 = vadd.f32 %v6116, %v6174
      %v6220 = vadd.f32 %v6117, %v6178
      %v6221 = vadd.f32 %v6118, %v6177
      %v6222 = vadd.f32 %v6119, %v6181
      %v6223 = vadd.f32 %v6120, %v6180
      %v6224 = vadd.f32 %v6121, %v6184
      %v6225 = vadd.f32 %v6122, %v6183
      %v6226 = vadd.f32 %v6123, %v6187
      %v6227 = vadd.f32 %v6124, %v6186
      %v6228 = vadd.f32 %v6125, %v6190
      %v6229 = vadd.f32 %v6126, %v6189
      %v6230 = vadd.f32 %v6127, %v6193
      %v6231 = vadd.f32 %v6128, %v6192
      %v6232 = vadd.f32 %v6129, %v6196
      %v6233 = vadd.f32 %v6130, %v6195
      %v6234 = vadd.f32 %v6131, %v6199
      %v6235 = vadd.f32 %v6132, %v6198
      %v6236 = vlaneseq
      %v6237 = vshrl.u32 %v6236, 7
      %v6238 = vsub.s32 7, %v6237
      %v6239 = vrot.slane %v243, %v6238
      %v6240 = vmul.f32 %v218, %v6239
      %v6241 = vmul.f32 %v219, %v6239
      %v6242 = vmul.f32 %v220, %v6239
      %v6243 = vmul.f32 %v221, %v6239
      %v6244 = vmul.f32 %v222, %v6239
      %v6245 = vmul.f32 %v223, %v6239
      %v6246 = vmul.f32 %v224, %v6239
      %v6247 = vmul.f32 %v225, %v6239
      %v6248 = vmul.f32 %v226, %v6239
      %v6249 = vmul.f32 %v227, %v6239
      %v6250 = vmul.f32 %v228, %v6239
      %v6251 = vmul.f32 %v229, %v6239
      %v6252 = vmul.f32 %v230, %v6239
      %v6253 = vmul.f32 %v231, %v6239
      %v6254 = vmul.f32 %v232, %v6239
      %v6255 = vmul.f32 %v233, %v6239
      %v6256 = vmul.f32 %v234, %v6239
      %v6257 = vmul.f32 %v235, %v6239
      %v6276 = vrot.slane %v6240, 7
      %v6277 = vrot.slane %v6241, 7
      %v6278 = vsel %vm948, %v6276, %v6277
      %v6279 = vrot.slane %v6242, 7
      %v6280 = vrot.slane %v6243, 7
      %v6281 = vsel %vm948, %v6279, %v6280
      %v6282 = vrot.slane %v6244, 7
      %v6283 = vrot.slane %v6245, 7
      %v6284 = vsel %vm948, %v6282, %v6283
      %v6285 = vrot.slane %v6246, 7
      %v6286 = vrot.slane %v6247, 7
      %v6287 = vsel %vm948, %v6285, %v6286
      %v6288 = vrot.slane %v6248, 7
      %v6289 = vrot.slane %v6249, 7
      %v6290 = vsel %vm948, %v6288, %v6289
      %v6291 = vrot.slane %v6250, 7
      %v6292 = vrot.slane %v6251, 7
      %v6293 = vsel %vm948, %v6291, %v6292
      %v6294 = vrot.slane %v6252, 7
      %v6295 = vrot.slane %v6253, 7
      %v6296 = vsel %vm948, %v6294, %v6295
      %v6297 = vrot.slane %v6254, 7
      %v6298 = vrot.slane %v6255, 7
      %v6299 = vsel %vm948, %v6297, %v6298
      %v6300 = vrot.slane %v6256, 7
      %v6301 = vrot.slane %v6257, 7
      %v6302 = vsel %vm948, %v6300, %v6301
      %v6321 = vadd.f32 %v6218, %v6278
      %v6322 = vadd.f32 %v6219, %v6277
      %v6323 = vadd.f32 %v6220, %v6281
      %v6324 = vadd.f32 %v6221, %v6280
      %v6325 = vadd.f32 %v6222, %v6284
      %v6326 = vadd.f32 %v6223, %v6283
      %v6327 = vadd.f32 %v6224, %v6287
      %v6328 = vadd.f32 %v6225, %v6286
      %v6329 = vadd.f32 %v6226, %v6290
      %v6330 = vadd.f32 %v6227, %v6289
      %v6331 = vadd.f32 %v6228, %v6293
      %v6332 = vadd.f32 %v6229, %v6292
      %v6333 = vadd.f32 %v6230, %v6296
      %v6334 = vadd.f32 %v6231, %v6295
      %v6335 = vadd.f32 %v6232, %v6299
      %v6336 = vadd.f32 %v6233, %v6298
      %v6337 = vadd.f32 %v6234, %v6302
      %v6338 = vadd.f32 %v6235, %v6301
      %vm6339 = vcmask 31744
      %6340 = vst.msk [vmem:[%s198] sm:$0xff] %vm6339, %v6321
      %vm6341 = vcmask 24576
      %6342 = vst.msk [vmem:[%s198 + $0x8] sm:$0x1] %vm6341, %v6322
      %6343 = vst.msk [vmem:[%s198 + $0x10] sm:$0xff] %vm6339, %v6323
      %6344 = vst.msk [vmem:[%s198 + $0x18] sm:$0x1] %vm6341, %v6324
      %6345 = vst.msk [vmem:[%s198 + $0x20] sm:$0xff] %vm6339, %v6325
      %6346 = vst.msk [vmem:[%s198 + $0x28] sm:$0x1] %vm6341, %v6326
      %6347 = vst.msk [vmem:[%s198 + $0x30] sm:$0xff] %vm6339, %v6327
      %6348 = vst.msk [vmem:[%s198 + $0x38] sm:$0x1] %vm6341, %v6328
      %6349 = vst.msk [vmem:[%s198 + $0x40] sm:$0xff] %vm6339, %v6329
      %6350 = vst.msk [vmem:[%s198 + $0x48] sm:$0x1] %vm6341, %v6330
      %6351 = vst.msk [vmem:[%s198 + $0x50] sm:$0xff] %vm6339, %v6331
      %6352 = vst.msk [vmem:[%s198 + $0x58] sm:$0x1] %vm6341, %v6332
      %6353 = vst.msk [vmem:[%s198 + $0x60] sm:$0xff] %vm6339, %v6333
      %6354 = vst.msk [vmem:[%s198 + $0x68] sm:$0x1] %vm6341, %v6334
      %6355 = vst.msk [vmem:[%s198 + $0x70] sm:$0xff] %vm6339, %v6335
      %6356 = vst.msk [vmem:[%s198 + $0x78] sm:$0x1] %vm6341, %v6336
      %6357 = vst.msk [vmem:[%s198 + $0x80] sm:$0xff] %vm6339, %v6337
      %6358 = vst.msk [vmem:[%s198 + $0x88] sm:$0x1] %vm6341, %v6338
      %v6359 = vsel %vm6339, %v6321, 0.0
      %6360 = vadd.xlane.f32.xlu0 %v6359
      %v6361 = vpop.xlane.xlu0 %6360
      %v6362 = vsel %vm6341, %v6322, 0.0
      %6363 = vadd.xlane.f32.xlu0 %v6362
      %v6364 = vpop.xlane.xlu0 %6363
      %v6365 = vsel %vm6339, %v6323, 0.0
      %6366 = vadd.xlane.f32.xlu0 %v6365
      %v6367 = vpop.xlane.xlu0 %6366
      %v6368 = vsel %vm6341, %v6324, 0.0
      %6369 = vadd.xlane.f32.xlu0 %v6368
      %v6370 = vpop.xlane.xlu0 %6369
      %v6371 = vsel %vm6339, %v6325, 0.0
      %6372 = vadd.xlane.f32.xlu0 %v6371
      %v6373 = vpop.xlane.xlu0 %6372
      %v6374 = vsel %vm6341, %v6326, 0.0
      %6375 = vadd.xlane.f32.xlu0 %v6374
      %v6376 = vpop.xlane.xlu0 %6375
      %v6377 = vsel %vm6339, %v6327, 0.0
      %6378 = vadd.xlane.f32.xlu0 %v6377
      %v6379 = vpop.xlane.xlu0 %6378
      %v6380 = vsel %vm6341, %v6328, 0.0
      %6381 = vadd.xlane.f32.xlu0 %v6380
      %v6382 = vpop.xlane.xlu0 %6381
      %v6383 = vsel %vm6339, %v6329, 0.0
      %6384 = vadd.xlane.f32.xlu0 %v6383
      %v6385 = vpop.xlane.xlu0 %6384
      %v6386 = vsel %vm6341, %v6330, 0.0
      %6387 = vadd.xlane.f32.xlu0 %v6386
      %v6388 = vpop.xlane.xlu0 %6387
      %v6389 = vsel %vm6339, %v6331, 0.0
      %6390 = vadd.xlane.f32.xlu0 %v6389
      %v6391 = vpop.xlane.xlu0 %6390
      %v6392 = vsel %vm6341, %v6332, 0.0
      %6393 = vadd.xlane.f32.xlu0 %v6392
      %v6394 = vpop.xlane.xlu0 %6393
      %v6395 = vsel %vm6339, %v6333, 0.0
      %6396 = vadd.xlane.f32.xlu0 %v6395
      %v6397 = vpop.xlane.xlu0 %6396
      %v6398 = vsel %vm6341, %v6334, 0.0
      %6399 = vadd.xlane.f32.xlu0 %v6398
      %v6400 = vpop.xlane.xlu0 %6399
      %v6401 = vsel %vm6339, %v6335, 0.0
      %6402 = vadd.xlane.f32.xlu0 %v6401
      %v6403 = vpop.xlane.xlu0 %6402
      %v6404 = vsel %vm6341, %v6336, 0.0
      %6405 = vadd.xlane.f32.xlu0 %v6404
      %v6406 = vpop.xlane.xlu0 %6405
      %v6407 = vsel %vm6339, %v6337, 0.0
      %6408 = vadd.xlane.f32.xlu0 %v6407
      %v6409 = vpop.xlane.xlu0 %6408
      %v6410 = vsel %vm6341, %v6338, 0.0
      %6411 = vadd.xlane.f32.xlu0 %v6410
      %v6412 = vpop.xlane.xlu0 %6411
      %v6431 = vlaneseq
      %v6432 = vand.u32 %v6431, 127
      %v6433 = vlaneseq
      %v6434 = vshrl.u32 %v6433, 7
      %v6435 = vsub.s32 %v6432, %v6434
      %v6436 = vrot.slane %v6361, %v6435
      %v6437 = vadd.s32 %v6432, 4294967288
      %v6438 = vlaneseq
      %v6439 = vshrl.u32 %v6438, 7
      %v6440 = vsub.s32 %v6437, %v6439
      %v6441 = vrot.slane %v6364, %v6440
      %vm6442 = vcmask 130112
      %v6443 = vsel %vm6442, %v6441, %v6436
      %v6444 = vlaneseq
      %v6445 = vshrl.u32 %v6444, 7
      %v6446 = vsub.s32 %v6432, %v6445
      %v6447 = vrot.slane %v6367, %v6446
      %v6448 = vlaneseq
      %v6449 = vshrl.u32 %v6448, 7
      %v6450 = vsub.s32 %v6437, %v6449
      %v6451 = vrot.slane %v6370, %v6450
      %v6452 = vsel %vm6442, %v6451, %v6447
      %v6453 = vlaneseq
      %v6454 = vshrl.u32 %v6453, 7
      %v6455 = vsub.s32 %v6432, %v6454
      %v6456 = vrot.slane %v6373, %v6455
      %v6457 = vlaneseq
      %v6458 = vshrl.u32 %v6457, 7
      %v6459 = vsub.s32 %v6437, %v6458
      %v6460 = vrot.slane %v6376, %v6459
      %v6461 = vsel %vm6442, %v6460, %v6456
      %v6462 = vlaneseq
      %v6463 = vshrl.u32 %v6462, 7
      %v6464 = vsub.s32 %v6432, %v6463
      %v6465 = vrot.slane %v6379, %v6464
      %v6466 = vlaneseq
      %v6467 = vshrl.u32 %v6466, 7
      %v6468 = vsub.s32 %v6437, %v6467
      %v6469 = vrot.slane %v6382, %v6468
      %v6470 = vsel %vm6442, %v6469, %v6465
      %v6471 = vlaneseq
      %v6472 = vshrl.u32 %v6471, 7
      %v6473 = vsub.s32 %v6432, %v6472
      %v6474 = vrot.slane %v6385, %v6473
      %v6475 = vlaneseq
      %v6476 = vshrl.u32 %v6475, 7
      %v6477 = vsub.s32 %v6437, %v6476
      %v6478 = vrot.slane %v6388, %v6477
      %v6479 = vsel %vm6442, %v6478, %v6474
      %v6480 = vlaneseq
      %v6481 = vshrl.u32 %v6480, 7
      %v6482 = vsub.s32 %v6432, %v6481
      %v6483 = vrot.slane %v6391, %v6482
      %v6484 = vlaneseq
      %v6485 = vshrl.u32 %v6484, 7
      %v6486 = vsub.s32 %v6437, %v6485
      %v6487 = vrot.slane %v6394, %v6486
      %v6488 = vsel %vm6442, %v6487, %v6483
      %v6489 = vlaneseq
      %v6490 = vshrl.u32 %v6489, 7
      %v6491 = vsub.s32 %v6432, %v6490
      %v6492 = vrot.slane %v6397, %v6491
      %v6493 = vlaneseq
      %v6494 = vshrl.u32 %v6493, 7
      %v6495 = vsub.s32 %v6437, %v6494
      %v6496 = vrot.slane %v6400, %v6495
      %v6497 = vsel %vm6442, %v6496, %v6492
      %v6498 = vlaneseq
      %v6499 = vshrl.u32 %v6498, 7
      %v6500 = vsub.s32 %v6432, %v6499
      %v6501 = vrot.slane %v6403, %v6500
      %v6502 = vlaneseq
      %v6503 = vshrl.u32 %v6502, 7
      %v6504 = vsub.s32 %v6437, %v6503
      %v6505 = vrot.slane %v6406, %v6504
      %v6506 = vsel %vm6442, %v6505, %v6501
      %v6507 = vlaneseq
      %v6508 = vshrl.u32 %v6507, 7
      %v6509 = vsub.s32 %v6432, %v6508
      %v6510 = vrot.slane %v6409, %v6509
      %v6511 = vlaneseq
      %v6512 = vshrl.u32 %v6511, 7
      %v6513 = vsub.s32 %v6437, %v6512
      %v6514 = vrot.slane %v6412, %v6513
      %v6515 = vsel %vm6442, %v6514, %v6510
      %vm6516 = vcmask 1041409
      %v6517 = vsel %vm6516, %v6452, %v6443
      %vm6518 = vcmask 1042434
      %v6519 = vsel %vm6518, %v6461, %v6517
      %vm6520 = vcmask 1043459
      %v6521 = vsel %vm6520, %v6470, %v6519
      %vm6522 = vcmask 1044484
      %v6523 = vsel %vm6522, %v6479, %v6521
      %vm6524 = vcmask 1045509
      %v6525 = vsel %vm6524, %v6488, %v6523
      %vm6526 = vcmask 1046534
      %v6527 = vsel %vm6526, %v6497, %v6525
      %vm6528 = vcmask 1047559
      %v6529 = vsel %vm6528, %v6506, %v6527
      %vm6532 = vcmask 72704
      %6533 = vst.msk [vmem:[%s203] sm:$0xff] %vm6532, %v6529
      %vm6534 = vcmask 65536
      %6535 = vst.msk [vmem:[%s203 + $0x8] sm:$0x1] %vm6534, %v6515
      %p6536 = scmp.lt.s32.totalorder %s15, 1
      %s6537 = scalar_select %p6536, %s15, 1
      %s6538 = smul.addr %s6537, 18
      %s6539 = smul.addr %s6538, 8
      %s6540 = scalar_lea.vmem %s2, %s6539
      %p6541 = scmp.lt.s32.totalorder %s15, 1
      %s6542 = scalar_select %p6541, %s15, 1
      %s6543 = smul.addr %s6542, 2
      %s6544 = smul.addr %s6543, 8
      %s6545 = scalar_lea.vmem %s3, %s6544
      // Predicated region
      $region29: #{tpu_custom_call.1} parent=27 // pred_check
        %p6546 = pneg %p85
      $region30: #{tpu_custom_call.1} parent=27 // pred_check_branch
        %6548 = sbr.rel (%p6546) target = $region32
      $region31: #{tpu_custom_call.1} parent=27 // pred_region
        _
      $region32: #{tpu_custom_call.1} parent=27 // pred_fallthru
        _
      // Predicated region
      $region33: #{tpu_custom_call.1} parent=27 // pred_check
        %p6549 = pneg %p111
      $region34: #{tpu_custom_call.1} parent=27 // pred_check_branch
        %6551 = sbr.rel (%p6549) target = $region36
      $region35: #{tpu_custom_call.1} parent=27 // pred_region
        _
      $region36: #{tpu_custom_call.1} parent=27 // pred_fallthru
        _
    $region28: #{tpu_custom_call.1} parent=5 // pred_fallthru
      _
    %p6552 = scmp.le.s32.totalorder 2, %s10
    // Predicated region
    $region37: #{tpu_custom_call.1} parent=5 // pred_check
      %p6553 = pneg %p6552
    $region38: #{tpu_custom_call.1} parent=5 // pred_check_branch
      %6555 = sbr.rel (%p6553) target = $region40
    $region39: #{tpu_custom_call.1} parent=5 // pred_region
      %s6556 = ssub.s32 %s10, 2
      // Predicated region
      $region41: #{tpu_custom_call.1} parent=39 // pred_check
        %p6557 = pneg %p91
      $region42: #{tpu_custom_call.1} parent=39 // pred_check_branch
        %6559 = sbr.rel (%p6557) target = $region44
      $region43: #{tpu_custom_call.1} parent=39 // pred_region
        %p6560 = scmp.lt.s32.totalorder %s16, 1
        %s6561 = scalar_select %p6560, %s16, 1
        %s6562 = smul.addr %s6561, 18
        %s6563 = smul.addr %s6562, 8
        %s6564 = scalar_lea.vmem %s2, %s6563
      $region44: #{tpu_custom_call.1} parent=39 // pred_fallthru
        _
      // Predicated region
      $region45: #{tpu_custom_call.1} parent=39 // pred_check
        %p6565 = pneg %p117
      $region46: #{tpu_custom_call.1} parent=39 // pred_check_branch
        %6567 = sbr.rel (%p6565) target = $region48
      $region47: #{tpu_custom_call.1} parent=39 // pred_region
        %p6568 = scmp.lt.s32.totalorder %s16, 1
        %s6569 = scalar_select %p6568, %s16, 1
        %s6570 = smul.addr %s6569, 2
        %s6571 = smul.addr %s6570, 8
        %s6572 = scalar_lea.vmem %s3, %s6571
      $region48: #{tpu_custom_call.1} parent=39 // pred_fallthru
        _
    $region40: #{tpu_custom_call.1} parent=5 // pred_fallthru
      _
  $region6: #{tpu_custom_call.1} parent=0 // loop_footer
    %s14 = sadd.s32 1, %s10
  $region7: #{tpu_custom_call.1} parent=0 // loop_footer_branch
    %9 = sbr.rel target = $region3
  $region8: #{tpu_custom_call.1} parent=0 // loop_exit
    _

</llo_original>
